<compile_context>
chip_gen: v6e
topology: v6e:2x2x1
jax: 0.10.0
libtpu: 0.0.40
codegen_flags: <defaults>
</compile_context>

<pallas_src>
import functools
import math

import jax
import jax.numpy as jnp
from jax.experimental import pallas as pl
from jax.experimental.pallas import tpu as pltpu


# -----------------------------------------------------------------------------
# Fused forward kernel (grid = (num_layers,))
# -----------------------------------------------------------------------------
def fused_forward_kernel(idx_ref,                        # (N, 1)  int32
                         mask_ref,                       # (N, N)  f32 (0 / -1e9)
                         emb_ref,                        # (Vp, D) f32
                         wqkv_ref, bqkv_ref,             # (D, 3D) bf16, (1, 3D) f32
                         wo_ref, bo_ref,                 # (D, D)  bf16, (1, D)  f32
                         w1_ref, b1_ref,                 # (D, FF) bf16, (1, FF) f32
                         w2_ref, b2_ref,                 # (FF, D) bf16, (1, D)  f32
                         g1_ref, be1_ref, g2_ref, be2_ref,   # (1, D) f32 each
                         fcw_ref, fcb_ref,               # (D, D) bf16, (1, D) f32
                         o_ref,                          # (N, D) f32
                         x_sc,                           # VMEM (N, D) f32 scratch
                         *, num_heads):
    layer = pl.program_id(0)
    N, D = x_sc.shape
    Vp = emb_ref.shape[0]
    H = num_heads
    Dh = D // H
    eps = 1e-5

    # ---- grid step 0: one-hot MXU embedding gather (exact, f32) ----
    @pl.when(layer == 0)
    def _():
        ids = idx_ref[...]                                           # (N, 1) int32
        iota_v = jax.lax.broadcasted_iota(jnp.int32, (N, Vp), 1)     # (N, Vp)
        onehot = jnp.where(iota_v == ids, jnp.float32(1.0), jnp.float32(0.0))
        x_sc[...] = jnp.dot(onehot, emb_ref[...],
                            preferred_element_type=jnp.float32)

    def layer_norm(v, g, bias):
        mu = jnp.mean(v, axis=-1, keepdims=True)
        c = v - mu
        var = jnp.mean(c * c, axis=-1, keepdims=True)                # biased (torch)
        return c * jax.lax.rsqrt(var + eps) * g + bias

    def erf_f32(z):
        # Abramowitz & Stegun 7.1.26, |err| <= 1.5e-7; only exp/mul/add/where.
        a1, a2, a3, a4, a5 = (0.254829592, -0.284496736, 1.421413741,
                              -1.453152027, 1.061405429)
        pc = 0.3275911
        az = jnp.abs(z)
        t = 1.0 / (1.0 + pc * az)
        poly = ((((a5 * t + a4) * t + a3) * t + a2) * t + a1) * t
        y = 1.0 - poly * jnp.exp(-az * az)
        return jnp.where(z >= 0.0, y, -y)

    x = x_sc[...]                                                    # (N, D) f32
    x_b = x.astype(jnp.bfloat16)

    # ---- fused QKV projection (1/sqrt(Dh) pre-folded into Wq / bq) ----
    qkv = jnp.dot(x_b, wqkv_ref[...],
                  preferred_element_type=jnp.float32) + bqkv_ref[...]   # (N, 3D) f32

    # ---- attention: ONE head-batched einsum per stage, head = batch dim ----
    def split_heads(col_off):
        return jnp.stack(
            [qkv[:, col_off + h * Dh: col_off + (h + 1) * Dh] for h in range(H)],
            axis=0)                                                  # (H, N, Dh)

    q_h = split_heads(0).astype(jnp.bfloat16)
    k_h = split_heads(D).astype(jnp.bfloat16)
    v_h = split_heads(2 * D).astype(jnp.bfloat16)

    s = jnp.einsum('hqd,hkd->hqk', q_h, k_h,
                   preferred_element_type=jnp.float32)               # (H, N, N)
    s = s + mask_ref[...]                      # block-diagonal batch mask (0 / -1e9)
    s = s - jnp.max(s, axis=-1, keepdims=True)
    p = jnp.exp(s)
    p = p * pl.reciprocal(jnp.sum(p, axis=-1, keepdims=True), approx=True)

    ctx = jnp.einsum('hqk,hkd->hqd', p.astype(jnp.bfloat16), v_h,
                     preferred_element_type=jnp.float32)             # (H, N, Dh)
    # pack heads lane-dense back to (N, D) and do ONE K=128 matmul against Wo
    ctx_flat = jnp.concatenate([ctx[h] for h in range(H)], axis=-1)  # (N, D)
    attn = jnp.dot(ctx_flat.astype(jnp.bfloat16), wo_ref[...],
                   preferred_element_type=jnp.float32) + bo_ref[...]

    # ---- post-norm residual 1 ----
    y = layer_norm(x + attn, g1_ref[...], be1_ref[...])

    # ---- GELU feed-forward ----
    h1 = jnp.dot(y.astype(jnp.bfloat16), w1_ref[...],
                 preferred_element_type=jnp.float32) + b1_ref[...]
    h1 = 0.5 * h1 * (1.0 + erf_f32(h1 * (1.0 / math.sqrt(2.0))))     # exact GELU
    h2 = jnp.dot(h1.astype(jnp.bfloat16), w2_ref[...],
                 preferred_element_type=jnp.float32) + b2_ref[...]

    # ---- post-norm residual 2; keep activation resident for the next layer ----
    out = layer_norm(y + h2, g2_ref[...], be2_ref[...])
    x_sc[...] = out

    # ---- last layer: fused final Linear + single lane-dense output store ----
    @pl.when(layer == pl.num_programs(0) - 1)
    def _():
        o_ref[...] = jnp.dot(out.astype(jnp.bfloat16), fcw_ref[...],
                             preferred_element_type=jnp.float32) + fcb_ref[...]


# -----------------------------------------------------------------------------
# Wrapper: one pallas_call for the whole model
# -----------------------------------------------------------------------------
def word2vec_transformer_forward(word_idx, params, *, num_heads):
    B, S = word_idx.shape
    N = B * S
    Vp, D = params["embedding"].shape
    L = params["wqkv_t"].shape[0]
    FF = params["w1_t"].shape[2]

    idx = word_idx.reshape(N, 1).astype(jnp.int32)
    # additive block-diagonal mask: query row only attends to keys of its batch
    batch_id = jnp.repeat(jnp.arange(B, dtype=jnp.int32), S)
    attn_mask = jnp.where(batch_id[:, None] == batch_id[None, :],
                          0.0, -1e9).astype(jnp.float32)             # (N, N)

    grid_spec = pltpu.PrefetchScalarGridSpec(
        num_scalar_prefetch=0,
        grid=(L,),
        in_specs=[
            pl.BlockSpec((N, 1), lambda l: (0, 0)),                  # word indices
            pl.BlockSpec((N, N), lambda l: (0, 0)),                  # batch mask
            pl.BlockSpec((Vp, D), lambda l: (0, 0)),                 # embedding table
            pl.BlockSpec((None, D, 3 * D), lambda l: (l, 0, 0)),     # wqkv_t
            pl.BlockSpec((None, 1, 3 * D), lambda l: (l, 0, 0)),     # bqkv
            pl.BlockSpec((None, D, D), lambda l: (l, 0, 0)),         # wo_t
            pl.BlockSpec((None, 1, D), lambda l: (l, 0, 0)),         # bo
            pl.BlockSpec((None, D, FF), lambda l: (l, 0, 0)),        # w1_t
            pl.BlockSpec((None, 1, FF), lambda l: (l, 0, 0)),        # b1
            pl.BlockSpec((None, FF, D), lambda l: (l, 0, 0)),        # w2_t
            pl.BlockSpec((None, 1, D), lambda l: (l, 0, 0)),         # b2
            pl.BlockSpec((None, 1, D), lambda l: (l, 0, 0)),         # g1
            pl.BlockSpec((None, 1, D), lambda l: (l, 0, 0)),         # be1
            pl.BlockSpec((None, 1, D), lambda l: (l, 0, 0)),         # g2
            pl.BlockSpec((None, 1, D), lambda l: (l, 0, 0)),         # be2
            pl.BlockSpec((D, D), lambda l: (0, 0)),                  # fc_w_t
            pl.BlockSpec((1, D), lambda l: (0, 0)),                  # fc_b
        ],
        out_specs=pl.BlockSpec((N, D), lambda l: (0, 0)),
        scratch_shapes=[pltpu.VMEM((N, D), jnp.float32)],
    )

    out = pl.pallas_call(
        functools.partial(fused_forward_kernel, num_heads=num_heads),
        out_shape=jax.ShapeDtypeStruct((N, D), jnp.float32),
        grid_spec=grid_spec,
        compiler_params=pltpu.CompilerParams(
            dimension_semantics=("arbitrary",),
            vmem_limit_bytes=32 * 1024 * 1024),
    )(idx, attn_mask,
      params["embedding"],
      params["wqkv_t"], params["bqkv"],
      params["wo_t"], params["bo"],
      params["w1_t"], params["b1"],
      params["w2_t"], params["b2"],
      params["g1"], params["be1"], params["g2"], params["be2"],
      params["fc_w_t"], params["fc_b"])

    return out.reshape(B, S, D)


# -----------------------------------------------------------------------------
# Deterministic parameter init (synthetic weights, shapes from the nn.Module).
# Matmul weights are pre-transposed (x @ W.T + b  ->  x @ W_t + b), stacked
# over layers, and stored in bf16 for the MXU; biases/norm params stay f32.
# The embedding table is zero-padded to a multiple of 128 rows so the one-hot
# gather matmul is lane-aligned (padding rows are never selected).
# -----------------------------------------------------------------------------
def init_params(key, vocab_size, d_model, num_heads, num_layers, dim_ff):
    head_dim = d_model // num_heads
    scale = 1.0 / math.sqrt(head_dim)
    vocab_pad = ((vocab_size + 127) // 128) * 128
    keys = iter(jax.random.split(key, 3 + 12 * num_layers))

    def w(shape, s=0.02):
        return (s * jax.random.normal(next(keys), shape)).astype(jnp.float32)

    emb = jnp.pad(w((vocab_size, d_model)), ((0, vocab_pad - vocab_size), (0, 0)))
    fc_w_t = w((d_model, d_model))
    fc_b = w((1, d_model))

    wqkv, bqkv, wo, bo = [], [], [], []
    w1, b1, w2, b2 = [], [], [], []
    g1, be1, g2, be2 = [], [], [], []
    for _ in range(num_layers):
        wq_t = w((d_model, d_model)) * scale      # fold 1/sqrt(Dh) into Wq
        wk_t = w((d_model, d_model))
        wv_t = w((d_model, d_model))
        bq = w((1, d_model)) * scale              # ... and into bq
        bk = w((1, d_model))
        bv = w((1, d_model))
        wqkv.append(jnp.concatenate([wq_t, wk_t, wv_t], axis=1))   # (D, 3D)
        bqkv.append(jnp.concatenate([bq, bk, bv], axis=1))         # (1, 3D)
        wo.append(w((d_model, d_model)))
        bo.append(w((1, d_model)))
        w1.append(w((d_model, dim_ff)))
        b1.append(w((1, dim_ff)))
        w2.append(w((dim_ff, d_model)))
        b2.append(w((1, d_model)))
        g1.append(jnp.ones((1, d_model), jnp.float32))
        be1.append(jnp.zeros((1, d_model), jnp.float32))
        g2.append(jnp.ones((1, d_model), jnp.float32))
        be2.append(jnp.zeros((1, d_model), jnp.float32))

    stack = lambda xs: jnp.stack(xs, axis=0)
    return {
        "embedding": emb,
        "wqkv_t": stack(wqkv).astype(jnp.bfloat16),
        "bqkv": stack(bqkv),
        "wo_t": stack(wo).astype(jnp.bfloat16),
        "bo": stack(bo),
        "w1_t": stack(w1).astype(jnp.bfloat16),
        "b1": stack(b1),
        "w2_t": stack(w2).astype(jnp.bfloat16),
        "b2": stack(b2),
        "g1": stack(g1), "be1": stack(be1), "g2": stack(g2), "be2": stack(be2),
        "fc_w_t": fc_w_t.astype(jnp.bfloat16),
        "fc_b": fc_b,
    }


# -----------------------------------------------------------------------------
if __name__ == "__main__":
    # Small, TPU-friendly shapes consistent with the module's constructor args.
    VOCAB = 100
    D_MODEL = 128        # embedding_dim
    NUM_HEADS = 4
    NUM_LAYERS = 2
    DIM_FF = 1024        # hardcoded dim_feedforward in the module
    B, S = 2, 8

    key = jax.random.PRNGKey(0)
    k_param, k_idx = jax.random.split(key)
    params = init_params(k_param, VOCAB, D_MODEL, NUM_HEADS, NUM_LAYERS, DIM_FF)
    word_idx = jax.random.randint(k_idx, (B, S), 0, VOCAB, dtype=jnp.int32)

    # TODO(synk): dropout layers are identity here (inference forward only).
    out = word2vec_transformer_forward(word_idx, params, num_heads=NUM_HEADS)
    out = jax.block_until_ready(out)
    assert out.shape == (B, S, D_MODEL) and out.dtype == jnp.float32
    assert bool(jnp.all(jnp.isfinite(out)))
    print("KERNEL_OK")
</pallas_src>

<mosaic_0001>
module attributes {stable_mosaic.version = 11 : i64} {
  func.func @fused_forward_kernel(%arg0: i32, %arg1: memref<16x1xi32, #tpu.memory_space<vmem>>, %arg2: memref<16x16xf32, #tpu.memory_space<vmem>>, %arg3: memref<128x128xf32, #tpu.memory_space<vmem>>, %arg4: memref<1x128x384xbf16, #tpu.memory_space<vmem>>, %arg5: memref<1x1x384xf32, #tpu.memory_space<vmem>>, %arg6: memref<1x128x128xbf16, #tpu.memory_space<vmem>>, %arg7: memref<1x1x128xf32, #tpu.memory_space<vmem>>, %arg8: memref<1x128x1024xbf16, #tpu.memory_space<vmem>>, %arg9: memref<1x1x1024xf32, #tpu.memory_space<vmem>>, %arg10: memref<1x1024x128xbf16, #tpu.memory_space<vmem>>, %arg11: memref<1x1x128xf32, #tpu.memory_space<vmem>>, %arg12: memref<1x1x128xf32, #tpu.memory_space<vmem>>, %arg13: memref<1x1x128xf32, #tpu.memory_space<vmem>>, %arg14: memref<1x1x128xf32, #tpu.memory_space<vmem>>, %arg15: memref<1x1x128xf32, #tpu.memory_space<vmem>>, %arg16: memref<128x128xbf16, #tpu.memory_space<vmem>>, %arg17: memref<1x128xf32, #tpu.memory_space<vmem>>, %arg18: memref<16x128xf32, #tpu.memory_space<vmem>>, %arg19: memref<16x128xf32, #tpu.memory_space<vmem>>) attributes {dimension_semantics = [#tpu.dimension_semantics<arbitrary>], iteration_bounds = array<i64: 2>, scalar_prefetch = 0 : i64, scratch_operands = 1 : i64, tpu.core_type = #tpu.core_type<tc>, window_params = [{pipeline_mode = #tpu.pipeline_mode<synchronous>, transform_indices = @transform_0, window_bounds = array<i64: 16, 1>}, {pipeline_mode = #tpu.pipeline_mode<synchronous>, transform_indices = @transform_1, window_bounds = array<i64: 16, 16>}, {pipeline_mode = #tpu.pipeline_mode<synchronous>, transform_indices = @transform_2, window_bounds = array<i64: 128, 128>}, {transform_indices = @transform_3, window_bounds = array<i64: 1, 128, 384>}, {transform_indices = @transform_4, window_bounds = array<i64: 1, 1, 384>}, {transform_indices = @transform_5, window_bounds = array<i64: 1, 128, 128>}, {transform_indices = @transform_6, window_bounds = array<i64: 1, 1, 128>}, {transform_indices = @transform_7, window_bounds = array<i64: 1, 128, 1024>}, {transform_indices = @transform_8, window_bounds = array<i64: 1, 1, 1024>}, {transform_indices = @transform_9, window_bounds = array<i64: 1, 1024, 128>}, {transform_indices = @transform_10, window_bounds = array<i64: 1, 1, 128>}, {transform_indices = @transform_11, window_bounds = array<i64: 1, 1, 128>}, {transform_indices = @transform_12, window_bounds = array<i64: 1, 1, 128>}, {transform_indices = @transform_13, window_bounds = array<i64: 1, 1, 128>}, {transform_indices = @transform_14, window_bounds = array<i64: 1, 1, 128>}, {pipeline_mode = #tpu.pipeline_mode<synchronous>, transform_indices = @transform_15, window_bounds = array<i64: 128, 128>}, {pipeline_mode = #tpu.pipeline_mode<synchronous>, transform_indices = @transform_16, window_bounds = array<i64: 1, 128>}, {pipeline_mode = #tpu.pipeline_mode<synchronous>, transform_indices = @transform_17, window_bounds = array<i64: 16, 128>}]} {
    %c0_i32 = arith.constant 0 : i32
    %0 = arith.cmpi eq, %arg0, %c0_i32 : i32
    %1 = arith.extui %0 : i1 to i32
    %c0_i32_0 = arith.constant 0 : i32
    %2 = arith.cmpi ne, %1, %c0_i32_0 : i32
    scf.if %2 {
      %c0_75 = arith.constant 0 : index
      %c0_76 = arith.constant 0 : index
      %186 = vector.load %arg1[%c0_75, %c0_76] : memref<16x1xi32, #tpu.memory_space<vmem>>, vector<16x1xi32>
      %187 = tpu.iota {dimensions = array<i32: 1>} : vector<16x128xi32>
      %188 = vector.broadcast %186 : vector<16x1xi32> to vector<16x128xi32>
      %189 = arith.cmpi eq, %187, %188 : vector<16x128xi32>
      %cst_77 = arith.constant 1.000000e+00 : f32
      %cst_78 = arith.constant 0.000000e+00 : f32
      %190 = vector.broadcast %cst_77 : f32 to vector<16x128xf32>
      %191 = vector.broadcast %cst_78 : f32 to vector<16x128xf32>
      %192 = arith.select %189, %190, %191 : vector<16x128xi1>, vector<16x128xf32>
      %c0_79 = arith.constant 0 : index
      %c0_80 = arith.constant 0 : index
      %193 = vector.load %arg3[%c0_79, %c0_80] : memref<128x128xf32, #tpu.memory_space<vmem>>, vector<128x128xf32>
      %cst_81 = arith.constant dense<0.000000e+00> : vector<16x128xf32>
      %194 = tpu.matmul %192, %193, %cst_81 {dimension_numbers = #tpu.dot_dimension_numbers<[1], [0], [0], [1], [0, 0, 1, 1], [], []>} : vector<16x128xf32>, vector<128x128xf32>, vector<16x128xf32> -> vector<16x128xf32>
      %c0_82 = arith.constant 0 : index
      %c0_83 = arith.constant 0 : index
      %195 = vector.load %arg19[%c0_82, %c0_83] : memref<16x128xf32, #tpu.memory_space<vmem>>, vector<16x128xf32>
      tpu.vector_store %arg19[%c0_82, %c0_83], %194 {strides = array<i32>} : memref<16x128xf32, #tpu.memory_space<vmem>>, vector<16x128xf32>,
    } else {
    }
    %c0 = arith.constant 0 : index
    %c0_1 = arith.constant 0 : index
    %3 = vector.load %arg19[%c0, %c0_1] : memref<16x128xf32, #tpu.memory_space<vmem>>, vector<16x128xf32>
    %4 = arith.truncf %3 : vector<16x128xf32> to vector<16x128xbf16>
    %c0_2 = arith.constant 0 : index
    %c0_3 = arith.constant 0 : index
    %c0_4 = arith.constant 0 : index
    %5 = vector.load %arg4[%c0_2, %c0_3, %c0_4] : memref<1x128x384xbf16, #tpu.memory_space<vmem>>, vector<1x128x384xbf16>
    %6 = vector.shape_cast %5 : vector<1x128x384xbf16> to vector<128x384xbf16>
    %cst = arith.constant dense<0.000000e+00> : vector<16x384xf32>
    %7 = tpu.matmul %4, %6, %cst {dimension_numbers = #tpu.dot_dimension_numbers<[1], [0], [0], [1], [0, 0, 1, 1], [], []>} : vector<16x128xbf16>, vector<128x384xbf16>, vector<16x384xf32> -> vector<16x384xf32>
    %c0_5 = arith.constant 0 : index
    %c0_6 = arith.constant 0 : index
    %c0_7 = arith.constant 0 : index
    %8 = vector.load %arg5[%c0_5, %c0_6, %c0_7] : memref<1x1x384xf32, #tpu.memory_space<vmem>>, vector<1x1x384xf32>
    %9 = vector.shape_cast %8 : vector<1x1x384xf32> to vector<1x384xf32>
    %10 = vector.broadcast %9 : vector<1x384xf32> to vector<16x384xf32>
    %11 = arith.addf %7, %10 : vector<16x384xf32>
    %12 = vector.extract_strided_slice %11 {offsets = [0, 0], sizes = [16, 32], strides = [1, 1]} : vector<16x384xf32> to vector<16x32xf32>
    %13 = vector.extract_strided_slice %11 {offsets = [0, 32], sizes = [16, 32], strides = [1, 1]} : vector<16x384xf32> to vector<16x32xf32>
    %14 = vector.extract_strided_slice %11 {offsets = [0, 64], sizes = [16, 32], strides = [1, 1]} : vector<16x384xf32> to vector<16x32xf32>
    %15 = vector.extract_strided_slice %11 {offsets = [0, 96], sizes = [16, 32], strides = [1, 1]} : vector<16x384xf32> to vector<16x32xf32>
    %16 = vector.shape_cast %12 : vector<16x32xf32> to vector<1x16x32xf32>
    %17 = vector.shape_cast %13 : vector<16x32xf32> to vector<1x16x32xf32>
    %18 = vector.shape_cast %14 : vector<16x32xf32> to vector<1x16x32xf32>
    %19 = vector.shape_cast %15 : vector<16x32xf32> to vector<1x16x32xf32>
    %20 = tpu.concatenate %16, %17, %18, %19 in 0 : vector<1x16x32xf32>, vector<1x16x32xf32>, vector<1x16x32xf32>, vector<1x16x32xf32> -> vector<4x16x32xf32>
    %21 = arith.truncf %20 : vector<4x16x32xf32> to vector<4x16x32xbf16>
    %22 = vector.extract_strided_slice %11 {offsets = [0, 128], sizes = [16, 32], strides = [1, 1]} : vector<16x384xf32> to vector<16x32xf32>
    %23 = vector.extract_strided_slice %11 {offsets = [0, 160], sizes = [16, 32], strides = [1, 1]} : vector<16x384xf32> to vector<16x32xf32>
    %24 = vector.extract_strided_slice %11 {offsets = [0, 192], sizes = [16, 32], strides = [1, 1]} : vector<16x384xf32> to vector<16x32xf32>
    %25 = vector.extract_strided_slice %11 {offsets = [0, 224], sizes = [16, 32], strides = [1, 1]} : vector<16x384xf32> to vector<16x32xf32>
    %26 = vector.shape_cast %22 : vector<16x32xf32> to vector<1x16x32xf32>
    %27 = vector.shape_cast %23 : vector<16x32xf32> to vector<1x16x32xf32>
    %28 = vector.shape_cast %24 : vector<16x32xf32> to vector<1x16x32xf32>
    %29 = vector.shape_cast %25 : vector<16x32xf32> to vector<1x16x32xf32>
    %30 = tpu.concatenate %26, %27, %28, %29 in 0 : vector<1x16x32xf32>, vector<1x16x32xf32>, vector<1x16x32xf32>, vector<1x16x32xf32> -> vector<4x16x32xf32>
    %31 = arith.truncf %30 : vector<4x16x32xf32> to vector<4x16x32xbf16>
    %32 = vector.extract_strided_slice %11 {offsets = [0, 256], sizes = [16, 32], strides = [1, 1]} : vector<16x384xf32> to vector<16x32xf32>
    %33 = vector.extract_strided_slice %11 {offsets = [0, 288], sizes = [16, 32], strides = [1, 1]} : vector<16x384xf32> to vector<16x32xf32>
    %34 = vector.extract_strided_slice %11 {offsets = [0, 320], sizes = [16, 32], strides = [1, 1]} : vector<16x384xf32> to vector<16x32xf32>
    %35 = vector.extract_strided_slice %11 {offsets = [0, 352], sizes = [16, 32], strides = [1, 1]} : vector<16x384xf32> to vector<16x32xf32>
    %36 = vector.shape_cast %32 : vector<16x32xf32> to vector<1x16x32xf32>
    %37 = vector.shape_cast %33 : vector<16x32xf32> to vector<1x16x32xf32>
    %38 = vector.shape_cast %34 : vector<16x32xf32> to vector<1x16x32xf32>
    %39 = vector.shape_cast %35 : vector<16x32xf32> to vector<1x16x32xf32>
    %40 = tpu.concatenate %36, %37, %38, %39 in 0 : vector<1x16x32xf32>, vector<1x16x32xf32>, vector<1x16x32xf32>, vector<1x16x32xf32> -> vector<4x16x32xf32>
    %41 = arith.truncf %40 : vector<4x16x32xf32> to vector<4x16x32xbf16>
    "tpu.trace_start"() <{level = 10 : i32, message = "hqd,hkd->hqk"}> : () -> ()
    %cst_8 = arith.constant dense<0.000000e+00> : vector<4x16x16xf32>
    %42 = tpu.matmul %21, %31, %cst_8 {dimension_numbers = #tpu.dot_dimension_numbers<[2], [2], [1], [1], [0, 0, 0, 1, 1, 1], [0], [0]>} : vector<4x16x32xbf16>, vector<4x16x32xbf16>, vector<4x16x16xf32> -> vector<4x16x16xf32>
    "tpu.trace_stop"() : () -> ()
    %c0_9 = arith.constant 0 : index
    %c0_10 = arith.constant 0 : index
    %43 = vector.load %arg2[%c0_9, %c0_10] : memref<16x16xf32, #tpu.memory_space<vmem>>, vector<16x16xf32>
    %44 = vector.shape_cast %43 : vector<16x16xf32> to vector<1x16x16xf32>
    %45 = vector.broadcast %44 : vector<1x16x16xf32> to vector<4x16x16xf32>
    %46 = arith.addf %42, %45 : vector<4x16x16xf32>
    %cst_11 = arith.constant dense<0xFF800000> : vector<4x16xf32>
    %47 = vector.multi_reduction <maximumf>, %46, %cst_11 [2] : vector<4x16x16xf32> to vector<4x16xf32>
    %48 = vector.shape_cast %47 : vector<4x16xf32> to vector<4x16x1xf32>
    %49 = vector.broadcast %48 : vector<4x16x1xf32> to vector<4x16x16xf32>
    %50 = arith.subf %46, %49 : vector<4x16x16xf32>
    %51 = math.exp %50 : vector<4x16x16xf32>
    %cst_12 = arith.constant dense<0.000000e+00> : vector<4x16xf32>
    %52 = vector.multi_reduction <add>, %51, %cst_12 [2] : vector<4x16x16xf32> to vector<4x16xf32>
    %53 = vector.shape_cast %52 : vector<4x16xf32> to vector<4x16x1xf32>
    %54 = tpu.reciprocal %53 {approx = true} : vector<4x16x1xf32> -> vector<4x16x1xf32>
    %55 = vector.broadcast %54 : vector<4x16x1xf32> to vector<4x16x16xf32>
    %56 = arith.mulf %51, %55 : vector<4x16x16xf32>
    %57 = arith.truncf %56 : vector<4x16x16xf32> to vector<4x16x16xbf16>
    "tpu.trace_start"() <{level = 10 : i32, message = "hqk,hkd->hqd"}> : () -> ()
    %cst_13 = arith.constant dense<0.000000e+00> : vector<4x16x32xf32>
    %58 = tpu.matmul %57, %41, %cst_13 {dimension_numbers = #tpu.dot_dimension_numbers<[2], [1], [1], [2], [0, 0, 0, 1, 1, 2], [0], [0]>} : vector<4x16x16xbf16>, vector<4x16x32xbf16>, vector<4x16x32xf32> -> vector<4x16x32xf32>
    "tpu.trace_stop"() : () -> ()
    %59 = vector.extract_strided_slice %58 {offsets = [0, 0, 0], sizes = [1, 16, 32], strides = [1, 1, 1]} : vector<4x16x32xf32> to vector<1x16x32xf32>
    %60 = vector.shape_cast %59 : vector<1x16x32xf32> to vector<16x32xf32>
    %61 = vector.extract_strided_slice %58 {offsets = [1, 0, 0], sizes = [1, 16, 32], strides = [1, 1, 1]} : vector<4x16x32xf32> to vector<1x16x32xf32>
    %62 = vector.shape_cast %61 : vector<1x16x32xf32> to vector<16x32xf32>
    %63 = vector.extract_strided_slice %58 {offsets = [2, 0, 0], sizes = [1, 16, 32], strides = [1, 1, 1]} : vector<4x16x32xf32> to vector<1x16x32xf32>
    %64 = vector.shape_cast %63 : vector<1x16x32xf32> to vector<16x32xf32>
    %65 = vector.extract_strided_slice %58 {offsets = [3, 0, 0], sizes = [1, 16, 32], strides = [1, 1, 1]} : vector<4x16x32xf32> to vector<1x16x32xf32>
    %66 = vector.shape_cast %65 : vector<1x16x32xf32> to vector<16x32xf32>
    %67 = tpu.concatenate %60, %62, %64, %66 in 1 : vector<16x32xf32>, vector<16x32xf32>, vector<16x32xf32>, vector<16x32xf32> -> vector<16x128xf32>
    %68 = arith.truncf %67 : vector<16x128xf32> to vector<16x128xbf16>
    %c0_14 = arith.constant 0 : index
    %c0_15 = arith.constant 0 : index
    %c0_16 = arith.constant 0 : index
    %69 = vector.load %arg6[%c0_14, %c0_15, %c0_16] : memref<1x128x128xbf16, #tpu.memory_space<vmem>>, vector<1x128x128xbf16>
    %70 = vector.shape_cast %69 : vector<1x128x128xbf16> to vector<128x128xbf16>
    %cst_17 = arith.constant dense<0.000000e+00> : vector<16x128xf32>
    %71 = tpu.matmul %68, %70, %cst_17 {dimension_numbers = #tpu.dot_dimension_numbers<[1], [0], [0], [1], [0, 0, 1, 1], [], []>} : vector<16x128xbf16>, vector<128x128xbf16>, vector<16x128xf32> -> vector<16x128xf32>
    %c0_18 = arith.constant 0 : index
    %c0_19 = arith.constant 0 : index
    %c0_20 = arith.constant 0 : index
    %72 = vector.load %arg7[%c0_18, %c0_19, %c0_20] : memref<1x1x128xf32, #tpu.memory_space<vmem>>, vector<1x1x128xf32>
    %73 = vector.shape_cast %72 : vector<1x1x128xf32> to vector<1x128xf32>
    %74 = vector.broadcast %73 : vector<1x128xf32> to vector<16x128xf32>
    %75 = arith.addf %71, %74 : vector<16x128xf32>
    %76 = arith.addf %3, %75 : vector<16x128xf32>
    %c0_21 = arith.constant 0 : index
    %c0_22 = arith.constant 0 : index
    %c0_23 = arith.constant 0 : index
    %77 = vector.load %arg12[%c0_21, %c0_22, %c0_23] : memref<1x1x128xf32, #tpu.memory_space<vmem>>, vector<1x1x128xf32>
    %78 = vector.shape_cast %77 : vector<1x1x128xf32> to vector<1x128xf32>
    %c0_24 = arith.constant 0 : index
    %c0_25 = arith.constant 0 : index
    %c0_26 = arith.constant 0 : index
    %79 = vector.load %arg13[%c0_24, %c0_25, %c0_26] : memref<1x1x128xf32, #tpu.memory_space<vmem>>, vector<1x1x128xf32>
    %80 = vector.shape_cast %79 : vector<1x1x128xf32> to vector<1x128xf32>
    %cst_27 = arith.constant dense<0.000000e+00> : vector<16xf32>
    %81 = vector.multi_reduction <add>, %76, %cst_27 [1] : vector<16x128xf32> to vector<16xf32>
    %82 = vector.shape_cast %81 : vector<16xf32> to vector<16x1xf32>
    %cst_28 = arith.constant 1.280000e+02 : f32
    %83 = vector.broadcast %cst_28 : f32 to vector<16x1xf32>
    %84 = arith.divf %82, %83 : vector<16x1xf32>
    %85 = vector.broadcast %84 : vector<16x1xf32> to vector<16x128xf32>
    %86 = arith.subf %76, %85 : vector<16x128xf32>
    %87 = arith.mulf %86, %86 : vector<16x128xf32>
    %cst_29 = arith.constant dense<0.000000e+00> : vector<16xf32>
    %88 = vector.multi_reduction <add>, %87, %cst_29 [1] : vector<16x128xf32> to vector<16xf32>
    %89 = vector.shape_cast %88 : vector<16xf32> to vector<16x1xf32>
    %cst_30 = arith.constant 1.280000e+02 : f32
    %90 = vector.broadcast %cst_30 : f32 to vector<16x1xf32>
    %91 = arith.divf %89, %90 : vector<16x1xf32>
    %cst_31 = arith.constant 9.99999974E-6 : f32
    %92 = vector.broadcast %cst_31 : f32 to vector<16x1xf32>
    %93 = arith.addf %91, %92 : vector<16x1xf32>
    %94 = math.rsqrt %93 : vector<16x1xf32>
    %95 = vector.broadcast %94 : vector<16x1xf32> to vector<16x128xf32>
    %96 = arith.mulf %86, %95 : vector<16x128xf32>
    %97 = vector.broadcast %78 : vector<1x128xf32> to vector<16x128xf32>
    %98 = arith.mulf %96, %97 : vector<16x128xf32>
    %99 = vector.broadcast %80 : vector<1x128xf32> to vector<16x128xf32>
    %100 = arith.addf %98, %99 : vector<16x128xf32>
    %101 = arith.truncf %100 : vector<16x128xf32> to vector<16x128xbf16>
    %c0_32 = arith.constant 0 : index
    %c0_33 = arith.constant 0 : index
    %c0_34 = arith.constant 0 : index
    %102 = vector.load %arg8[%c0_32, %c0_33, %c0_34] : memref<1x128x1024xbf16, #tpu.memory_space<vmem>>, vector<1x128x1024xbf16>
    %103 = vector.shape_cast %102 : vector<1x128x1024xbf16> to vector<128x1024xbf16>
    %cst_35 = arith.constant dense<0.000000e+00> : vector<16x1024xf32>
    %104 = tpu.matmul %101, %103, %cst_35 {dimension_numbers = #tpu.dot_dimension_numbers<[1], [0], [0], [1], [0, 0, 1, 1], [], []>} : vector<16x128xbf16>, vector<128x1024xbf16>, vector<16x1024xf32> -> vector<16x1024xf32>
    %c0_36 = arith.constant 0 : index
    %c0_37 = arith.constant 0 : index
    %c0_38 = arith.constant 0 : index
    %105 = vector.load %arg9[%c0_36, %c0_37, %c0_38] : memref<1x1x1024xf32, #tpu.memory_space<vmem>>, vector<1x1x1024xf32>
    %106 = vector.shape_cast %105 : vector<1x1x1024xf32> to vector<1x1024xf32>
    %107 = vector.broadcast %106 : vector<1x1024xf32> to vector<16x1024xf32>
    %108 = arith.addf %104, %107 : vector<16x1024xf32>
    %cst_39 = arith.constant 5.000000e-01 : f32
    %109 = vector.broadcast %cst_39 : f32 to vector<16x1024xf32>
    %110 = arith.mulf %109, %108 : vector<16x1024xf32>
    %cst_40 = arith.constant 0.707106769 : f32
    %111 = vector.broadcast %cst_40 : f32 to vector<16x1024xf32>
    %112 = arith.mulf %108, %111 : vector<16x1024xf32>
    %113 = math.absf %112 : vector<16x1024xf32>
    %cst_41 = arith.constant 0.327591091 : f32
    %114 = vector.broadcast %cst_41 : f32 to vector<16x1024xf32>
    %115 = arith.mulf %114, %113 : vector<16x1024xf32>
    %cst_42 = arith.constant 1.000000e+00 : f32
    %116 = vector.broadcast %cst_42 : f32 to vector<16x1024xf32>
    %117 = arith.addf %116, %115 : vector<16x1024xf32>
    %cst_43 = arith.constant 1.000000e+00 : f32
    %118 = vector.broadcast %cst_43 : f32 to vector<16x1024xf32>
    %119 = arith.divf %118, %117 : vector<16x1024xf32>
    %cst_44 = arith.constant 1.06140542 : f32
    %120 = vector.broadcast %cst_44 : f32 to vector<16x1024xf32>
    %121 = arith.mulf %120, %119 : vector<16x1024xf32>
    %cst_45 = arith.constant -1.45315206 : f32
    %122 = vector.broadcast %cst_45 : f32 to vector<16x1024xf32>
    %123 = arith.addf %121, %122 : vector<16x1024xf32>
    %124 = arith.mulf %123, %119 : vector<16x1024xf32>
    %cst_46 = arith.constant 1.42141378 : f32
    %125 = vector.broadcast %cst_46 : f32 to vector<16x1024xf32>
    %126 = arith.addf %124, %125 : vector<16x1024xf32>
    %127 = arith.mulf %126, %119 : vector<16x1024xf32>
    %cst_47 = arith.constant -0.284496725 : f32
    %128 = vector.broadcast %cst_47 : f32 to vector<16x1024xf32>
    %129 = arith.addf %127, %128 : vector<16x1024xf32>
    %130 = arith.mulf %129, %119 : vector<16x1024xf32>
    %cst_48 = arith.constant 0.254829586 : f32
    %131 = vector.broadcast %cst_48 : f32 to vector<16x1024xf32>
    %132 = arith.addf %130, %131 : vector<16x1024xf32>
    %133 = arith.mulf %132, %119 : vector<16x1024xf32>
    %cst_49 = arith.constant 0.000000e+00 : f32
    %134 = vector.broadcast %cst_49 : f32 to vector<16x1024xf32>
    %135 = arith.subf %134, %113 : vector<16x1024xf32>
    %136 = arith.mulf %135, %113 : vector<16x1024xf32>
    %137 = math.exp %136 : vector<16x1024xf32>
    %138 = arith.mulf %133, %137 : vector<16x1024xf32>
    %cst_50 = arith.constant 1.000000e+00 : f32
    %139 = vector.broadcast %cst_50 : f32 to vector<16x1024xf32>
    %140 = arith.subf %139, %138 : vector<16x1024xf32>
    %cst_51 = arith.constant 0.000000e+00 : f32
    %141 = vector.broadcast %cst_51 : f32 to vector<16x1024xf32>
    %142 = arith.cmpf oge, %112, %141 : vector<16x1024xf32>
    %cst_52 = arith.constant 0.000000e+00 : f32
    %143 = vector.broadcast %cst_52 : f32 to vector<16x1024xf32>
    %144 = arith.subf %143, %140 : vector<16x1024xf32>
    %145 = arith.select %142, %140, %144 : vector<16x1024xi1>, vector<16x1024xf32>
    %cst_53 = arith.constant 1.000000e+00 : f32
    %146 = vector.broadcast %cst_53 : f32 to vector<16x1024xf32>
    %147 = arith.addf %146, %145 : vector<16x1024xf32>
    %148 = arith.mulf %110, %147 : vector<16x1024xf32>
    %149 = arith.truncf %148 : vector<16x1024xf32> to vector<16x1024xbf16>
    %c0_54 = arith.constant 0 : index
    %c0_55 = arith.constant 0 : index
    %c0_56 = arith.constant 0 : index
    %150 = vector.load %arg10[%c0_54, %c0_55, %c0_56] : memref<1x1024x128xbf16, #tpu.memory_space<vmem>>, vector<1x1024x128xbf16>
    %151 = vector.shape_cast %150 : vector<1x1024x128xbf16> to vector<1024x128xbf16>
    %cst_57 = arith.constant dense<0.000000e+00> : vector<16x128xf32>
    %152 = tpu.matmul %149, %151, %cst_57 {dimension_numbers = #tpu.dot_dimension_numbers<[1], [0], [0], [1], [0, 0, 1, 1], [], []>} : vector<16x1024xbf16>, vector<1024x128xbf16>, vector<16x128xf32> -> vector<16x128xf32>
    %c0_58 = arith.constant 0 : index
    %c0_59 = arith.constant 0 : index
    %c0_60 = arith.constant 0 : index
    %153 = vector.load %arg11[%c0_58, %c0_59, %c0_60] : memref<1x1x128xf32, #tpu.memory_space<vmem>>, vector<1x1x128xf32>
    %154 = vector.shape_cast %153 : vector<1x1x128xf32> to vector<1x128xf32>
    %155 = vector.broadcast %154 : vector<1x128xf32> to vector<16x128xf32>
    %156 = arith.addf %152, %155 : vector<16x128xf32>
    %157 = arith.addf %100, %156 : vector<16x128xf32>
    %c0_61 = arith.constant 0 : index
    %c0_62 = arith.constant 0 : index
    %c0_63 = arith.constant 0 : index
    %158 = vector.load %arg14[%c0_61, %c0_62, %c0_63] : memref<1x1x128xf32, #tpu.memory_space<vmem>>, vector<1x1x128xf32>
    %159 = vector.shape_cast %158 : vector<1x1x128xf32> to vector<1x128xf32>
    %c0_64 = arith.constant 0 : index
    %c0_65 = arith.constant 0 : index
    %c0_66 = arith.constant 0 : index
    %160 = vector.load %arg15[%c0_64, %c0_65, %c0_66] : memref<1x1x128xf32, #tpu.memory_space<vmem>>, vector<1x1x128xf32>
    %161 = vector.shape_cast %160 : vector<1x1x128xf32> to vector<1x128xf32>
    %cst_67 = arith.constant dense<0.000000e+00> : vector<16xf32>
    %162 = vector.multi_reduction <add>, %157, %cst_67 [1] : vector<16x128xf32> to vector<16xf32>
    %163 = vector.shape_cast %162 : vector<16xf32> to vector<16x1xf32>
    %cst_68 = arith.constant 1.280000e+02 : f32
    %164 = vector.broadcast %cst_68 : f32 to vector<16x1xf32>
    %165 = arith.divf %163, %164 : vector<16x1xf32>
    %166 = vector.broadcast %165 : vector<16x1xf32> to vector<16x128xf32>
    %167 = arith.subf %157, %166 : vector<16x128xf32>
    %168 = arith.mulf %167, %167 : vector<16x128xf32>
    %cst_69 = arith.constant dense<0.000000e+00> : vector<16xf32>
    %169 = vector.multi_reduction <add>, %168, %cst_69 [1] : vector<16x128xf32> to vector<16xf32>
    %170 = vector.shape_cast %169 : vector<16xf32> to vector<16x1xf32>
    %cst_70 = arith.constant 1.280000e+02 : f32
    %171 = vector.broadcast %cst_70 : f32 to vector<16x1xf32>
    %172 = arith.divf %170, %171 : vector<16x1xf32>
    %cst_71 = arith.constant 9.99999974E-6 : f32
    %173 = vector.broadcast %cst_71 : f32 to vector<16x1xf32>
    %174 = arith.addf %172, %173 : vector<16x1xf32>
    %175 = math.rsqrt %174 : vector<16x1xf32>
    %176 = vector.broadcast %175 : vector<16x1xf32> to vector<16x128xf32>
    %177 = arith.mulf %167, %176 : vector<16x128xf32>
    %178 = vector.broadcast %159 : vector<1x128xf32> to vector<16x128xf32>
    %179 = arith.mulf %177, %178 : vector<16x128xf32>
    %180 = vector.broadcast %161 : vector<1x128xf32> to vector<16x128xf32>
    %181 = arith.addf %179, %180 : vector<16x128xf32>
    %c0_72 = arith.constant 0 : index
    %c0_73 = arith.constant 0 : index
    %182 = vector.load %arg19[%c0_72, %c0_73] : memref<16x128xf32, #tpu.memory_space<vmem>>, vector<16x128xf32>
    tpu.vector_store %arg19[%c0_72, %c0_73], %181 {strides = array<i32>} : memref<16x128xf32, #tpu.memory_space<vmem>>, vector<16x128xf32>,
    %c1_i32 = arith.constant 1 : i32
    %183 = arith.cmpi eq, %arg0, %c1_i32 : i32
    %184 = arith.extui %183 : i1 to i32
    %c0_i32_74 = arith.constant 0 : i32
    %185 = arith.cmpi ne, %184, %c0_i32_74 : i32
    scf.if %185 {
      %186 = arith.truncf %181 : vector<16x128xf32> to vector<16x128xbf16>
      %c0_75 = arith.constant 0 : index
      %c0_76 = arith.constant 0 : index
      %187 = vector.load %arg16[%c0_75, %c0_76] : memref<128x128xbf16, #tpu.memory_space<vmem>>, vector<128x128xbf16>
      %cst_77 = arith.constant dense<0.000000e+00> : vector<16x128xf32>
      %188 = tpu.matmul %186, %187, %cst_77 {dimension_numbers = #tpu.dot_dimension_numbers<[1], [0], [0], [1], [0, 0, 1, 1], [], []>} : vector<16x128xbf16>, vector<128x128xbf16>, vector<16x128xf32> -> vector<16x128xf32>
      %c0_78 = arith.constant 0 : index
      %c0_79 = arith.constant 0 : index
      %189 = vector.load %arg17[%c0_78, %c0_79] : memref<1x128xf32, #tpu.memory_space<vmem>>, vector<1x128xf32>
      %190 = vector.broadcast %189 : vector<1x128xf32> to vector<16x128xf32>
      %191 = arith.addf %188, %190 : vector<16x128xf32>
      %c0_80 = arith.constant 0 : index
      %c0_81 = arith.constant 0 : index
      %192 = vector.load %arg18[%c0_80, %c0_81] : memref<16x128xf32, #tpu.memory_space<vmem>>, vector<16x128xf32>
      tpu.vector_store %arg18[%c0_80, %c0_81], %191 {strides = array<i32>} : memref<16x128xf32, #tpu.memory_space<vmem>>, vector<16x128xf32>,
    } else {
    }
    return
  }
  func.func @transform_0(%arg0: i32) -> (i32, i32) {
    %c0_i32 = arith.constant 0 : i32
    %c0_i32_0 = arith.constant 0 : i32
    %c0_i32_1 = arith.constant 0 : i32
    return %c0_i32, %c0_i32_0 : i32, i32
  }
  func.func @transform_1(%arg0: i32) -> (i32, i32) {
    %c0_i32 = arith.constant 0 : i32
    %c0_i32_0 = arith.constant 0 : i32
    %c0_i32_1 = arith.constant 0 : i32
    return %c0_i32, %c0_i32_0 : i32, i32
  }
  func.func @transform_2(%arg0: i32) -> (i32, i32) {
    %c0_i32 = arith.constant 0 : i32
    %c0_i32_0 = arith.constant 0 : i32
    %c0_i32_1 = arith.constant 0 : i32
    return %c0_i32, %c0_i32_0 : i32, i32
  }
  func.func @transform_3(%arg0: i32) -> (i32, i32, i32) {
    %c0_i32 = arith.constant 0 : i32
    %c0_i32_0 = arith.constant 0 : i32
    %c0_i32_1 = arith.constant 0 : i32
    return %arg0, %c0_i32, %c0_i32_0 : i32, i32, i32
  }
  func.func @transform_4(%arg0: i32) -> (i32, i32, i32) {
    %c0_i32 = arith.constant 0 : i32
    %c0_i32_0 = arith.constant 0 : i32
    %c0_i32_1 = arith.constant 0 : i32
    return %arg0, %c0_i32, %c0_i32_0 : i32, i32, i32
  }
  func.func @transform_5(%arg0: i32) -> (i32, i32, i32) {
    %c0_i32 = arith.constant 0 : i32
    %c0_i32_0 = arith.constant 0 : i32
    %c0_i32_1 = arith.constant 0 : i32
    return %arg0, %c0_i32, %c0_i32_0 : i32, i32, i32
  }
  func.func @transform_6(%arg0: i32) -> (i32, i32, i32) {
    %c0_i32 = arith.constant 0 : i32
    %c0_i32_0 = arith.constant 0 : i32
    %c0_i32_1 = arith.constant 0 : i32
    return %arg0, %c0_i32, %c0_i32_0 : i32, i32, i32
  }
  func.func @transform_7(%arg0: i32) -> (i32, i32, i32) {
    %c0_i32 = arith.constant 0 : i32
    %c0_i32_0 = arith.constant 0 : i32
    %c0_i32_1 = arith.constant 0 : i32
    return %arg0, %c0_i32, %c0_i32_0 : i32, i32, i32
  }
  func.func @transform_8(%arg0: i32) -> (i32, i32, i32) {
    %c0_i32 = arith.constant 0 : i32
    %c0_i32_0 = arith.constant 0 : i32
    %c0_i32_1 = arith.constant 0 : i32
    return %arg0, %c0_i32, %c0_i32_0 : i32, i32, i32
  }
  func.func @transform_9(%arg0: i32) -> (i32, i32, i32) {
    %c0_i32 = arith.constant 0 : i32
    %c0_i32_0 = arith.constant 0 : i32
    %c0_i32_1 = arith.constant 0 : i32
    return %arg0, %c0_i32, %c0_i32_0 : i32, i32, i32
  }
  func.func @transform_10(%arg0: i32) -> (i32, i32, i32) {
    %c0_i32 = arith.constant 0 : i32
    %c0_i32_0 = arith.constant 0 : i32
    %c0_i32_1 = arith.constant 0 : i32
    return %arg0, %c0_i32, %c0_i32_0 : i32, i32, i32
  }
  func.func @transform_11(%arg0: i32) -> (i32, i32, i32) {
    %c0_i32 = arith.constant 0 : i32
    %c0_i32_0 = arith.constant 0 : i32
    %c0_i32_1 = arith.constant 0 : i32
    return %arg0, %c0_i32, %c0_i32_0 : i32, i32, i32
  }
  func.func @transform_12(%arg0: i32) -> (i32, i32, i32) {
    %c0_i32 = arith.constant 0 : i32
    %c0_i32_0 = arith.constant 0 : i32
    %c0_i32_1 = arith.constant 0 : i32
    return %arg0, %c0_i32, %c0_i32_0 : i32, i32, i32
  }
  func.func @transform_13(%arg0: i32) -> (i32, i32, i32) {
    %c0_i32 = arith.constant 0 : i32
    %c0_i32_0 = arith.constant 0 : i32
    %c0_i32_1 = arith.constant 0 : i32
    return %arg0, %c0_i32, %c0_i32_0 : i32, i32, i32
  }
  func.func @transform_14(%arg0: i32) -> (i32, i32, i32) {
    %c0_i32 = arith.constant 0 : i32
    %c0_i32_0 = arith.constant 0 : i32
    %c0_i32_1 = arith.constant 0 : i32
    return %arg0, %c0_i32, %c0_i32_0 : i32, i32, i32
  }
  func.func @transform_15(%arg0: i32) -> (i32, i32) {
    %c0_i32 = arith.constant 0 : i32
    %c0_i32_0 = arith.constant 0 : i32
    %c0_i32_1 = arith.constant 0 : i32
    return %c0_i32, %c0_i32_0 : i32, i32
  }
  func.func @transform_16(%arg0: i32) -> (i32, i32) {
    %c0_i32 = arith.constant 0 : i32
    %c0_i32_0 = arith.constant 0 : i32
    %c0_i32_1 = arith.constant 0 : i32
    return %c0_i32, %c0_i32_0 : i32, i32
  }
  func.func @transform_17(%arg0: i32) -> (i32, i32) {
    %c0_i32 = arith.constant 0 : i32
    %c0_i32_0 = arith.constant 0 : i32
    %c0_i32_1 = arith.constant 0 : i32
    return %c0_i32, %c0_i32_0 : i32, i32
  }
}

</mosaic_0001>

<llo_original>
// kernel: tpu_custom_call.1
$region0: #{tpu_custom_call.1}
  #allocation0 [shape = 'u32[]', space=smem, size = 0x4, offset = 0x4, fixed_abs, tag = 'smem constant byte address 0x4 - core index']
  #allocation1 [shape = 'u32[144,128]{1,0:T(1,128)}', space=vmem, size = 0x12000, scoped, tag = 'internal scratch']
  #allocation2 [shape = 'f32[16,128]{1,0:T(8,128)}', space=vmem, size = 0x2000, scoped, tag = 'scratch operand']
  %s0 = inlined_call_operand.vmem [shape: s32[16,1], index: 0, kind: input, shape index: {}]
  %s1 = inlined_call_operand.vmem [shape: f32[16,16], index: 1, kind: input, shape index: {}]
  %s2 = inlined_call_operand.hbm [shape: f32[128,128], index: 2, kind: input, shape index: {}]
  %s3 = inlined_call_operand.hbm [shape: bf16[2,128,384], index: 3, kind: input, shape index: {}]
  %s4 = inlined_call_operand.vmem [shape: f32[2,1,384], index: 4, kind: input, shape index: {}]
  %s5 = inlined_call_operand.hbm [shape: bf16[2,128,128], index: 5, kind: input, shape index: {}]
  %s6 = inlined_call_operand.vmem [shape: f32[2,1,128], index: 6, kind: input, shape index: {}]
  %s7 = inlined_call_operand.hbm [shape: bf16[2,128,1024], index: 7, kind: input, shape index: {}]
  %s8 = inlined_call_operand.hbm [shape: f32[2,1,1024], index: 8, kind: input, shape index: {}]
  %s9 = inlined_call_operand.hbm [shape: bf16[2,1024,128], index: 9, kind: input, shape index: {}]
  %s10 = inlined_call_operand.vmem [shape: f32[2,1,128], index: 10, kind: input, shape index: {}]
  %s11 = inlined_call_operand.vmem [shape: f32[2,1,128], index: 11, kind: input, shape index: {}]
  %s12 = inlined_call_operand.vmem [shape: f32[2,1,128], index: 12, kind: input, shape index: {}]
  %s13 = inlined_call_operand.vmem [shape: f32[2,1,128], index: 13, kind: input, shape index: {}]
  %s14 = inlined_call_operand.vmem [shape: f32[2,1,128], index: 14, kind: input, shape index: {}]
  %s15 = inlined_call_operand.hbm [shape: bf16[128,128], index: 15, kind: input, shape index: {}]
  %s16 = inlined_call_operand.vmem [shape: f32[1,128], index: 16, kind: input, shape index: {}]
  %s17 = inlined_call_operand.hbm [shape: f32[16,128], index: 17, kind: output, shape index: {}]
  %s18 = sld [smem:[#allocation0]]
  $region137: #{tpu_custom_call.1} parent=0
    _
  %s20 = ssub.s32 1, %s18
  %s21 = scalar_select 0, %s20, %s18
  $region1: #{tpu_custom_call.1} parent=0
    #allocation3 [shape = 'u8[65536]{0}', space=vmem, size = 0x10000, scoped, tag = 'input window, operand 2, single buffered']
    #allocation4 [shape = 's32[2]{0}', space=sflag, size = 0x8, scoped, tag = 'scoped memory for tpu_custom_call.1']
    #allocation5 [shape = 's32[2]{0}', space=sflag, size = 0x8, scoped, tag = 'scoped memory for tpu_custom_call.1']
    #allocation6 [shape = 'u8[196608]{0}', space=vmem, size = 0x30000, scoped, tag = 'input window, operand 3']
    #allocation7 [shape = 's32[2]{0}', space=sflag, size = 0x8, scoped, tag = 'scoped memory for tpu_custom_call.1']
    #allocation8 [shape = 'u8[65536]{0}', space=vmem, size = 0x10000, scoped, tag = 'input window, operand 5']
    #allocation9 [shape = 'u8[524288]{0}', space=vmem, size = 0x80000, scoped, tag = 'input window, operand 7']
    #allocation10 [shape = 's32[2]{0}', space=sflag, size = 0x8, scoped, tag = 'scoped memory for tpu_custom_call.1']
    #allocation11 [shape = 'u8[8192]{0}', space=vmem, size = 0x2000, scoped, tag = 'input window, operand 8']
    #allocation12 [shape = 'u8[524288]{0}', space=vmem, size = 0x80000, scoped, tag = 'input window, operand 9']
    #allocation13 [shape = 's32[2]{0}', space=sflag, size = 0x8, scoped, tag = 'scoped memory for tpu_custom_call.1']
    #allocation14 [shape = 'u8[32768]{0}', space=vmem, size = 0x8000, scoped, tag = 'input window, operand 15, single buffered']
    #allocation15 [shape = 'u8[8192]{0}', space=vmem, size = 0x2000, scoped, tag = 'output window, operand 0, single buffered']
    %22 = vsyncpa [#allocation4], 0
    %23 = vsyncpa [#allocation7], 0
    %s24 = scalar_lea.sflag [#allocation7], 1
    %25 = vsyncpa %s24, 0
    %26 = vsyncpa [#allocation10], 0
    %s27 = scalar_lea.sflag [#allocation10], 1
    %28 = vsyncpa %s27, 0
    %29 = vsyncpa [#allocation13], 0
    %s30 = scalar_lea.sflag [#allocation13], 1
    %31 = vsyncpa %s30, 0
    %32 = vsyncpa [#allocation5], 0
    loop: start=0, step=1, limit=4
    $region2: #{tpu_custom_call.1} parent=1 // loop_pre_header
      _
    $region3: #{tpu_custom_call.1} parent=1 // loop_header
      %s34 = sphi 0, %s38
      %p35 = scmp.ge.s32.totalorder %s34, 4
      %s42 = sphi 0, %s42
      %s44 = sphi 0, %s42
      %s45 = sphi 0, %s44
      %s59 = sphi 0, %s45
      %s63 = sphi 0, %s63
      %s65 = sphi 0, %s63
      %s66 = sphi 0, %s65
      %s80 = sphi 0, %s66
      %s84 = sphi 0, %s84
      %s86 = sphi 0, %s84
      %s87 = sphi 0, %s86
      %s101 = sphi 0, %s87
      %s107 = sphi 0, %s109
      %s110 = sphi 0, %s107
      %s111 = sphi 0, %s110
      %s127 = sphi 0, %s111
      %s133 = sphi 0, %s135
      %s136 = sphi 0, %s133
      %s137 = sphi 0, %s136
      %s153 = sphi 0, %s137
      %s159 = sphi 0, %s161
      %s162 = sphi 0, %s159
      %s163 = sphi 0, %s162
      %s179 = sphi 0, %s163
      %s185 = sphi 0, %s187
      %s188 = sphi 0, %s185
      %s189 = sphi 0, %s188
      %s205 = sphi 0, %s189
      %s211 = sphi 0, %s213
      %s214 = sphi 0, %s211
      %s215 = sphi 0, %s214
      %s231 = sphi 0, %s215
      %s237 = sphi 0, %s239
      %s240 = sphi 0, %s237
      %s241 = sphi 0, %s240
      %s257 = sphi 0, %s241
      %s263 = sphi 0, %s265
      %s266 = sphi 0, %s263
      %s267 = sphi 0, %s266
      %s283 = sphi 0, %s267
      %s289 = sphi 0, %s291
      %s292 = sphi 0, %s289
      %s293 = sphi 0, %s292
      %s309 = sphi 0, %s293
      %s315 = sphi 0, %s317
      %s318 = sphi 0, %s315
      %s319 = sphi 0, %s318
      %s335 = sphi 0, %s319
      %s341 = sphi 0, %s343
      %s344 = sphi 0, %s341
      %s345 = sphi 0, %s344
      %s361 = sphi 0, %s345
      %s367 = sphi 0, %s369
      %s370 = sphi 0, %s367
      %s371 = sphi 0, %s370
      %s387 = sphi 0, %s371
      %s393 = sphi 0, %s395
      %s396 = sphi 0, %s393
      %s397 = sphi 0, %s396
      %s413 = sphi 0, %s397
      %s417 = sphi 0, %s417
      %s419 = sphi 0, %s417
      %s420 = sphi 0, %s419
      %s434 = sphi 0, %s420
      %s438 = sphi 0, %s438
      %s440 = sphi 0, %s438
      %s441 = sphi 0, %s440
      %s455 = sphi 0, %s441
      %s459 = sphi 0, %s459
      %s461 = sphi 0, %s459
      %s462 = sphi 0, %s461
      %s476 = sphi 0, %s462
    $region4: #{tpu_custom_call.1} parent=1 // loop_header_branch
      %37 = sbr.rel (%p35) target = $region8
    $region5: #{tpu_custom_call.1} parent=1 // loop_body
      %s39 = ssub.s32 %s34, 1
      %s40 = ssub.s32 %s34, 2
      %s41 = sadd.s32 %s34, 1
      %s43 = sadd.s32 %s42, 1
      %p46 = scmp.eq.s32.totalorder %s34, 1
      %p47 = scmp.ne.s32.totalorder %s42, %s44
      %p48 = scmp.eq.s32.totalorder %s34, 0
      %p49 = por %p47, %p48
      %p50 = scmp.ne.s32.totalorder %s42, %s44
      %p51 = scmp.eq.s32.totalorder %s39, 1
      %p52 = por %p50, %p51
      %p53 = scmp.ne.s32.totalorder %s44, %s45
      %p54 = scmp.eq.s32.totalorder %s39, 0
      %p55 = por %p53, %p54
      %p56 = scmp.ne.s32.totalorder %s44, %s45
      %p57 = scmp.eq.s32.totalorder %s40, 1
      %p58 = por %p56, %p57
      %p60 = scmp.ne.s32.totalorder %s45, %s59
      %p61 = scmp.eq.s32.totalorder %s40, 0
      %p62 = por %p60, %p61
      %s64 = sadd.s32 %s63, 1
      %p67 = scmp.eq.s32.totalorder %s34, 1
      %p68 = scmp.ne.s32.totalorder %s63, %s65
      %p69 = scmp.eq.s32.totalorder %s34, 0
      %p70 = por %p68, %p69
      %p71 = scmp.ne.s32.totalorder %s63, %s65
      %p72 = scmp.eq.s32.totalorder %s39, 1
      %p73 = por %p71, %p72
      %p74 = scmp.ne.s32.totalorder %s65, %s66
      %p75 = scmp.eq.s32.totalorder %s39, 0
      %p76 = por %p74, %p75
      %p77 = scmp.ne.s32.totalorder %s65, %s66
      %p78 = scmp.eq.s32.totalorder %s40, 1
      %p79 = por %p77, %p78
      %p81 = scmp.ne.s32.totalorder %s66, %s80
      %p82 = scmp.eq.s32.totalorder %s40, 0
      %p83 = por %p81, %p82
      %s85 = sadd.s32 %s84, 1
      %p88 = scmp.eq.s32.totalorder %s34, 1
      %p89 = scmp.ne.s32.totalorder %s84, %s86
      %p90 = scmp.eq.s32.totalorder %s34, 0
      %p91 = por %p89, %p90
      %p92 = scmp.ne.s32.totalorder %s84, %s86
      %p93 = scmp.eq.s32.totalorder %s39, 1
      %p94 = por %p92, %p93
      %p95 = scmp.ne.s32.totalorder %s86, %s87
      %p96 = scmp.eq.s32.totalorder %s39, 0
      %p97 = por %p95, %p96
      %p98 = scmp.ne.s32.totalorder %s86, %s87
      %p99 = scmp.eq.s32.totalorder %s40, 1
      %p100 = por %p98, %p99
      %p102 = scmp.ne.s32.totalorder %s87, %s101
      %p103 = scmp.eq.s32.totalorder %s40, 0
      %p104 = por %p102, %p103
      %s105 = ssub.s32 %s34, %s41
      %p106 = scmp.eq.s32.totalorder %s105, 0
      %s108 = sadd.s32 %s107, 1
      %s109 = scalar_select %p106, %s107, %s108
      %p112 = pneg %p106
      %p113 = scmp.eq.s32.totalorder %s34, 1
      %p114 = por %p112, %p113
      %p115 = scmp.ne.s32.totalorder %s107, %s110
      %p116 = scmp.eq.s32.totalorder %s34, 0
      %p117 = por %p115, %p116
      %p118 = scmp.ne.s32.totalorder %s107, %s110
      %p119 = scmp.eq.s32.totalorder %s39, 1
      %p120 = por %p118, %p119
      %p121 = scmp.ne.s32.totalorder %s110, %s111
      %p122 = scmp.eq.s32.totalorder %s39, 0
      %p123 = por %p121, %p122
      %p124 = scmp.ne.s32.totalorder %s110, %s111
      %p125 = scmp.eq.s32.totalorder %s40, 1
      %p126 = por %p124, %p125
      %p128 = scmp.ne.s32.totalorder %s111, %s127
      %p129 = scmp.eq.s32.totalorder %s40, 0
      %p130 = por %p128, %p129
      %s131 = ssub.s32 %s34, %s41
      %p132 = scmp.eq.s32.totalorder %s131, 0
      %s134 = sadd.s32 %s133, 1
      %s135 = scalar_select %p132, %s133, %s134
      %p138 = pneg %p132
      %p139 = scmp.eq.s32.totalorder %s34, 1
      %p140 = por %p138, %p139
      %p141 = scmp.ne.s32.totalorder %s133, %s136
      %p142 = scmp.eq.s32.totalorder %s34, 0
      %p143 = por %p141, %p142
      %p144 = scmp.ne.s32.totalorder %s133, %s136
      %p145 = scmp.eq.s32.totalorder %s39, 1
      %p146 = por %p144, %p145
      %p147 = scmp.ne.s32.totalorder %s136, %s137
      %p148 = scmp.eq.s32.totalorder %s39, 0
      %p149 = por %p147, %p148
      %p150 = scmp.ne.s32.totalorder %s136, %s137
      %p151 = scmp.eq.s32.totalorder %s40, 1
      %p152 = por %p150, %p151
      %p154 = scmp.ne.s32.totalorder %s137, %s153
      %p155 = scmp.eq.s32.totalorder %s40, 0
      %p156 = por %p154, %p155
      %s157 = ssub.s32 %s34, %s41
      %p158 = scmp.eq.s32.totalorder %s157, 0
      %s160 = sadd.s32 %s159, 1
      %s161 = scalar_select %p158, %s159, %s160
      %p164 = pneg %p158
      %p165 = scmp.eq.s32.totalorder %s34, 1
      %p166 = por %p164, %p165
      %p167 = scmp.ne.s32.totalorder %s159, %s162
      %p168 = scmp.eq.s32.totalorder %s34, 0
      %p169 = por %p167, %p168
      %p170 = scmp.ne.s32.totalorder %s159, %s162
      %p171 = scmp.eq.s32.totalorder %s39, 1
      %p172 = por %p170, %p171
      %p173 = scmp.ne.s32.totalorder %s162, %s163
      %p174 = scmp.eq.s32.totalorder %s39, 0
      %p175 = por %p173, %p174
      %p176 = scmp.ne.s32.totalorder %s162, %s163
      %p177 = scmp.eq.s32.totalorder %s40, 1
      %p178 = por %p176, %p177
      %p180 = scmp.ne.s32.totalorder %s163, %s179
      %p181 = scmp.eq.s32.totalorder %s40, 0
      %p182 = por %p180, %p181
      %s183 = ssub.s32 %s34, %s41
      %p184 = scmp.eq.s32.totalorder %s183, 0
      %s186 = sadd.s32 %s185, 1
      %s187 = scalar_select %p184, %s185, %s186
      %p190 = pneg %p184
      %p191 = scmp.eq.s32.totalorder %s34, 1
      %p192 = por %p190, %p191
      %p193 = scmp.ne.s32.totalorder %s185, %s188
      %p194 = scmp.eq.s32.totalorder %s34, 0
      %p195 = por %p193, %p194
      %p196 = scmp.ne.s32.totalorder %s185, %s188
      %p197 = scmp.eq.s32.totalorder %s39, 1
      %p198 = por %p196, %p197
      %p199 = scmp.ne.s32.totalorder %s188, %s189
      %p200 = scmp.eq.s32.totalorder %s39, 0
      %p201 = por %p199, %p200
      %p202 = scmp.ne.s32.totalorder %s188, %s189
      %p203 = scmp.eq.s32.totalorder %s40, 1
      %p204 = por %p202, %p203
      %p206 = scmp.ne.s32.totalorder %s189, %s205
      %p207 = scmp.eq.s32.totalorder %s40, 0
      %p208 = por %p206, %p207
      %s209 = ssub.s32 %s34, %s41
      %p210 = scmp.eq.s32.totalorder %s209, 0
      %s212 = sadd.s32 %s211, 1
      %s213 = scalar_select %p210, %s211, %s212
      %p216 = pneg %p210
      %p217 = scmp.eq.s32.totalorder %s34, 1
      %p218 = por %p216, %p217
      %p219 = scmp.ne.s32.totalorder %s211, %s214
      %p220 = scmp.eq.s32.totalorder %s34, 0
      %p221 = por %p219, %p220
      %p222 = scmp.ne.s32.totalorder %s211, %s214
      %p223 = scmp.eq.s32.totalorder %s39, 1
      %p224 = por %p222, %p223
      %p225 = scmp.ne.s32.totalorder %s214, %s215
      %p226 = scmp.eq.s32.totalorder %s39, 0
      %p227 = por %p225, %p226
      %p228 = scmp.ne.s32.totalorder %s214, %s215
      %p229 = scmp.eq.s32.totalorder %s40, 1
      %p230 = por %p228, %p229
      %p232 = scmp.ne.s32.totalorder %s215, %s231
      %p233 = scmp.eq.s32.totalorder %s40, 0
      %p234 = por %p232, %p233
      %s235 = ssub.s32 %s34, %s41
      %p236 = scmp.eq.s32.totalorder %s235, 0
      %s238 = sadd.s32 %s237, 1
      %s239 = scalar_select %p236, %s237, %s238
      %p242 = pneg %p236
      %p243 = scmp.eq.s32.totalorder %s34, 1
      %p244 = por %p242, %p243
      %p245 = scmp.ne.s32.totalorder %s237, %s240
      %p246 = scmp.eq.s32.totalorder %s34, 0
      %p247 = por %p245, %p246
      %p248 = scmp.ne.s32.totalorder %s237, %s240
      %p249 = scmp.eq.s32.totalorder %s39, 1
      %p250 = por %p248, %p249
      %p251 = scmp.ne.s32.totalorder %s240, %s241
      %p252 = scmp.eq.s32.totalorder %s39, 0
      %p253 = por %p251, %p252
      %p254 = scmp.ne.s32.totalorder %s240, %s241
      %p255 = scmp.eq.s32.totalorder %s40, 1
      %p256 = por %p254, %p255
      %p258 = scmp.ne.s32.totalorder %s241, %s257
      %p259 = scmp.eq.s32.totalorder %s40, 0
      %p260 = por %p258, %p259
      %s261 = ssub.s32 %s34, %s41
      %p262 = scmp.eq.s32.totalorder %s261, 0
      %s264 = sadd.s32 %s263, 1
      %s265 = scalar_select %p262, %s263, %s264
      %p268 = pneg %p262
      %p269 = scmp.eq.s32.totalorder %s34, 1
      %p270 = por %p268, %p269
      %p271 = scmp.ne.s32.totalorder %s263, %s266
      %p272 = scmp.eq.s32.totalorder %s34, 0
      %p273 = por %p271, %p272
      %p274 = scmp.ne.s32.totalorder %s263, %s266
      %p275 = scmp.eq.s32.totalorder %s39, 1
      %p276 = por %p274, %p275
      %p277 = scmp.ne.s32.totalorder %s266, %s267
      %p278 = scmp.eq.s32.totalorder %s39, 0
      %p279 = por %p277, %p278
      %p280 = scmp.ne.s32.totalorder %s266, %s267
      %p281 = scmp.eq.s32.totalorder %s40, 1
      %p282 = por %p280, %p281
      %p284 = scmp.ne.s32.totalorder %s267, %s283
      %p285 = scmp.eq.s32.totalorder %s40, 0
      %p286 = por %p284, %p285
      %s287 = ssub.s32 %s34, %s41
      %p288 = scmp.eq.s32.totalorder %s287, 0
      %s290 = sadd.s32 %s289, 1
      %s291 = scalar_select %p288, %s289, %s290
      %p294 = pneg %p288
      %p295 = scmp.eq.s32.totalorder %s34, 1
      %p296 = por %p294, %p295
      %p297 = scmp.ne.s32.totalorder %s289, %s292
      %p298 = scmp.eq.s32.totalorder %s34, 0
      %p299 = por %p297, %p298
      %p300 = scmp.ne.s32.totalorder %s289, %s292
      %p301 = scmp.eq.s32.totalorder %s39, 1
      %p302 = por %p300, %p301
      %p303 = scmp.ne.s32.totalorder %s292, %s293
      %p304 = scmp.eq.s32.totalorder %s39, 0
      %p305 = por %p303, %p304
      %p306 = scmp.ne.s32.totalorder %s292, %s293
      %p307 = scmp.eq.s32.totalorder %s40, 1
      %p308 = por %p306, %p307
      %p310 = scmp.ne.s32.totalorder %s293, %s309
      %p311 = scmp.eq.s32.totalorder %s40, 0
      %p312 = por %p310, %p311
      %s313 = ssub.s32 %s34, %s41
      %p314 = scmp.eq.s32.totalorder %s313, 0
      %s316 = sadd.s32 %s315, 1
      %s317 = scalar_select %p314, %s315, %s316
      %p320 = pneg %p314
      %p321 = scmp.eq.s32.totalorder %s34, 1
      %p322 = por %p320, %p321
      %p323 = scmp.ne.s32.totalorder %s315, %s318
      %p324 = scmp.eq.s32.totalorder %s34, 0
      %p325 = por %p323, %p324
      %p326 = scmp.ne.s32.totalorder %s315, %s318
      %p327 = scmp.eq.s32.totalorder %s39, 1
      %p328 = por %p326, %p327
      %p329 = scmp.ne.s32.totalorder %s318, %s319
      %p330 = scmp.eq.s32.totalorder %s39, 0
      %p331 = por %p329, %p330
      %p332 = scmp.ne.s32.totalorder %s318, %s319
      %p333 = scmp.eq.s32.totalorder %s40, 1
      %p334 = por %p332, %p333
      %p336 = scmp.ne.s32.totalorder %s319, %s335
      %p337 = scmp.eq.s32.totalorder %s40, 0
      %p338 = por %p336, %p337
      %s339 = ssub.s32 %s34, %s41
      %p340 = scmp.eq.s32.totalorder %s339, 0
      %s342 = sadd.s32 %s341, 1
      %s343 = scalar_select %p340, %s341, %s342
      %p346 = pneg %p340
      %p347 = scmp.eq.s32.totalorder %s34, 1
      %p348 = por %p346, %p347
      %p349 = scmp.ne.s32.totalorder %s341, %s344
      %p350 = scmp.eq.s32.totalorder %s34, 0
      %p351 = por %p349, %p350
      %p352 = scmp.ne.s32.totalorder %s341, %s344
      %p353 = scmp.eq.s32.totalorder %s39, 1
      %p354 = por %p352, %p353
      %p355 = scmp.ne.s32.totalorder %s344, %s345
      %p356 = scmp.eq.s32.totalorder %s39, 0
      %p357 = por %p355, %p356
      %p358 = scmp.ne.s32.totalorder %s344, %s345
      %p359 = scmp.eq.s32.totalorder %s40, 1
      %p360 = por %p358, %p359
      %p362 = scmp.ne.s32.totalorder %s345, %s361
      %p363 = scmp.eq.s32.totalorder %s40, 0
      %p364 = por %p362, %p363
      %s365 = ssub.s32 %s34, %s41
      %p366 = scmp.eq.s32.totalorder %s365, 0
      %s368 = sadd.s32 %s367, 1
      %s369 = scalar_select %p366, %s367, %s368
      %p372 = pneg %p366
      %p373 = scmp.eq.s32.totalorder %s34, 1
      %p374 = por %p372, %p373
      %p375 = scmp.ne.s32.totalorder %s367, %s370
      %p376 = scmp.eq.s32.totalorder %s34, 0
      %p377 = por %p375, %p376
      %p378 = scmp.ne.s32.totalorder %s367, %s370
      %p379 = scmp.eq.s32.totalorder %s39, 1
      %p380 = por %p378, %p379
      %p381 = scmp.ne.s32.totalorder %s370, %s371
      %p382 = scmp.eq.s32.totalorder %s39, 0
      %p383 = por %p381, %p382
      %p384 = scmp.ne.s32.totalorder %s370, %s371
      %p385 = scmp.eq.s32.totalorder %s40, 1
      %p386 = por %p384, %p385
      %p388 = scmp.ne.s32.totalorder %s371, %s387
      %p389 = scmp.eq.s32.totalorder %s40, 0
      %p390 = por %p388, %p389
      %s391 = ssub.s32 %s34, %s41
      %p392 = scmp.eq.s32.totalorder %s391, 0
      %s394 = sadd.s32 %s393, 1
      %s395 = scalar_select %p392, %s393, %s394
      %p398 = pneg %p392
      %p399 = scmp.eq.s32.totalorder %s34, 1
      %p400 = por %p398, %p399
      %p401 = scmp.ne.s32.totalorder %s393, %s396
      %p402 = scmp.eq.s32.totalorder %s34, 0
      %p403 = por %p401, %p402
      %p404 = scmp.ne.s32.totalorder %s393, %s396
      %p405 = scmp.eq.s32.totalorder %s39, 1
      %p406 = por %p404, %p405
      %p407 = scmp.ne.s32.totalorder %s396, %s397
      %p408 = scmp.eq.s32.totalorder %s39, 0
      %p409 = por %p407, %p408
      %p410 = scmp.ne.s32.totalorder %s396, %s397
      %p411 = scmp.eq.s32.totalorder %s40, 1
      %p412 = por %p410, %p411
      %p414 = scmp.ne.s32.totalorder %s397, %s413
      %p415 = scmp.eq.s32.totalorder %s40, 0
      %p416 = por %p414, %p415
      %s418 = sadd.s32 %s417, 1
      %p421 = scmp.eq.s32.totalorder %s34, 1
      %p422 = scmp.ne.s32.totalorder %s417, %s419
      %p423 = scmp.eq.s32.totalorder %s34, 0
      %p424 = por %p422, %p423
      %p425 = scmp.ne.s32.totalorder %s417, %s419
      %p426 = scmp.eq.s32.totalorder %s39, 1
      %p427 = por %p425, %p426
      %p428 = scmp.ne.s32.totalorder %s419, %s420
      %p429 = scmp.eq.s32.totalorder %s39, 0
      %p430 = por %p428, %p429
      %p431 = scmp.ne.s32.totalorder %s419, %s420
      %p432 = scmp.eq.s32.totalorder %s40, 1
      %p433 = por %p431, %p432
      %p435 = scmp.ne.s32.totalorder %s420, %s434
      %p436 = scmp.eq.s32.totalorder %s40, 0
      %p437 = por %p435, %p436
      %s439 = sadd.s32 %s438, 1
      %p442 = scmp.eq.s32.totalorder %s34, 1
      %p443 = scmp.ne.s32.totalorder %s438, %s440
      %p444 = scmp.eq.s32.totalorder %s34, 0
      %p445 = por %p443, %p444
      %p446 = scmp.ne.s32.totalorder %s438, %s440
      %p447 = scmp.eq.s32.totalorder %s39, 1
      %p448 = por %p446, %p447
      %p449 = scmp.ne.s32.totalorder %s440, %s441
      %p450 = scmp.eq.s32.totalorder %s39, 0
      %p451 = por %p449, %p450
      %p452 = scmp.ne.s32.totalorder %s440, %s441
      %p453 = scmp.eq.s32.totalorder %s40, 1
      %p454 = por %p452, %p453
      %p456 = scmp.ne.s32.totalorder %s441, %s455
      %p457 = scmp.eq.s32.totalorder %s40, 0
      %p458 = por %p456, %p457
      %s460 = sadd.s32 %s459, 1
      %p463 = scmp.eq.s32.totalorder %s34, 1
      %p464 = scmp.ne.s32.totalorder %s459, %s461
      %p465 = scmp.eq.s32.totalorder %s34, 0
      %p466 = por %p464, %p465
      %p467 = scmp.ne.s32.totalorder %s459, %s461
      %p468 = scmp.eq.s32.totalorder %s39, 1
      %p469 = por %p467, %p468
      %p470 = scmp.ne.s32.totalorder %s461, %s462
      %p471 = scmp.eq.s32.totalorder %s39, 0
      %p472 = por %p470, %p471
      %p473 = scmp.ne.s32.totalorder %s461, %s462
      %p474 = scmp.eq.s32.totalorder %s40, 1
      %p475 = por %p473, %p474
      %p477 = scmp.ne.s32.totalorder %s462, %s476
      %p478 = scmp.eq.s32.totalorder %s40, 0
      %p479 = por %p477, %p478
      %p480 = scmp.le.s32.totalorder 1, %s34
      %p481 = scmp.lt.s32.totalorder %s34, 3
      %p482 = pnand %p480, %p481
      %p483 = pneg %p482
      // Predicated region
      $region9: #{tpu_custom_call.1} parent=5 // pred_check
        _
      $region10: #{tpu_custom_call.1} parent=5 // pred_check_branch
        %485 = sbr.rel (%p482) target = $region12
      $region11: #{tpu_custom_call.1} parent=5 // pred_region
        %s486 = ssub.s32 %s34, 1
        // Predicated region
        $region13: #{tpu_custom_call.1} parent=11 // pred_check
          %p487 = pneg %p55
        $region14: #{tpu_custom_call.1} parent=11 // pred_check_branch
          %489 = sbr.rel (%p487) target = $region16
        $region15: #{tpu_custom_call.1} parent=11 // pred_region
          _
        $region16: #{tpu_custom_call.1} parent=11 // pred_fallthru
          _
        // Predicated region
        $region17: #{tpu_custom_call.1} parent=11 // pred_check
          %p490 = pneg %p76
        $region18: #{tpu_custom_call.1} parent=11 // pred_check_branch
          %492 = sbr.rel (%p490) target = $region20
        $region19: #{tpu_custom_call.1} parent=11 // pred_region
          _
        $region20: #{tpu_custom_call.1} parent=11 // pred_fallthru
          _
        // Predicated region
        $region21: #{tpu_custom_call.1} parent=11 // pred_check
          %p493 = pneg %p97
        $region22: #{tpu_custom_call.1} parent=11 // pred_check_branch
          %495 = sbr.rel (%p493) target = $region24
        $region23: #{tpu_custom_call.1} parent=11 // pred_region
          %s497 = ssub.s32 2048, 2048
          %498 = vsyncadd [#allocation4], %s497
          %s499 = sshll.u32 [#allocation3], 4
          %s500 = int_to_ptr.vmem [resolvable:$true] %s499
          %505 = dma.hbm_to_vmem [thread:$0]  %s2, 2048, %s500, [#allocation4], 128, 128, 8
        $region24: #{tpu_custom_call.1} parent=11 // pred_fallthru
          _
        // Predicated region
        $region25: #{tpu_custom_call.1} parent=11 // pred_check
          %p506 = pneg %p430
        $region26: #{tpu_custom_call.1} parent=11 // pred_check_branch
          %508 = sbr.rel (%p506) target = $region28
        $region27: #{tpu_custom_call.1} parent=11 // pred_region
          %s510 = ssub.s32 1024, 1024
          %511 = vsyncadd [#allocation13], %s510
          %s512 = sshll.u32 [#allocation14], 4
          %s513 = int_to_ptr.vmem [resolvable:$true] %s512
          %518 = dma.hbm_to_vmem [thread:$0]  %s15, 1024, %s513, [#allocation13], 64, 64, 4
        $region28: #{tpu_custom_call.1} parent=11 // pred_fallthru
          _
        // Predicated region
        $region29: #{tpu_custom_call.1} parent=11 // pred_check
          %p519 = pneg %p451
        $region30: #{tpu_custom_call.1} parent=11 // pred_check_branch
          %521 = sbr.rel (%p519) target = $region32
        $region31: #{tpu_custom_call.1} parent=11 // pred_region
          _
        $region32: #{tpu_custom_call.1} parent=11 // pred_fallthru
          _
      $region12: #{tpu_custom_call.1} parent=5 // pred_fallthru
        _
      %p522 = scmp.lt.s32.totalorder %s34, 2
      // Predicated region
      $region33: #{tpu_custom_call.1} parent=5 // pred_check
        %p523 = pneg %p522
      $region34: #{tpu_custom_call.1} parent=5 // pred_check_branch
        %525 = sbr.rel (%p523) target = $region36
      $region35: #{tpu_custom_call.1} parent=5 // pred_region
        // Predicated region
        $region37: #{tpu_custom_call.1} parent=35 // pred_check
          %p526 = pneg %p117
        $region38: #{tpu_custom_call.1} parent=35 // pred_check_branch
          %528 = sbr.rel (%p526) target = $region40
        $region39: #{tpu_custom_call.1} parent=35 // pred_region
          %s529 = sand.u32 %s34, 1
          %s530 = scalar_lea.sflag [#allocation7], %s529
          %s531 = sand.u32 %s107, 1
          %s532 = smul.addr %s531, 192
          %s533 = scalar_lea.vmem [#allocation6], %s532
          %s535 = ssub.s32 3072, 3072
          %536 = vsyncadd %s530, %s535
          %s537 = smul.addr %s34, 48
          %s538 = smul.addr %s537, 64
          %s539 = scalar_lea.hbm %s3, %s538
          %s540 = sshll.u32 %s533, 4
          %s541 = int_to_ptr.vmem [resolvable:$true] %s540
          %546 = dma.hbm_to_vmem [thread:$0]  %s539, 3072, %s541, %s530, 192, 192, 12
        $region40: #{tpu_custom_call.1} parent=35 // pred_fallthru
          _
        // Predicated region
        $region41: #{tpu_custom_call.1} parent=35 // pred_check
          %p547 = pneg %p143
        $region42: #{tpu_custom_call.1} parent=35 // pred_check_branch
          %549 = sbr.rel (%p547) target = $region44
        $region43: #{tpu_custom_call.1} parent=35 // pred_region
          %p550 = scmp.lt.s32.totalorder %s34, 1
          %s551 = scalar_select %p550, %s34, 1
          %s552 = smul.addr %s551, 3
          %s553 = scalar_lea.vmem %s4, %s552
        $region44: #{tpu_custom_call.1} parent=35 // pred_fallthru
          _
        // Predicated region
        $region45: #{tpu_custom_call.1} parent=35 // pred_check
          %p554 = pneg %p169
        $region46: #{tpu_custom_call.1} parent=35 // pred_check_branch
          %556 = sbr.rel (%p554) target = $region48
        $region47: #{tpu_custom_call.1} parent=35 // pred_region
          %s557 = sand.u32 %s34, 1
          %s558 = scalar_lea.sflag [#allocation7], %s557
          %s559 = sand.u32 %s159, 1
          %s560 = smul.addr %s559, 64
          %s561 = scalar_lea.vmem [#allocation8], %s560
          %s563 = ssub.s32 1024, 1024
          %564 = vsyncadd %s558, %s563
          %s565 = smul.addr %s34, 16
          %s566 = smul.addr %s565, 64
          %s567 = scalar_lea.hbm %s5, %s566
          %s568 = sshll.u32 %s561, 4
          %s569 = int_to_ptr.vmem [resolvable:$true] %s568
          %574 = dma.hbm_to_vmem [thread:$0]  %s567, 1024, %s569, %s558, 64, 64, 4
        $region48: #{tpu_custom_call.1} parent=35 // pred_fallthru
          _
        // Predicated region
        $region49: #{tpu_custom_call.1} parent=35 // pred_check
          %p575 = pneg %p195
        $region50: #{tpu_custom_call.1} parent=35 // pred_check_branch
          %577 = sbr.rel (%p575) target = $region52
        $region51: #{tpu_custom_call.1} parent=35 // pred_region
          %p578 = scmp.lt.s32.totalorder %s34, 1
          %s579 = scalar_select %p578, %s34, 1
          %s580 = scalar_lea.vmem %s6, %s579
        $region52: #{tpu_custom_call.1} parent=35 // pred_fallthru
          _
        // Predicated region
        $region53: #{tpu_custom_call.1} parent=35 // pred_check
          %p581 = pneg %p221
        $region54: #{tpu_custom_call.1} parent=35 // pred_check_branch
          %583 = sbr.rel (%p581) target = $region56
        $region55: #{tpu_custom_call.1} parent=35 // pred_region
          %s584 = sand.u32 %s34, 1
          %s585 = scalar_lea.sflag [#allocation10], %s584
          %s586 = sand.u32 %s211, 1
          %s587 = smul.addr %s586, 512
          %s588 = scalar_lea.vmem [#allocation9], %s587
          %s590 = ssub.s32 8192, 8192
          %591 = vsyncadd %s585, %s590
          %s592 = smul.addr %s34, 128
          %s593 = smul.addr %s592, 64
          %s594 = scalar_lea.hbm %s7, %s593
          %s595 = sshll.u32 %s588, 4
          %s596 = int_to_ptr.vmem [resolvable:$true] %s595
          %601 = dma.hbm_to_vmem [thread:$0]  %s594, 8192, %s596, %s585, 512, 512, 32
        $region56: #{tpu_custom_call.1} parent=35 // pred_fallthru
          _
        // Predicated region
        $region57: #{tpu_custom_call.1} parent=35 // pred_check
          %p602 = pneg %p247
        $region58: #{tpu_custom_call.1} parent=35 // pred_check_branch
          %604 = sbr.rel (%p602) target = $region60
        $region59: #{tpu_custom_call.1} parent=35 // pred_region
          %s605 = sand.u32 %s34, 1
          %s606 = scalar_lea.sflag [#allocation10], %s605
          %s607 = sand.u32 %s237, 1
          %s608 = smul.addr %s607, 8
          %s609 = scalar_lea.vmem [#allocation11], %s608
          %s611 = ssub.s32 128, 128
          %612 = vsyncadd %s606, %s611
          %s613 = smul.addr %s34, 8
          %s614 = smul.addr %s613, 16
          %s615 = scalar_lea.hbm %s8, %s614
          %s617 = sshll.u32 %s609, 4
          %s618 = int_to_ptr.vmem [resolvable:$true] %s617
          %620 = dma.hbm_to_vmem [thread:$0]  %s615, 128, %s618, %s606
        $region60: #{tpu_custom_call.1} parent=35 // pred_fallthru
          _
        // Predicated region
        $region61: #{tpu_custom_call.1} parent=35 // pred_check
          %p621 = pneg %p273
        $region62: #{tpu_custom_call.1} parent=35 // pred_check_branch
          %623 = sbr.rel (%p621) target = $region64
        $region63: #{tpu_custom_call.1} parent=35 // pred_region
          %s624 = sand.u32 %s34, 1
          %s625 = scalar_lea.sflag [#allocation13], %s624
          %s626 = sand.u32 %s263, 1
          %s627 = smul.addr %s626, 512
          %s628 = scalar_lea.vmem [#allocation12], %s627
          %s630 = ssub.s32 8192, 8192
          %631 = vsyncadd %s625, %s630
          %s632 = smul.addr %s34, 128
          %s633 = smul.addr %s632, 64
          %s634 = scalar_lea.hbm %s9, %s633
          %s635 = sshll.u32 %s628, 4
          %s636 = int_to_ptr.vmem [resolvable:$true] %s635
          %641 = dma.hbm_to_vmem [thread:$0]  %s634, 8192, %s636, %s625, 64, 64, 4
        $region64: #{tpu_custom_call.1} parent=35 // pred_fallthru
          _
        // Predicated region
        $region65: #{tpu_custom_call.1} parent=35 // pred_check
          %p642 = pneg %p299
        $region66: #{tpu_custom_call.1} parent=35 // pred_check_branch
          %644 = sbr.rel (%p642) target = $region68
        $region67: #{tpu_custom_call.1} parent=35 // pred_region
          %p645 = scmp.lt.s32.totalorder %s34, 1
          %s646 = scalar_select %p645, %s34, 1
          %s647 = scalar_lea.vmem %s10, %s646
        $region68: #{tpu_custom_call.1} parent=35 // pred_fallthru
          _
        // Predicated region
        $region69: #{tpu_custom_call.1} parent=35 // pred_check
          %p648 = pneg %p325
        $region70: #{tpu_custom_call.1} parent=35 // pred_check_branch
          %650 = sbr.rel (%p648) target = $region72
        $region71: #{tpu_custom_call.1} parent=35 // pred_region
          %p651 = scmp.lt.s32.totalorder %s34, 1
          %s652 = scalar_select %p651, %s34, 1
          %s653 = scalar_lea.vmem %s11, %s652
        $region72: #{tpu_custom_call.1} parent=35 // pred_fallthru
          _
        // Predicated region
        $region73: #{tpu_custom_call.1} parent=35 // pred_check
          %p654 = pneg %p351
        $region74: #{tpu_custom_call.1} parent=35 // pred_check_branch
          %656 = sbr.rel (%p654) target = $region76
        $region75: #{tpu_custom_call.1} parent=35 // pred_region
          %p657 = scmp.lt.s32.totalorder %s34, 1
          %s658 = scalar_select %p657, %s34, 1
          %s659 = scalar_lea.vmem %s12, %s658
        $region76: #{tpu_custom_call.1} parent=35 // pred_fallthru
          _
        // Predicated region
        $region77: #{tpu_custom_call.1} parent=35 // pred_check
          %p660 = pneg %p377
        $region78: #{tpu_custom_call.1} parent=35 // pred_check_branch
          %662 = sbr.rel (%p660) target = $region80
        $region79: #{tpu_custom_call.1} parent=35 // pred_region
          %p663 = scmp.lt.s32.totalorder %s34, 1
          %s664 = scalar_select %p663, %s34, 1
          %s665 = scalar_lea.vmem %s13, %s664
        $region80: #{tpu_custom_call.1} parent=35 // pred_fallthru
          _
        // Predicated region
        $region81: #{tpu_custom_call.1} parent=35 // pred_check
          %p666 = pneg %p403
        $region82: #{tpu_custom_call.1} parent=35 // pred_check_branch
          %668 = sbr.rel (%p666) target = $region84
        $region83: #{tpu_custom_call.1} parent=35 // pred_region
          %p669 = scmp.lt.s32.totalorder %s34, 1
          %s670 = scalar_select %p669, %s34, 1
          %s671 = scalar_lea.vmem %s14, %s670
        $region84: #{tpu_custom_call.1} parent=35 // pred_fallthru
          _
      $region36: #{tpu_custom_call.1} parent=5 // pred_fallthru
        _
      %p672 = scmp.le.s32.totalorder 1, %s34
      %p673 = scmp.lt.s32.totalorder %s34, 3
      %p674 = pnand %p672, %p673
      %p675 = pneg %p674
      // Predicated region
      $region85: #{tpu_custom_call.1} parent=5 // pred_check
        _
      $region86: #{tpu_custom_call.1} parent=5 // pred_check_branch
        %677 = sbr.rel (%p674) target = $region88
      $region87: #{tpu_custom_call.1} parent=5 // pred_region
        %s678 = ssub.s32 %s34, 1
        // Predicated region
        $region89: #{tpu_custom_call.1} parent=87 // pred_check
          %p679 = pneg %p97
        $region90: #{tpu_custom_call.1} parent=87 // pred_check_branch
          %681 = sbr.rel (%p679) target = $region92
        $region91: #{tpu_custom_call.1} parent=87 // pred_region
          %682 = dma.done [#allocation4], 2048
        $region92: #{tpu_custom_call.1} parent=87 // pred_fallthru
          _
        %s683 = sand.u32 %s39, 1
        %s684 = scalar_lea.sflag [#allocation7], %s683
        %s685 = sand.u32 %s110, 1
        %s686 = smul.addr %s685, 192
        %s687 = scalar_lea.vmem [#allocation6], %s686
        // Predicated region
        $region93: #{tpu_custom_call.1} parent=87 // pred_check
          %p688 = pneg %p123
        $region94: #{tpu_custom_call.1} parent=87 // pred_check_branch
          %690 = sbr.rel (%p688) target = $region96
        $region95: #{tpu_custom_call.1} parent=87 // pred_region
          %691 = dma.done %s684, 3072
        $region96: #{tpu_custom_call.1} parent=87 // pred_fallthru
          _
        %s692 = sand.u32 %s39, 1
        %s693 = scalar_lea.sflag [#allocation7], %s692
        %s694 = sand.u32 %s162, 1
        %s695 = smul.addr %s694, 64
        %s696 = scalar_lea.vmem [#allocation8], %s695
        // Predicated region
        $region97: #{tpu_custom_call.1} parent=87 // pred_check
          %p697 = pneg %p175
        $region98: #{tpu_custom_call.1} parent=87 // pred_check_branch
          %699 = sbr.rel (%p697) target = $region100
        $region99: #{tpu_custom_call.1} parent=87 // pred_region
          %700 = dma.done %s693, 1024
        $region100: #{tpu_custom_call.1} parent=87 // pred_fallthru
          _
        %s701 = sand.u32 %s39, 1
        %s702 = scalar_lea.sflag [#allocation10], %s701
        %s703 = sand.u32 %s214, 1
        %s704 = smul.addr %s703, 512
        %s705 = scalar_lea.vmem [#allocation9], %s704
        // Predicated region
        $region101: #{tpu_custom_call.1} parent=87 // pred_check
          %p706 = pneg %p227
        $region102: #{tpu_custom_call.1} parent=87 // pred_check_branch
          %708 = sbr.rel (%p706) target = $region104
        $region103: #{tpu_custom_call.1} parent=87 // pred_region
          %709 = dma.done %s702, 8192
        $region104: #{tpu_custom_call.1} parent=87 // pred_fallthru
          _
        %s710 = sand.u32 %s39, 1
        %s711 = scalar_lea.sflag [#allocation10], %s710
        %s712 = sand.u32 %s240, 1
        %s713 = smul.addr %s712, 8
        %s714 = scalar_lea.vmem [#allocation11], %s713
        // Predicated region
        $region105: #{tpu_custom_call.1} parent=87 // pred_check
          %p715 = pneg %p253
        $region106: #{tpu_custom_call.1} parent=87 // pred_check_branch
          %717 = sbr.rel (%p715) target = $region108
        $region107: #{tpu_custom_call.1} parent=87 // pred_region
          %718 = dma.done %s711, 128
        $region108: #{tpu_custom_call.1} parent=87 // pred_fallthru
          _
        %s719 = sand.u32 %s39, 1
        %s720 = scalar_lea.sflag [#allocation13], %s719
        %s721 = sand.u32 %s266, 1
        %s722 = smul.addr %s721, 512
        %s723 = scalar_lea.vmem [#allocation12], %s722
        // Predicated region
        $region109: #{tpu_custom_call.1} parent=87 // pred_check
          %p724 = pneg %p279
        $region110: #{tpu_custom_call.1} parent=87 // pred_check_branch
          %726 = sbr.rel (%p724) target = $region112
        $region111: #{tpu_custom_call.1} parent=87 // pred_region
          %727 = dma.done %s720, 8192
        $region112: #{tpu_custom_call.1} parent=87 // pred_fallthru
          _
        // Predicated region
        $region113: #{tpu_custom_call.1} parent=87 // pred_check
          %p728 = pneg %p430
        $region114: #{tpu_custom_call.1} parent=87 // pred_check_branch
          %730 = sbr.rel (%p728) target = $region116
        $region115: #{tpu_custom_call.1} parent=87 // pred_region
          %731 = dma.done [#allocation13], 1024
        $region116: #{tpu_custom_call.1} parent=87 // pred_fallthru
          _
        %p732 = pneg %p55
        %p733 = pneg %p52
        %p734 = pneg %p76
        %p735 = pneg %p73
        %p736 = pneg %p97
        %p737 = pneg %p94
        %s738 = sand.u32 %s39, 1
        %s739 = scalar_lea.sflag [#allocation7], %s738
        %s740 = sand.u32 %s110, 1
        %s741 = smul.addr %s740, 192
        %s742 = scalar_lea.vmem [#allocation6], %s741
        %p743 = pneg %p123
        %p744 = pneg %p120
        %p745 = scmp.lt.s32.totalorder %s39, 1
        %s746 = scalar_select %p745, %s39, 1
        %s747 = smul.addr %s746, 3
        %s748 = scalar_lea.vmem %s4, %s747
        %p749 = pneg %p149
        %p750 = pneg %p146
        %s751 = sand.u32 %s39, 1
        %s752 = scalar_lea.sflag [#allocation7], %s751
        %s753 = sand.u32 %s162, 1
        %s754 = smul.addr %s753, 64
        %s755 = scalar_lea.vmem [#allocation8], %s754
        %p756 = pneg %p175
        %p757 = pneg %p172
        %p758 = scmp.lt.s32.totalorder %s39, 1
        %s759 = scalar_select %p758, %s39, 1
        %s760 = scalar_lea.vmem %s6, %s759
        %p761 = pneg %p201
        %p762 = pneg %p198
        %s763 = sand.u32 %s39, 1
        %s764 = scalar_lea.sflag [#allocation10], %s763
        %s765 = sand.u32 %s214, 1
        %s766 = smul.addr %s765, 512
        %s767 = scalar_lea.vmem [#allocation9], %s766
        %p768 = pneg %p227
        %p769 = pneg %p224
        %s770 = sand.u32 %s39, 1
        %s771 = scalar_lea.sflag [#allocation10], %s770
        %s772 = sand.u32 %s240, 1
        %s773 = smul.addr %s772, 8
        %s774 = scalar_lea.vmem [#allocation11], %s773
        %p775 = pneg %p253
        %p776 = pneg %p250
        %s777 = sand.u32 %s39, 1
        %s778 = scalar_lea.sflag [#allocation13], %s777
        %s779 = sand.u32 %s266, 1
        %s780 = smul.addr %s779, 512
        %s781 = scalar_lea.vmem [#allocation12], %s780
        %p782 = pneg %p279
        %p783 = pneg %p276
        %p784 = scmp.lt.s32.totalorder %s39, 1
        %s785 = scalar_select %p784, %s39, 1
        %s786 = scalar_lea.vmem %s10, %s785
        %p787 = pneg %p305
        %p788 = pneg %p302
        %p789 = scmp.lt.s32.totalorder %s39, 1
        %s790 = scalar_select %p789, %s39, 1
        %s791 = scalar_lea.vmem %s11, %s790
        %p792 = pneg %p331
        %p793 = pneg %p328
        %p794 = scmp.lt.s32.totalorder %s39, 1
        %s795 = scalar_select %p794, %s39, 1
        %s796 = scalar_lea.vmem %s12, %s795
        %p797 = pneg %p357
        %p798 = pneg %p354
        %p799 = scmp.lt.s32.totalorder %s39, 1
        %s800 = scalar_select %p799, %s39, 1
        %s801 = scalar_lea.vmem %s13, %s800
        %p802 = pneg %p383
        %p803 = pneg %p380
        %p804 = scmp.lt.s32.totalorder %s39, 1
        %s805 = scalar_select %p804, %s39, 1
        %s806 = scalar_lea.vmem %s14, %s805
        %p807 = pneg %p409
        %p808 = pneg %p406
        %p809 = pneg %p430
        %p810 = pneg %p427
        %p811 = pneg %p451
        %p812 = pneg %p448
        %p813 = pneg %p472
        %p814 = pneg %p469
        %p815 = scmp.lt.s32.totalorder %s39, 1
        %s816 = scalar_select %p815, %s39, 1
        %s817 = smul.addr %s816, 3
        %s818 = scalar_lea.vmem %s4, %s817
        %p819 = scmp.lt.s32.totalorder %s39, 1
        %s820 = scalar_select %p819, %s39, 1
        %s821 = scalar_lea.vmem %s6, %s820
        %p822 = scmp.lt.s32.totalorder %s39, 1
        %s823 = scalar_select %p822, %s39, 1
        %s824 = scalar_lea.vmem %s10, %s823
        %p825 = scmp.lt.s32.totalorder %s39, 1
        %s826 = scalar_select %p825, %s39, 1
        %s827 = scalar_lea.vmem %s11, %s826
        %p828 = scmp.lt.s32.totalorder %s39, 1
        %s829 = scalar_select %p828, %s39, 1
        %s830 = scalar_lea.vmem %s12, %s829
        %p831 = scmp.lt.s32.totalorder %s39, 1
        %s832 = scalar_select %p831, %s39, 1
        %s833 = scalar_lea.vmem %s13, %s832
        %p834 = scmp.lt.s32.totalorder %s39, 1
        %s835 = scalar_select %p834, %s39, 1
        %s836 = scalar_lea.vmem %s14, %s835
        %p838 = scmp.eq.s32.totalorder %s39, 0
        // Predicated region
        $region117: #{tpu_custom_call.1} parent=87 // pred_check
          %p839 = pneg %p838
        $region118: #{tpu_custom_call.1} parent=87 // pred_check_branch
          %841 = sbr.rel (%p839) target = $region120
        $region119: #{tpu_custom_call.1} parent=87 // pred_region
          %v842 = vld [vmem:[%s0] sm:$0xff]
          %v843 = vld [vmem:[%s0 + $0x8] sm:$0xff]
          %v844 = vlaneseq
          %v845 = vand.u32 %v844, 127
          %846 = vset.pattern.permute.xlu0 0
          %847 = vperm.xlu0 %846, %v842
          %v848 = vpop.permute.xlu0 %847
          %849 = vset.pattern.permute.xlu0 0
          %850 = vperm.xlu0 %849, %v843
          %v851 = vpop.permute.xlu0 %850
          %vm852 = vcmp.eq.s32.totalorder %v845, %v848
          %vm853 = vcmp.eq.s32.totalorder %v845, %v851
          %v854 = vsel %vm852, 1.0, 0.0
          %v855 = vsel %vm853, 1.0, 0.0
          %v856 = vld [vmem:[#allocation3] sm:$0xff]
          %v857 = vld [vmem:[#allocation3 + $0x8] sm:$0xff]
          %v858 = vld [vmem:[#allocation3 + $0x10] sm:$0xff]
          %v859 = vld [vmem:[#allocation3 + $0x18] sm:$0xff]
          %v860 = vld [vmem:[#allocation3 + $0x20] sm:$0xff]
          %v861 = vld [vmem:[#allocation3 + $0x28] sm:$0xff]
          %v862 = vld [vmem:[#allocation3 + $0x30] sm:$0xff]
          %v863 = vld [vmem:[#allocation3 + $0x38] sm:$0xff]
          %v864 = vld [vmem:[#allocation3 + $0x40] sm:$0xff]
          %v865 = vld [vmem:[#allocation3 + $0x48] sm:$0xff]
          %v866 = vld [vmem:[#allocation3 + $0x50] sm:$0xff]
          %v867 = vld [vmem:[#allocation3 + $0x58] sm:$0xff]
          %v868 = vld [vmem:[#allocation3 + $0x60] sm:$0xff]
          %v869 = vld [vmem:[#allocation3 + $0x68] sm:$0xff]
          %v870 = vld [vmem:[#allocation3 + $0x70] sm:$0xff]
          %v871 = vld [vmem:[#allocation3 + $0x78] sm:$0xff]
          %872 = vmatprep.subr.mxu0 0.0
          %873 = vmatpush1.msra.mxu0 %v871
          %874 = vmatprep.subr.mxu0 0.0
          %875 = vmatpush1.msra.mxu0 %v870
          %876 = vmatprep.subr.mxu0 0.0
          %877 = vmatpush1.msra.mxu0 %v869
          %878 = vmatprep.subr.mxu0 0.0
          %879 = vmatpush1.msra.mxu0 %v868
          %880 = vmatprep.subr.mxu0 0.0
          %881 = vmatpush1.msra.mxu0 %v867
          %882 = vmatprep.subr.mxu0 0.0
          %883 = vmatpush1.msra.mxu0 %v866
          %884 = vmatprep.subr.mxu0 0.0
          %885 = vmatpush1.msra.mxu0 %v865
          %886 = vmatprep.subr.mxu0 0.0
          %887 = vmatpush1.msra.mxu0 %v864
          %888 = vmatprep.subr.mxu0 0.0
          %889 = vmatpush1.msra.mxu0 %v863
          %890 = vmatprep.subr.mxu0 0.0
          %891 = vmatpush1.msra.mxu0 %v862
          %892 = vmatprep.subr.mxu0 0.0
          %893 = vmatpush1.msra.mxu0 %v861
          %894 = vmatprep.subr.mxu0 0.0
          %895 = vmatpush1.msra.mxu0 %v860
          %896 = vmatprep.subr.mxu0 0.0
          %897 = vmatpush1.msra.mxu0 %v859
          %898 = vmatprep.subr.mxu0 0.0
          %899 = vmatpush1.msra.mxu0 %v858
          %900 = vmatprep.subr.mxu0 0.0
          %901 = vmatpush1.msra.mxu0 %v857
          %902 = vmatprep.subr.mxu0 0.0
          %903 = vmatpush1.msra.mxu0 %v856
          %904 = vmatprep.subr.mxu0 0.0
          %905 = vmatpush2.msra.mxu0 0.0
          %906 = vmatprep.subr.mxu0 0.0
          %907 = vmatpush2.msra.mxu0 0.0
          %908 = vmatprep.subr.mxu0 0.0
          %909 = vmatpush2.msra.mxu0 0.0
          %910 = vmatprep.subr.mxu0 0.0
          %911 = vmatpush2.msra.mxu0 0.0
          %912 = vmatprep.subr.mxu0 0.0
          %913 = vmatpush2.msra.mxu0 0.0
          %914 = vmatprep.subr.mxu0 0.0
          %915 = vmatpush2.msra.mxu0 0.0
          %916 = vmatprep.subr.mxu0 0.0
          %917 = vmatpush2.msra.mxu0 0.0
          %918 = vmatprep.subr.mxu0 0.0
          %919 = vmatpush2.msra.mxu0 0.0
          %920 = vmatprep.subr.mxu0 0.0
          %921 = vmatpush2.msra.mxu0 0.0
          %922 = vmatprep.subr.mxu0 0.0
          %923 = vmatpush2.msra.mxu0 0.0
          %924 = vmatprep.subr.mxu0 0.0
          %925 = vmatpush2.msra.mxu0 0.0
          %926 = vmatprep.subr.mxu0 0.0
          %927 = vmatpush2.msra.mxu0 0.0
          %928 = vmatprep.subr.mxu0 0.0
          %929 = vmatpush2.msra.mxu0 0.0
          %930 = vmatprep.subr.mxu0 0.0
          %931 = vmatpush2.msra.mxu0 0.0
          %932 = vmatprep.subr.mxu0 0.0
          %933 = vmatpush2.msra.mxu0 0.0
          %934 = vmatprep.subr.mxu0 0.0
          %935 = vmatpush2.msra.mxu0 0.0
          %936 = vmatprep.mubr.f32.mxu0 0.0
          %937 = vmatmul.mubr.f32.gmra.mxu0 %v854
          %v938 = vpop.f32.mrf.mxu0
          %v939 = vadd.f32 0.0, %v938
          %v940 = vpop.f32.mrf.mxu0
          %941 = vmatprep.mubr.f32.mxu0 0.0
          %942 = vmatmul.mubr.f32.gmra.mxu0 %v855
          %v943 = vpop.f32.mrf.mxu0
          %v944 = vadd.f32 0.0, %v943
          %v945 = vpop.f32.mrf.mxu0
          %946 = vdwg.mxu0
          %947 = vst [vmem:[#allocation2] sm:$0xff] %v939
          %948 = vst [vmem:[#allocation2 + $0x8] sm:$0xff] %v944
        $region120: #{tpu_custom_call.1} parent=87 // pred_fallthru
          _
        %v949 = vld [vmem:[#allocation2] sm:$0xff]
        %v950 = vld [vmem:[#allocation2 + $0x8] sm:$0xff]
        %v951 = vpack.c.bf16 %v950, %v949
        %v952 = vld [vmem:[%s687] sm:$0xff]
        %v953 = vld [vmem:[%s687 + $0x8] sm:$0xf]
        %v954 = vld [vmem:[%s687 + $0xc] sm:$0xff]
        %v955 = vld [vmem:[%s687 + $0x14] sm:$0xf]
        %v956 = vld [vmem:[%s687 + $0x18] sm:$0xff]
        %v957 = vld [vmem:[%s687 + $0x20] sm:$0xf]
        %v958 = vld [vmem:[%s687 + $0x24] sm:$0xff]
        %v959 = vld [vmem:[%s687 + $0x2c] sm:$0xf]
        %v960 = vld [vmem:[%s687 + $0x30] sm:$0xff]
        %v961 = vld [vmem:[%s687 + $0x38] sm:$0xf]
        %v962 = vld [vmem:[%s687 + $0x3c] sm:$0xff]
        %v963 = vld [vmem:[%s687 + $0x44] sm:$0xf]
        %v964 = vld [vmem:[%s687 + $0x48] sm:$0xff]
        %v965 = vld [vmem:[%s687 + $0x50] sm:$0xf]
        %v966 = vld [vmem:[%s687 + $0x54] sm:$0xff]
        %v967 = vld [vmem:[%s687 + $0x5c] sm:$0xf]
        %v968 = vld [vmem:[%s687 + $0x60] sm:$0xff]
        %v969 = vld [vmem:[%s687 + $0x68] sm:$0xf]
        %v970 = vld [vmem:[%s687 + $0x6c] sm:$0xff]
        %v971 = vld [vmem:[%s687 + $0x74] sm:$0xf]
        %v972 = vld [vmem:[%s687 + $0x78] sm:$0xff]
        %v973 = vld [vmem:[%s687 + $0x80] sm:$0xf]
        %v974 = vld [vmem:[%s687 + $0x84] sm:$0xff]
        %v975 = vld [vmem:[%s687 + $0x8c] sm:$0xf]
        %v976 = vld [vmem:[%s687 + $0x90] sm:$0xff]
        %v977 = vld [vmem:[%s687 + $0x98] sm:$0xf]
        %v978 = vld [vmem:[%s687 + $0x9c] sm:$0xff]
        %v979 = vld [vmem:[%s687 + $0xa4] sm:$0xf]
        %v980 = vld [vmem:[%s687 + $0xa8] sm:$0xff]
        %v981 = vld [vmem:[%s687 + $0xb0] sm:$0xf]
        %v982 = vld [vmem:[%s687 + $0xb4] sm:$0xff]
        %v983 = vld [vmem:[%s687 + $0xbc] sm:$0xf]
        %v984 = vld [vmem:[%s818] sm:$0x7]
        %v986 = vlaneseq
        %v987 = vshrl.u32 %v986, 7
        %v988 = vsub.s32 0, %v987
        %v989 = vrot.slane %v984, %v988
        %v990 = vlaneseq
        %v991 = vshrl.u32 %v990, 7
        %v992 = vsub.s32 1, %v991
        %v993 = vrot.slane %v984, %v992
        %v994 = vlaneseq
        %v995 = vshrl.u32 %v994, 7
        %v996 = vsub.s32 2, %v995
        %v997 = vrot.slane %v984, %v996
        %v1033 = vunpack.c.l.b16 %v952
        %v1034 = vunpack.c.h.b16 %v952
        %v1035 = vunpack.c.l.b16 %v953
        %v1036 = vunpack.c.l.b16 %v954
        %v1037 = vunpack.c.h.b16 %v954
        %v1038 = vunpack.c.l.b16 %v955
        %v1039 = vunpack.c.l.b16 %v956
        %v1040 = vunpack.c.h.b16 %v956
        %v1041 = vunpack.c.l.b16 %v957
        %v1042 = vunpack.c.l.b16 %v958
        %v1043 = vunpack.c.h.b16 %v958
        %v1044 = vunpack.c.l.b16 %v959
        %v1045 = vunpack.c.l.b16 %v960
        %v1046 = vunpack.c.h.b16 %v960
        %v1047 = vunpack.c.l.b16 %v961
        %v1048 = vunpack.c.l.b16 %v962
        %v1049 = vunpack.c.h.b16 %v962
        %v1050 = vunpack.c.l.b16 %v963
        %v1051 = vunpack.c.l.b16 %v964
        %v1052 = vunpack.c.h.b16 %v964
        %v1053 = vunpack.c.l.b16 %v965
        %v1054 = vunpack.c.l.b16 %v966
        %v1055 = vunpack.c.h.b16 %v966
        %v1056 = vunpack.c.l.b16 %v967
        %v1057 = vunpack.c.l.b16 %v968
        %v1058 = vunpack.c.h.b16 %v968
        %v1059 = vunpack.c.l.b16 %v969
        %v1060 = vunpack.c.l.b16 %v970
        %v1061 = vunpack.c.h.b16 %v970
        %v1062 = vunpack.c.l.b16 %v971
        %v1063 = vunpack.c.l.b16 %v972
        %v1064 = vunpack.c.h.b16 %v972
        %v1065 = vunpack.c.l.b16 %v973
        %v1066 = vunpack.c.l.b16 %v974
        %v1067 = vunpack.c.h.b16 %v974
        %v1068 = vunpack.c.l.b16 %v975
        %v1069 = vunpack.c.l.b16 %v976
        %v1070 = vunpack.c.h.b16 %v976
        %v1071 = vunpack.c.l.b16 %v977
        %v1072 = vunpack.c.l.b16 %v978
        %v1073 = vunpack.c.h.b16 %v978
        %v1074 = vunpack.c.l.b16 %v979
        %v1075 = vunpack.c.l.b16 %v980
        %v1076 = vunpack.c.h.b16 %v980
        %v1077 = vunpack.c.l.b16 %v981
        %v1078 = vunpack.c.l.b16 %v982
        %v1079 = vunpack.c.h.b16 %v982
        %v1080 = vunpack.c.l.b16 %v983
        %v1081 = vpack.c.b16 %v1036, %v1033
        %v1082 = vpack.c.b16 %v1037, %v1034
        %v1083 = vpack.c.b16 %v1038, %v1035
        %v1084 = vpack.c.b16 %v1042, %v1039
        %v1085 = vpack.c.b16 %v1043, %v1040
        %v1086 = vpack.c.b16 %v1044, %v1041
        %v1087 = vpack.c.b16 %v1048, %v1045
        %v1088 = vpack.c.b16 %v1049, %v1046
        %v1089 = vpack.c.b16 %v1050, %v1047
        %v1090 = vpack.c.b16 %v1054, %v1051
        %v1091 = vpack.c.b16 %v1055, %v1052
        %v1092 = vpack.c.b16 %v1056, %v1053
        %v1093 = vpack.c.b16 %v1060, %v1057
        %v1094 = vpack.c.b16 %v1061, %v1058
        %v1095 = vpack.c.b16 %v1062, %v1059
        %v1096 = vpack.c.b16 %v1066, %v1063
        %v1097 = vpack.c.b16 %v1067, %v1064
        %v1098 = vpack.c.b16 %v1068, %v1065
        %v1099 = vpack.c.b16 %v1072, %v1069
        %v1100 = vpack.c.b16 %v1073, %v1070
        %v1101 = vpack.c.b16 %v1074, %v1071
        %v1102 = vpack.c.b16 %v1078, %v1075
        %v1103 = vpack.c.b16 %v1079, %v1076
        %v1104 = vpack.c.b16 %v1080, %v1077
        %1129 = vmatprep.subr.bf16.mxu0 %v1103
        %1130 = vmatpush1.bf16.msra.mxu0 %v1102
        %1131 = vmatprep.subr.bf16.mxu0 %v1100
        %1132 = vmatpush1.bf16.msra.mxu0 %v1099
        %1133 = vmatprep.subr.bf16.mxu0 %v1097
        %1134 = vmatpush1.bf16.msra.mxu0 %v1096
        %1135 = vmatprep.subr.bf16.mxu0 %v1094
        %1136 = vmatpush1.bf16.msra.mxu0 %v1093
        %1137 = vmatprep.subr.bf16.mxu0 %v1091
        %1138 = vmatpush1.bf16.msra.mxu0 %v1090
        %1139 = vmatprep.subr.bf16.mxu0 %v1088
        %1140 = vmatpush1.bf16.msra.mxu0 %v1087
        %1141 = vmatprep.subr.bf16.mxu0 %v1085
        %1142 = vmatpush1.bf16.msra.mxu0 %v1084
        %1143 = vmatprep.subr.bf16.mxu0 %v1082
        %1144 = vmatpush1.bf16.msra.mxu0 %v1081
        %1145 = vmatprep.subr.bf16.mxu0 0
        %1146 = vmatpush2.bf16.msra.mxu0 0
        %1147 = vmatprep.subr.bf16.mxu0 0
        %1148 = vmatpush2.bf16.msra.mxu0 0
        %1149 = vmatprep.subr.bf16.mxu0 0
        %1150 = vmatpush2.bf16.msra.mxu0 0
        %1151 = vmatprep.subr.bf16.mxu0 0
        %1152 = vmatpush2.bf16.msra.mxu0 0
        %1153 = vmatprep.subr.bf16.mxu0 0
        %1154 = vmatpush2.bf16.msra.mxu0 0
        %1155 = vmatprep.subr.bf16.mxu0 0
        %1156 = vmatpush2.bf16.msra.mxu0 0
        %1157 = vmatprep.subr.bf16.mxu0 0
        %1158 = vmatpush2.bf16.msra.mxu0 0
        %1159 = vmatprep.subr.bf16.mxu0 0
        %1160 = vmatpush2.bf16.msra.mxu0 0
        %1161 = vmatprep.mubr.bf16.mxu0 0
        %1162 = vmatmul.mubr.bf16.gmra.mxu0 %v951
        %v1163 = vpop.f32.mrf.mxu0
        %v1164 = vadd.f32 %v989, %v1163
        %v1165 = vpop.f32.mrf.mxu0
        %v1166 = vadd.f32 %v993, %v1165
        %v1167 = vpop.f32.mrf.mxu0
        %v1168 = vadd.f32 %v989, %v1167
        %v1169 = vpop.f32.mrf.mxu0
        %v1170 = vadd.f32 %v993, %v1169
        %1171 = vdwg.mxu0
        %1172 = vmatprep.subr.bf16.mxu0 0
        %1173 = vmatpush1.bf16.msra.mxu0 %v1104
        %1174 = vmatprep.subr.bf16.mxu0 0
        %1175 = vmatpush1.bf16.msra.mxu0 %v1101
        %1176 = vmatprep.subr.bf16.mxu0 0
        %1177 = vmatpush1.bf16.msra.mxu0 %v1098
        %1178 = vmatprep.subr.bf16.mxu0 0
        %1179 = vmatpush1.bf16.msra.mxu0 %v1095
        %1180 = vmatprep.subr.bf16.mxu0 0
        %1181 = vmatpush1.bf16.msra.mxu0 %v1092
        %1182 = vmatprep.subr.bf16.mxu0 0
        %1183 = vmatpush1.bf16.msra.mxu0 %v1089
        %1184 = vmatprep.subr.bf16.mxu0 0
        %1185 = vmatpush1.bf16.msra.mxu0 %v1086
        %1186 = vmatprep.subr.bf16.mxu0 0
        %1187 = vmatpush1.bf16.msra.mxu0 %v1083
        %1188 = vmatprep.subr.bf16.mxu0 0
        %1189 = vmatpush2.bf16.msra.mxu0 0
        %1190 = vmatprep.subr.bf16.mxu0 0
        %1191 = vmatpush2.bf16.msra.mxu0 0
        %1192 = vmatprep.subr.bf16.mxu0 0
        %1193 = vmatpush2.bf16.msra.mxu0 0
        %1194 = vmatprep.subr.bf16.mxu0 0
        %1195 = vmatpush2.bf16.msra.mxu0 0
        %1196 = vmatprep.subr.bf16.mxu0 0
        %1197 = vmatpush2.bf16.msra.mxu0 0
        %1198 = vmatprep.subr.bf16.mxu0 0
        %1199 = vmatpush2.bf16.msra.mxu0 0
        %1200 = vmatprep.subr.bf16.mxu0 0
        %1201 = vmatpush2.bf16.msra.mxu0 0
        %1202 = vmatprep.subr.bf16.mxu0 0
        %1203 = vmatpush2.bf16.msra.mxu0 0
        %1204 = vmatprep.mubr.bf16.mxu0 0
        %1205 = vmatmul.mubr.bf16.gmra.mxu0 %v951
        %v1206 = vpop.f32.mrf.mxu0
        %v1207 = vadd.f32 %v997, %v1206
        %v1208 = vpop.f32.mrf.mxu0
        %v1209 = vpop.f32.mrf.mxu0
        %v1210 = vadd.f32 %v997, %v1209
        %v1211 = vpop.f32.mrf.mxu0
        %1212 = vdwg.mxu0
        %1215 = vrot.lane.b32.xlu0 %v1164, 96
        %v1216 = vpop.permute.xlu0 %1215
        %1217 = vrot.lane.b32.xlu0 %v1168, 96
        %v1218 = vpop.permute.xlu0 %1217
        %1221 = vrot.lane.b32.xlu0 %v1164, 64
        %v1222 = vpop.permute.xlu0 %1221
        %1223 = vrot.lane.b32.xlu0 %v1168, 64
        %v1224 = vpop.permute.xlu0 %1223
        %1227 = vrot.lane.b32.xlu0 %v1164, 32
        %v1228 = vpop.permute.xlu0 %1227
        %1229 = vrot.lane.b32.xlu0 %v1168, 32
        %v1230 = vpop.permute.xlu0 %1229
        %v1233 = vpack.c.bf16 %v1168, %v1164
        %v1234 = vpack.c.bf16 %v1218, %v1216
        %v1235 = vpack.c.bf16 %v1224, %v1222
        %v1236 = vpack.c.bf16 %v1230, %v1228
        %1239 = vrot.lane.b32.xlu0 %v1166, 96
        %v1240 = vpop.permute.xlu0 %1239
        %1241 = vrot.lane.b32.xlu0 %v1170, 96
        %v1242 = vpop.permute.xlu0 %1241
        %1245 = vrot.lane.b32.xlu0 %v1166, 64
        %v1246 = vpop.permute.xlu0 %1245
        %1247 = vrot.lane.b32.xlu0 %v1170, 64
        %v1248 = vpop.permute.xlu0 %1247
        %1251 = vrot.lane.b32.xlu0 %v1166, 32
        %v1252 = vpop.permute.xlu0 %1251
        %1253 = vrot.lane.b32.xlu0 %v1170, 32
        %v1254 = vpop.permute.xlu0 %1253
        %v1257 = vpack.c.bf16 %v1170, %v1166
        %v1258 = vpack.c.bf16 %v1242, %v1240
        %v1259 = vpack.c.bf16 %v1248, %v1246
        %v1260 = vpack.c.bf16 %v1254, %v1252
        %1263 = vrot.lane.b32.xlu0 %v1207, 96
        %v1264 = vpop.permute.xlu0 %1263
        %1265 = vrot.lane.b32.xlu0 %v1210, 96
        %v1266 = vpop.permute.xlu0 %1265
        %1269 = vrot.lane.b32.xlu0 %v1207, 64
        %v1270 = vpop.permute.xlu0 %1269
        %1271 = vrot.lane.b32.xlu0 %v1210, 64
        %v1272 = vpop.permute.xlu0 %1271
        %1275 = vrot.lane.b32.xlu0 %v1207, 32
        %v1276 = vpop.permute.xlu0 %1275
        %1277 = vrot.lane.b32.xlu0 %v1210, 32
        %v1278 = vpop.permute.xlu0 %1277
        %v1281 = vpack.c.bf16 %v1210, %v1207
        %v1282 = vpack.c.bf16 %v1266, %v1264
        %v1283 = vpack.c.bf16 %v1272, %v1270
        %v1284 = vpack.c.bf16 %v1278, %v1276
        %v1285 = vld [vmem:[%s1] sm:$0xff]
        %v1286 = vld [vmem:[%s1 + $0x8] sm:$0xff]
        %vm1287 = vcmask 261120
        %v1289 = vsel %vm1287, %v1233, 0
        %v1292 = vsel %vm1287, %v1257, 0
        %1294 = vmatprep.subr.bf16.mxu0 0
        %1295 = vmatpush1.bf16.xpose.msra.mxu0 0
        %1296 = vmatprep.subr.bf16.mxu0 0
        %1297 = vmatpush1.bf16.xpose.msra.mxu0 0
        %1298 = vmatprep.subr.bf16.mxu0 0
        %1299 = vmatpush1.bf16.xpose.msra.mxu0 0
        %1300 = vmatprep.subr.bf16.mxu0 0
        %1301 = vmatpush1.bf16.xpose.msra.mxu0 0
        %1302 = vmatprep.subr.bf16.mxu0 0
        %1303 = vmatpush1.bf16.xpose.msra.mxu0 0
        %1304 = vmatprep.subr.bf16.mxu0 0
        %1305 = vmatpush1.bf16.xpose.msra.mxu0 0
        %1306 = vmatprep.subr.bf16.mxu0 0
        %1307 = vmatpush1.bf16.xpose.msra.mxu0 0
        %1308 = vmatprep.subr.bf16.mxu0 0
        %1309 = vmatpush1.bf16.xpose.msra.mxu0 %v1292
        %1310 = vmatprep.subr.bf16.mxu0 0
        %1311 = vmatpush2.bf16.xpose.msra.mxu0 0
        %1312 = vmatprep.subr.bf16.mxu0 0
        %1313 = vmatpush2.bf16.xpose.msra.mxu0 0
        %1314 = vmatprep.subr.bf16.mxu0 0
        %1315 = vmatpush2.bf16.xpose.msra.mxu0 0
        %1316 = vmatprep.subr.bf16.mxu0 0
        %1317 = vmatpush2.bf16.xpose.msra.mxu0 0
        %1318 = vmatprep.subr.bf16.mxu0 0
        %1319 = vmatpush2.bf16.xpose.msra.mxu0 0
        %1320 = vmatprep.subr.bf16.mxu0 0
        %1321 = vmatpush2.bf16.xpose.msra.mxu0 0
        %1322 = vmatprep.subr.bf16.mxu0 0
        %1323 = vmatpush2.bf16.xpose.msra.mxu0 0
        %1324 = vmatprep.subr.bf16.mxu0 0
        %1325 = vmatpush2.bf16.xpose.msra.mxu0 0
        %1326 = vmatprep.mubr.bf16.mxu0 0
        %1327 = vmatmul.mubr.bf16.gmra.mxu0 %v1289
        %v1328 = vpop.f32.mrf.mxu0
        %v1329 = vadd.f32 %v1285, %v1328
        %v1330 = vpop.f32.mrf.mxu0
        %v1331 = vpop.f32.mrf.mxu0
        %v1332 = vadd.f32 %v1286, %v1331
        %v1333 = vpop.f32.mrf.mxu0
        %1334 = vdwg.mxu0
        %v1336 = vsel %vm1287, %v1234, 0
        %v1339 = vsel %vm1287, %v1258, 0
        %1341 = vmatprep.subr.bf16.mxu0 0
        %1342 = vmatpush1.bf16.xpose.msra.mxu0 0
        %1343 = vmatprep.subr.bf16.mxu0 0
        %1344 = vmatpush1.bf16.xpose.msra.mxu0 0
        %1345 = vmatprep.subr.bf16.mxu0 0
        %1346 = vmatpush1.bf16.xpose.msra.mxu0 0
        %1347 = vmatprep.subr.bf16.mxu0 0
        %1348 = vmatpush1.bf16.xpose.msra.mxu0 0
        %1349 = vmatprep.subr.bf16.mxu0 0
        %1350 = vmatpush1.bf16.xpose.msra.mxu0 0
        %1351 = vmatprep.subr.bf16.mxu0 0
        %1352 = vmatpush1.bf16.xpose.msra.mxu0 0
        %1353 = vmatprep.subr.bf16.mxu0 0
        %1354 = vmatpush1.bf16.xpose.msra.mxu0 0
        %1355 = vmatprep.subr.bf16.mxu0 0
        %1356 = vmatpush1.bf16.xpose.msra.mxu0 %v1339
        %1357 = vmatprep.subr.bf16.mxu0 0
        %1358 = vmatpush2.bf16.xpose.msra.mxu0 0
        %1359 = vmatprep.subr.bf16.mxu0 0
        %1360 = vmatpush2.bf16.xpose.msra.mxu0 0
        %1361 = vmatprep.subr.bf16.mxu0 0
        %1362 = vmatpush2.bf16.xpose.msra.mxu0 0
        %1363 = vmatprep.subr.bf16.mxu0 0
        %1364 = vmatpush2.bf16.xpose.msra.mxu0 0
        %1365 = vmatprep.subr.bf16.mxu0 0
        %1366 = vmatpush2.bf16.xpose.msra.mxu0 0
        %1367 = vmatprep.subr.bf16.mxu0 0
        %1368 = vmatpush2.bf16.xpose.msra.mxu0 0
        %1369 = vmatprep.subr.bf16.mxu0 0
        %1370 = vmatpush2.bf16.xpose.msra.mxu0 0
        %1371 = vmatprep.subr.bf16.mxu0 0
        %1372 = vmatpush2.bf16.xpose.msra.mxu0 0
        %1373 = vmatprep.mubr.bf16.mxu0 0
        %1374 = vmatmul.mubr.bf16.gmra.mxu0 %v1336
        %v1375 = vpop.f32.mrf.mxu0
        %v1376 = vadd.f32 %v1285, %v1375
        %v1377 = vpop.f32.mrf.mxu0
        %v1378 = vpop.f32.mrf.mxu0
        %v1379 = vadd.f32 %v1286, %v1378
        %v1380 = vpop.f32.mrf.mxu0
        %1381 = vdwg.mxu0
        %v1383 = vsel %vm1287, %v1235, 0
        %v1386 = vsel %vm1287, %v1259, 0
        %1388 = vmatprep.subr.bf16.mxu0 0
        %1389 = vmatpush1.bf16.xpose.msra.mxu0 0
        %1390 = vmatprep.subr.bf16.mxu0 0
        %1391 = vmatpush1.bf16.xpose.msra.mxu0 0
        %1392 = vmatprep.subr.bf16.mxu0 0
        %1393 = vmatpush1.bf16.xpose.msra.mxu0 0
        %1394 = vmatprep.subr.bf16.mxu0 0
        %1395 = vmatpush1.bf16.xpose.msra.mxu0 0
        %1396 = vmatprep.subr.bf16.mxu0 0
        %1397 = vmatpush1.bf16.xpose.msra.mxu0 0
        %1398 = vmatprep.subr.bf16.mxu0 0
        %1399 = vmatpush1.bf16.xpose.msra.mxu0 0
        %1400 = vmatprep.subr.bf16.mxu0 0
        %1401 = vmatpush1.bf16.xpose.msra.mxu0 0
        %1402 = vmatprep.subr.bf16.mxu0 0
        %1403 = vmatpush1.bf16.xpose.msra.mxu0 %v1386
        %1404 = vmatprep.subr.bf16.mxu0 0
        %1405 = vmatpush2.bf16.xpose.msra.mxu0 0
        %1406 = vmatprep.subr.bf16.mxu0 0
        %1407 = vmatpush2.bf16.xpose.msra.mxu0 0
        %1408 = vmatprep.subr.bf16.mxu0 0
        %1409 = vmatpush2.bf16.xpose.msra.mxu0 0
        %1410 = vmatprep.subr.bf16.mxu0 0
        %1411 = vmatpush2.bf16.xpose.msra.mxu0 0
        %1412 = vmatprep.subr.bf16.mxu0 0
        %1413 = vmatpush2.bf16.xpose.msra.mxu0 0
        %1414 = vmatprep.subr.bf16.mxu0 0
        %1415 = vmatpush2.bf16.xpose.msra.mxu0 0
        %1416 = vmatprep.subr.bf16.mxu0 0
        %1417 = vmatpush2.bf16.xpose.msra.mxu0 0
        %1418 = vmatprep.subr.bf16.mxu0 0
        %1419 = vmatpush2.bf16.xpose.msra.mxu0 0
        %1420 = vmatprep.mubr.bf16.mxu0 0
        %1421 = vmatmul.mubr.bf16.gmra.mxu0 %v1383
        %v1422 = vpop.f32.mrf.mxu0
        %v1423 = vadd.f32 %v1285, %v1422
        %v1424 = vpop.f32.mrf.mxu0
        %v1425 = vpop.f32.mrf.mxu0
        %v1426 = vadd.f32 %v1286, %v1425
        %v1427 = vpop.f32.mrf.mxu0
        %1428 = vdwg.mxu0
        %v1430 = vsel %vm1287, %v1236, 0
        %v1433 = vsel %vm1287, %v1260, 0
        %1435 = vmatprep.subr.bf16.mxu0 0
        %1436 = vmatpush1.bf16.xpose.msra.mxu0 0
        %1437 = vmatprep.subr.bf16.mxu0 0
        %1438 = vmatpush1.bf16.xpose.msra.mxu0 0
        %1439 = vmatprep.subr.bf16.mxu0 0
        %1440 = vmatpush1.bf16.xpose.msra.mxu0 0
        %1441 = vmatprep.subr.bf16.mxu0 0
        %1442 = vmatpush1.bf16.xpose.msra.mxu0 0
        %1443 = vmatprep.subr.bf16.mxu0 0
        %1444 = vmatpush1.bf16.xpose.msra.mxu0 0
        %1445 = vmatprep.subr.bf16.mxu0 0
        %1446 = vmatpush1.bf16.xpose.msra.mxu0 0
        %1447 = vmatprep.subr.bf16.mxu0 0
        %1448 = vmatpush1.bf16.xpose.msra.mxu0 0
        %1449 = vmatprep.subr.bf16.mxu0 0
        %1450 = vmatpush1.bf16.xpose.msra.mxu0 %v1433
        %1451 = vmatprep.subr.bf16.mxu0 0
        %1452 = vmatpush2.bf16.xpose.msra.mxu0 0
        %1453 = vmatprep.subr.bf16.mxu0 0
        %1454 = vmatpush2.bf16.xpose.msra.mxu0 0
        %1455 = vmatprep.subr.bf16.mxu0 0
        %1456 = vmatpush2.bf16.xpose.msra.mxu0 0
        %1457 = vmatprep.subr.bf16.mxu0 0
        %1458 = vmatpush2.bf16.xpose.msra.mxu0 0
        %1459 = vmatprep.subr.bf16.mxu0 0
        %1460 = vmatpush2.bf16.xpose.msra.mxu0 0
        %1461 = vmatprep.subr.bf16.mxu0 0
        %1462 = vmatpush2.bf16.xpose.msra.mxu0 0
        %1463 = vmatprep.subr.bf16.mxu0 0
        %1464 = vmatpush2.bf16.xpose.msra.mxu0 0
        %1465 = vmatprep.subr.bf16.mxu0 0
        %1466 = vmatpush2.bf16.xpose.msra.mxu0 0
        %1467 = vmatprep.mubr.bf16.mxu0 0
        %1468 = vmatmul.mubr.bf16.gmra.mxu0 %v1430
        %v1469 = vpop.f32.mrf.mxu0
        %v1470 = vadd.f32 %v1285, %v1469
        %v1471 = vpop.f32.mrf.mxu0
        %v1472 = vpop.f32.mrf.mxu0
        %v1473 = vadd.f32 %v1286, %v1472
        %v1474 = vpop.f32.mrf.mxu0
        %1475 = vdwg.mxu0
        %vm1476 = vcmask 130048
        %v1477 = vsel %vm1476, %v1329, -inf
        %1478 = vmax.xlane.f32.xlu0 %v1477
        %v1479 = vpop.xlane.xlu0 %1478
        %v1480 = vsel %vm1476, %v1332, -inf
        %1481 = vmax.xlane.f32.xlu0 %v1480
        %v1482 = vpop.xlane.xlu0 %1481
        %v1483 = vsel %vm1476, %v1376, -inf
        %1484 = vmax.xlane.f32.xlu0 %v1483
        %v1485 = vpop.xlane.xlu0 %1484
        %v1486 = vsel %vm1476, %v1379, -inf
        %1487 = vmax.xlane.f32.xlu0 %v1486
        %v1488 = vpop.xlane.xlu0 %1487
        %v1489 = vsel %vm1476, %v1423, -inf
        %1490 = vmax.xlane.f32.xlu0 %v1489
        %v1491 = vpop.xlane.xlu0 %1490
        %v1492 = vsel %vm1476, %v1426, -inf
        %1493 = vmax.xlane.f32.xlu0 %v1492
        %v1494 = vpop.xlane.xlu0 %1493
        %v1495 = vsel %vm1476, %v1470, -inf
        %1496 = vmax.xlane.f32.xlu0 %v1495
        %v1497 = vpop.xlane.xlu0 %1496
        %v1498 = vsel %vm1476, %v1473, -inf
        %1499 = vmax.xlane.f32.xlu0 %v1498
        %v1500 = vpop.xlane.xlu0 %1499
        %v1501 = vsub.f32 %v1329, %v1479
        %v1502 = vsub.f32 %v1332, %v1482
        %v1503 = vsub.f32 %v1376, %v1485
        %v1504 = vsub.f32 %v1379, %v1488
        %v1505 = vsub.f32 %v1423, %v1491
        %v1506 = vsub.f32 %v1426, %v1494
        %v1507 = vsub.f32 %v1470, %v1497
        %v1508 = vsub.f32 %v1473, %v1500
        %v1509 = vmul.f32 %v1501, 1.442695
        %v1510 = vpow.pop %v1509
        %v1511 = vmul.f32 %v1502, 1.442695
        %v1512 = vpow.pop %v1511
        %v1513 = vmul.f32 %v1503, 1.442695
        %v1514 = vpow.pop %v1513
        %v1515 = vmul.f32 %v1504, 1.442695
        %v1516 = vpow.pop %v1515
        %v1517 = vmul.f32 %v1505, 1.442695
        %v1518 = vpow.pop %v1517
        %v1519 = vmul.f32 %v1506, 1.442695
        %v1520 = vpow.pop %v1519
        %v1521 = vmul.f32 %v1507, 1.442695
        %v1522 = vpow.pop %v1521
        %v1523 = vmul.f32 %v1508, 1.442695
        %v1524 = vpow.pop %v1523
        %v1525 = vsel %vm1476, %v1510, 0.0
        %1526 = vadd.xlane.f32.xlu0 %v1525
        %v1527 = vpop.xlane.xlu0 %1526
        %v1528 = vsel %vm1476, %v1512, 0.0
        %1529 = vadd.xlane.f32.xlu0 %v1528
        %v1530 = vpop.xlane.xlu0 %1529
        %v1531 = vsel %vm1476, %v1514, 0.0
        %1532 = vadd.xlane.f32.xlu0 %v1531
        %v1533 = vpop.xlane.xlu0 %1532
        %v1534 = vsel %vm1476, %v1516, 0.0
        %1535 = vadd.xlane.f32.xlu0 %v1534
        %v1536 = vpop.xlane.xlu0 %1535
        %v1537 = vsel %vm1476, %v1518, 0.0
        %1538 = vadd.xlane.f32.xlu0 %v1537
        %v1539 = vpop.xlane.xlu0 %1538
        %v1540 = vsel %vm1476, %v1520, 0.0
        %1541 = vadd.xlane.f32.xlu0 %v1540
        %v1542 = vpop.xlane.xlu0 %1541
        %v1543 = vsel %vm1476, %v1522, 0.0
        %1544 = vadd.xlane.f32.xlu0 %v1543
        %v1545 = vpop.xlane.xlu0 %1544
        %v1546 = vsel %vm1476, %v1524, 0.0
        %1547 = vadd.xlane.f32.xlu0 %v1546
        %v1548 = vpop.xlane.xlu0 %1547
        %v1549 = vrcp.pop %v1527
        %v1550 = vrcp.pop %v1530
        %v1551 = vrcp.pop %v1533
        %v1552 = vrcp.pop %v1536
        %v1553 = vrcp.pop %v1539
        %v1554 = vrcp.pop %v1542
        %v1555 = vrcp.pop %v1545
        %v1556 = vrcp.pop %v1548
        %v1557 = vmul.f32 %v1510, %v1549
        %v1558 = vmul.f32 %v1512, %v1550
        %v1559 = vmul.f32 %v1514, %v1551
        %v1560 = vmul.f32 %v1516, %v1552
        %v1561 = vmul.f32 %v1518, %v1553
        %v1562 = vmul.f32 %v1520, %v1554
        %v1563 = vmul.f32 %v1522, %v1555
        %v1564 = vmul.f32 %v1524, %v1556
        %v1565 = vpack.c.bf16 %v1558, %v1557
        %v1566 = vpack.c.bf16 %v1560, %v1559
        %v1567 = vpack.c.bf16 %v1562, %v1561
        %v1568 = vpack.c.bf16 %v1564, %v1563
        %v1570 = vsel %vm1476, %v1565, 0
        %1572 = vmatprep.subr.bf16.mxu0 0
        %1573 = vmatpush1.bf16.msra.mxu0 0
        %1574 = vmatprep.subr.bf16.mxu0 0
        %1575 = vmatpush1.bf16.msra.mxu0 0
        %1576 = vmatprep.subr.bf16.mxu0 0
        %1577 = vmatpush1.bf16.msra.mxu0 0
        %1578 = vmatprep.subr.bf16.mxu0 0
        %1579 = vmatpush1.bf16.msra.mxu0 0
        %1580 = vmatprep.subr.bf16.mxu0 0
        %1581 = vmatpush1.bf16.msra.mxu0 0
        %1582 = vmatprep.subr.bf16.mxu0 0
        %1583 = vmatpush1.bf16.msra.mxu0 0
        %1584 = vmatprep.subr.bf16.mxu0 0
        %1585 = vmatpush1.bf16.msra.mxu0 0
        %1586 = vmatprep.subr.bf16.mxu0 0
        %1587 = vmatpush1.bf16.msra.mxu0 %v1281
        %1588 = vmatprep.subr.bf16.mxu0 0
        %1589 = vmatpush2.bf16.msra.mxu0 0
        %1590 = vmatprep.subr.bf16.mxu0 0
        %1591 = vmatpush2.bf16.msra.mxu0 0
        %1592 = vmatprep.subr.bf16.mxu0 0
        %1593 = vmatpush2.bf16.msra.mxu0 0
        %1594 = vmatprep.subr.bf16.mxu0 0
        %1595 = vmatpush2.bf16.msra.mxu0 0
        %1596 = vmatprep.subr.bf16.mxu0 0
        %1597 = vmatpush2.bf16.msra.mxu0 0
        %1598 = vmatprep.subr.bf16.mxu0 0
        %1599 = vmatpush2.bf16.msra.mxu0 0
        %1600 = vmatprep.subr.bf16.mxu0 0
        %1601 = vmatpush2.bf16.msra.mxu0 0
        %1602 = vmatprep.subr.bf16.mxu0 0
        %1603 = vmatpush2.bf16.msra.mxu0 0
        %1604 = vmatprep.mubr.bf16.mxu0 0
        %1605 = vmatmul.mubr.bf16.gmra.mxu0 %v1570
        %v1606 = vpop.f32.mrf.mxu0
        %v1607 = vadd.f32 0.0, %v1606
        %v1608 = vpop.f32.mrf.mxu0
        %v1609 = vpop.f32.mrf.mxu0
        %v1610 = vadd.f32 0.0, %v1609
        %v1611 = vpop.f32.mrf.mxu0
        %1612 = vdwg.mxu0
        %v1614 = vsel %vm1476, %v1566, 0
        %1616 = vmatprep.subr.bf16.mxu0 0
        %1617 = vmatpush1.bf16.msra.mxu0 0
        %1618 = vmatprep.subr.bf16.mxu0 0
        %1619 = vmatpush1.bf16.msra.mxu0 0
        %1620 = vmatprep.subr.bf16.mxu0 0
        %1621 = vmatpush1.bf16.msra.mxu0 0
        %1622 = vmatprep.subr.bf16.mxu0 0
        %1623 = vmatpush1.bf16.msra.mxu0 0
        %1624 = vmatprep.subr.bf16.mxu0 0
        %1625 = vmatpush1.bf16.msra.mxu0 0
        %1626 = vmatprep.subr.bf16.mxu0 0
        %1627 = vmatpush1.bf16.msra.mxu0 0
        %1628 = vmatprep.subr.bf16.mxu0 0
        %1629 = vmatpush1.bf16.msra.mxu0 0
        %1630 = vmatprep.subr.bf16.mxu0 0
        %1631 = vmatpush1.bf16.msra.mxu0 %v1282
        %1632 = vmatprep.subr.bf16.mxu0 0
        %1633 = vmatpush2.bf16.msra.mxu0 0
        %1634 = vmatprep.subr.bf16.mxu0 0
        %1635 = vmatpush2.bf16.msra.mxu0 0
        %1636 = vmatprep.subr.bf16.mxu0 0
        %1637 = vmatpush2.bf16.msra.mxu0 0
        %1638 = vmatprep.subr.bf16.mxu0 0
        %1639 = vmatpush2.bf16.msra.mxu0 0
        %1640 = vmatprep.subr.bf16.mxu0 0
        %1641 = vmatpush2.bf16.msra.mxu0 0
        %1642 = vmatprep.subr.bf16.mxu0 0
        %1643 = vmatpush2.bf16.msra.mxu0 0
        %1644 = vmatprep.subr.bf16.mxu0 0
        %1645 = vmatpush2.bf16.msra.mxu0 0
        %1646 = vmatprep.subr.bf16.mxu0 0
        %1647 = vmatpush2.bf16.msra.mxu0 0
        %1648 = vmatprep.mubr.bf16.mxu0 0
        %1649 = vmatmul.mubr.bf16.gmra.mxu0 %v1614
        %v1650 = vpop.f32.mrf.mxu0
        %v1651 = vadd.f32 0.0, %v1650
        %v1652 = vpop.f32.mrf.mxu0
        %v1653 = vpop.f32.mrf.mxu0
        %v1654 = vadd.f32 0.0, %v1653
        %v1655 = vpop.f32.mrf.mxu0
        %1656 = vdwg.mxu0
        %v1658 = vsel %vm1476, %v1567, 0
        %1660 = vmatprep.subr.bf16.mxu0 0
        %1661 = vmatpush1.bf16.msra.mxu0 0
        %1662 = vmatprep.subr.bf16.mxu0 0
        %1663 = vmatpush1.bf16.msra.mxu0 0
        %1664 = vmatprep.subr.bf16.mxu0 0
        %1665 = vmatpush1.bf16.msra.mxu0 0
        %1666 = vmatprep.subr.bf16.mxu0 0
        %1667 = vmatpush1.bf16.msra.mxu0 0
        %1668 = vmatprep.subr.bf16.mxu0 0
        %1669 = vmatpush1.bf16.msra.mxu0 0
        %1670 = vmatprep.subr.bf16.mxu0 0
        %1671 = vmatpush1.bf16.msra.mxu0 0
        %1672 = vmatprep.subr.bf16.mxu0 0
        %1673 = vmatpush1.bf16.msra.mxu0 0
        %1674 = vmatprep.subr.bf16.mxu0 0
        %1675 = vmatpush1.bf16.msra.mxu0 %v1283
        %1676 = vmatprep.subr.bf16.mxu0 0
        %1677 = vmatpush2.bf16.msra.mxu0 0
        %1678 = vmatprep.subr.bf16.mxu0 0
        %1679 = vmatpush2.bf16.msra.mxu0 0
        %1680 = vmatprep.subr.bf16.mxu0 0
        %1681 = vmatpush2.bf16.msra.mxu0 0
        %1682 = vmatprep.subr.bf16.mxu0 0
        %1683 = vmatpush2.bf16.msra.mxu0 0
        %1684 = vmatprep.subr.bf16.mxu0 0
        %1685 = vmatpush2.bf16.msra.mxu0 0
        %1686 = vmatprep.subr.bf16.mxu0 0
        %1687 = vmatpush2.bf16.msra.mxu0 0
        %1688 = vmatprep.subr.bf16.mxu0 0
        %1689 = vmatpush2.bf16.msra.mxu0 0
        %1690 = vmatprep.subr.bf16.mxu0 0
        %1691 = vmatpush2.bf16.msra.mxu0 0
        %1692 = vmatprep.mubr.bf16.mxu0 0
        %1693 = vmatmul.mubr.bf16.gmra.mxu0 %v1658
        %v1694 = vpop.f32.mrf.mxu0
        %v1695 = vadd.f32 0.0, %v1694
        %v1696 = vpop.f32.mrf.mxu0
        %v1697 = vpop.f32.mrf.mxu0
        %v1698 = vadd.f32 0.0, %v1697
        %v1699 = vpop.f32.mrf.mxu0
        %1700 = vdwg.mxu0
        %v1702 = vsel %vm1476, %v1568, 0
        %1704 = vmatprep.subr.bf16.mxu0 0
        %1705 = vmatpush1.bf16.msra.mxu0 0
        %1706 = vmatprep.subr.bf16.mxu0 0
        %1707 = vmatpush1.bf16.msra.mxu0 0
        %1708 = vmatprep.subr.bf16.mxu0 0
        %1709 = vmatpush1.bf16.msra.mxu0 0
        %1710 = vmatprep.subr.bf16.mxu0 0
        %1711 = vmatpush1.bf16.msra.mxu0 0
        %1712 = vmatprep.subr.bf16.mxu0 0
        %1713 = vmatpush1.bf16.msra.mxu0 0
        %1714 = vmatprep.subr.bf16.mxu0 0
        %1715 = vmatpush1.bf16.msra.mxu0 0
        %1716 = vmatprep.subr.bf16.mxu0 0
        %1717 = vmatpush1.bf16.msra.mxu0 0
        %1718 = vmatprep.subr.bf16.mxu0 0
        %1719 = vmatpush1.bf16.msra.mxu0 %v1284
        %1720 = vmatprep.subr.bf16.mxu0 0
        %1721 = vmatpush2.bf16.msra.mxu0 0
        %1722 = vmatprep.subr.bf16.mxu0 0
        %1723 = vmatpush2.bf16.msra.mxu0 0
        %1724 = vmatprep.subr.bf16.mxu0 0
        %1725 = vmatpush2.bf16.msra.mxu0 0
        %1726 = vmatprep.subr.bf16.mxu0 0
        %1727 = vmatpush2.bf16.msra.mxu0 0
        %1728 = vmatprep.subr.bf16.mxu0 0
        %1729 = vmatpush2.bf16.msra.mxu0 0
        %1730 = vmatprep.subr.bf16.mxu0 0
        %1731 = vmatpush2.bf16.msra.mxu0 0
        %1732 = vmatprep.subr.bf16.mxu0 0
        %1733 = vmatpush2.bf16.msra.mxu0 0
        %1734 = vmatprep.subr.bf16.mxu0 0
        %1735 = vmatpush2.bf16.msra.mxu0 0
        %1736 = vmatprep.mubr.bf16.mxu0 0
        %1737 = vmatmul.mubr.bf16.gmra.mxu0 %v1702
        %v1738 = vpop.f32.mrf.mxu0
        %v1739 = vadd.f32 0.0, %v1738
        %v1740 = vpop.f32.mrf.mxu0
        %v1741 = vpop.f32.mrf.mxu0
        %v1742 = vadd.f32 0.0, %v1741
        %v1743 = vpop.f32.mrf.mxu0
        %1744 = vdwg.mxu0
        %1747 = vrot.lane.b32.xlu0 %v1651, 32
        %v1748 = vpop.permute.xlu0 %1747
        %1749 = vrot.lane.b32.xlu0 %v1654, 32
        %v1750 = vpop.permute.xlu0 %1749
        %1755 = vrot.lane.b32.xlu0 %v1695, 64
        %v1756 = vpop.permute.xlu0 %1755
        %1757 = vrot.lane.b32.xlu0 %v1698, 64
        %v1758 = vpop.permute.xlu0 %1757
        %1763 = vrot.lane.b32.xlu0 %v1739, 96
        %v1764 = vpop.permute.xlu0 %1763
        %1765 = vrot.lane.b32.xlu0 %v1742, 96
        %v1766 = vpop.permute.xlu0 %1765
        %v1769 = vsel %vm1287, %v1607, %v1748
        %v1770 = vsel %vm1287, %v1610, %v1750
        %vm1771 = vcmask 523264
        %v1772 = vsel %vm1771, %v1769, %v1756
        %v1773 = vsel %vm1771, %v1770, %v1758
        %vm1774 = vcmask 785408
        %v1775 = vsel %vm1774, %v1772, %v1764
        %v1776 = vsel %vm1774, %v1773, %v1766
        %v1777 = vpack.c.bf16 %v1776, %v1775
        %v1778 = vld [vmem:[%s696] sm:$0xf]
        %v1779 = vld [vmem:[%s696 + $0x4] sm:$0xf]
        %v1780 = vld [vmem:[%s696 + $0x8] sm:$0xf]
        %v1781 = vld [vmem:[%s696 + $0xc] sm:$0xf]
        %v1782 = vld [vmem:[%s696 + $0x10] sm:$0xf]
        %v1783 = vld [vmem:[%s696 + $0x14] sm:$0xf]
        %v1784 = vld [vmem:[%s696 + $0x18] sm:$0xf]
        %v1785 = vld [vmem:[%s696 + $0x1c] sm:$0xf]
        %v1786 = vld [vmem:[%s696 + $0x20] sm:$0xf]
        %v1787 = vld [vmem:[%s696 + $0x24] sm:$0xf]
        %v1788 = vld [vmem:[%s696 + $0x28] sm:$0xf]
        %v1789 = vld [vmem:[%s696 + $0x2c] sm:$0xf]
        %v1790 = vld [vmem:[%s696 + $0x30] sm:$0xf]
        %v1791 = vld [vmem:[%s696 + $0x34] sm:$0xf]
        %v1792 = vld [vmem:[%s696 + $0x38] sm:$0xf]
        %v1793 = vld [vmem:[%s696 + $0x3c] sm:$0xf]
        %v1794 = vld [vmem:[%s821] sm:$0x1]
        %v1796 = vlaneseq
        %v1797 = vshrl.u32 %v1796, 7
        %v1798 = vsub.s32 0, %v1797
        %v1799 = vrot.slane %v1794, %v1798
        %v1817 = vunpack.c.l.b16 %v1778
        %v1818 = vunpack.c.l.b16 %v1779
        %v1819 = vunpack.c.l.b16 %v1780
        %v1820 = vunpack.c.l.b16 %v1781
        %v1821 = vunpack.c.l.b16 %v1782
        %v1822 = vunpack.c.l.b16 %v1783
        %v1823 = vunpack.c.l.b16 %v1784
        %v1824 = vunpack.c.l.b16 %v1785
        %v1825 = vunpack.c.l.b16 %v1786
        %v1826 = vunpack.c.l.b16 %v1787
        %v1827 = vunpack.c.l.b16 %v1788
        %v1828 = vunpack.c.l.b16 %v1789
        %v1829 = vunpack.c.l.b16 %v1790
        %v1830 = vunpack.c.l.b16 %v1791
        %v1831 = vunpack.c.l.b16 %v1792
        %v1832 = vunpack.c.l.b16 %v1793
        %v1833 = vpack.c.b16 %v1818, %v1817
        %v1834 = vpack.c.b16 %v1820, %v1819
        %v1835 = vpack.c.b16 %v1822, %v1821
        %v1836 = vpack.c.b16 %v1824, %v1823
        %v1837 = vpack.c.b16 %v1826, %v1825
        %v1838 = vpack.c.b16 %v1828, %v1827
        %v1839 = vpack.c.b16 %v1830, %v1829
        %v1840 = vpack.c.b16 %v1832, %v1831
        %1849 = vmatprep.subr.bf16.mxu0 0
        %1850 = vmatpush1.bf16.msra.mxu0 %v1840
        %1851 = vmatprep.subr.bf16.mxu0 0
        %1852 = vmatpush1.bf16.msra.mxu0 %v1839
        %1853 = vmatprep.subr.bf16.mxu0 0
        %1854 = vmatpush1.bf16.msra.mxu0 %v1838
        %1855 = vmatprep.subr.bf16.mxu0 0
        %1856 = vmatpush1.bf16.msra.mxu0 %v1837
        %1857 = vmatprep.subr.bf16.mxu0 0
        %1858 = vmatpush1.bf16.msra.mxu0 %v1836
        %1859 = vmatprep.subr.bf16.mxu0 0
        %1860 = vmatpush1.bf16.msra.mxu0 %v1835
        %1861 = vmatprep.subr.bf16.mxu0 0
        %1862 = vmatpush1.bf16.msra.mxu0 %v1834
        %1863 = vmatprep.subr.bf16.mxu0 0
        %1864 = vmatpush1.bf16.msra.mxu0 %v1833
        %1865 = vmatprep.subr.bf16.mxu0 0
        %1866 = vmatpush2.bf16.msra.mxu0 0
        %1867 = vmatprep.subr.bf16.mxu0 0
        %1868 = vmatpush2.bf16.msra.mxu0 0
        %1869 = vmatprep.subr.bf16.mxu0 0
        %1870 = vmatpush2.bf16.msra.mxu0 0
        %1871 = vmatprep.subr.bf16.mxu0 0
        %1872 = vmatpush2.bf16.msra.mxu0 0
        %1873 = vmatprep.subr.bf16.mxu0 0
        %1874 = vmatpush2.bf16.msra.mxu0 0
        %1875 = vmatprep.subr.bf16.mxu0 0
        %1876 = vmatpush2.bf16.msra.mxu0 0
        %1877 = vmatprep.subr.bf16.mxu0 0
        %1878 = vmatpush2.bf16.msra.mxu0 0
        %1879 = vmatprep.subr.bf16.mxu0 0
        %1880 = vmatpush2.bf16.msra.mxu0 0
        %1881 = vmatprep.mubr.bf16.mxu0 0
        %1882 = vmatmul.mubr.bf16.gmra.mxu0 %v1777
        %v1883 = vpop.f32.mrf.mxu0
        %v1884 = vadd.f32 %v1799, %v1883
        %v1885 = vpop.f32.mrf.mxu0
        %v1886 = vpop.f32.mrf.mxu0
        %v1887 = vadd.f32 %v1799, %v1886
        %v1888 = vpop.f32.mrf.mxu0
        %1889 = vdwg.mxu0
        %v1890 = vadd.f32 %v949, %v1884
        %v1891 = vadd.f32 %v950, %v1887
        %v1892 = vld [vmem:[%s827] sm:$0x1]
        %v1893 = vld [vmem:[%s830] sm:$0x1]
        %1894 = vadd.xlane.f32.xlu0 %v1890
        %v1895 = vpop.xlane.xlu0 %1894
        %1896 = vadd.xlane.f32.xlu0 %v1891
        %v1897 = vpop.xlane.xlu0 %1896
        %v1898 = vrcp.pop 128.0
        %v1899 = vmul.f32 %v1895, %v1898
        %v1900 = vmul.f32 %v1897, %v1898
        %v1901 = vsub.f32 %v1890, %v1899
        %v1902 = vsub.f32 %v1891, %v1900
        %v1903 = vmul.f32 %v1901, %v1901
        %v1904 = vmul.f32 %v1902, %v1902
        %1905 = vadd.xlane.f32.xlu0 %v1903
        %v1906 = vpop.xlane.xlu0 %1905
        %1907 = vadd.xlane.f32.xlu0 %v1904
        %v1908 = vpop.xlane.xlu0 %1907
        %v1909 = vmul.f32 %v1906, %v1898
        %v1910 = vmul.f32 %v1908, %v1898
        %v1911 = vadd.f32 %v1909, 1e-05
        %v1912 = vadd.f32 %v1910, 1e-05
        %v1913 = vrsqrt.pop %v1911
        %v1914 = vrsqrt.pop %v1912
        %v1915 = vmul.f32 %v1901, %v1913
        %v1916 = vmul.f32 %v1902, %v1914
        %v1918 = vlaneseq
        %v1919 = vshrl.u32 %v1918, 7
        %v1920 = vsub.s32 0, %v1919
        %v1921 = vrot.slane %v1892, %v1920
        %v1923 = vmul.f32 %v1915, %v1921
        %v1924 = vmul.f32 %v1916, %v1921
        %v1926 = vlaneseq
        %v1927 = vshrl.u32 %v1926, 7
        %v1928 = vsub.s32 0, %v1927
        %v1929 = vrot.slane %v1893, %v1928
        %v1931 = vadd.f32 %v1923, %v1929
        %v1932 = vadd.f32 %v1924, %v1929
        %v1933 = vpack.c.bf16 %v1932, %v1931
        %v1934 = vld [vmem:[%s705] sm:$0xff]
        %v1935 = vld [vmem:[%s705 + $0x8] sm:$0xff]
        %v1936 = vld [vmem:[%s705 + $0x10] sm:$0xff]
        %v1937 = vld [vmem:[%s705 + $0x18] sm:$0xff]
        %v1938 = vld [vmem:[%s705 + $0x20] sm:$0xff]
        %v1939 = vld [vmem:[%s705 + $0x28] sm:$0xff]
        %v1940 = vld [vmem:[%s705 + $0x30] sm:$0xff]
        %v1941 = vld [vmem:[%s705 + $0x38] sm:$0xff]
        %v1942 = vld [vmem:[%s705 + $0x40] sm:$0xff]
        %v1943 = vld [vmem:[%s705 + $0x48] sm:$0xff]
        %v1944 = vld [vmem:[%s705 + $0x50] sm:$0xff]
        %v1945 = vld [vmem:[%s705 + $0x58] sm:$0xff]
        %v1946 = vld [vmem:[%s705 + $0x60] sm:$0xff]
        %v1947 = vld [vmem:[%s705 + $0x68] sm:$0xff]
        %v1948 = vld [vmem:[%s705 + $0x70] sm:$0xff]
        %v1949 = vld [vmem:[%s705 + $0x78] sm:$0xff]
        %v1950 = vld [vmem:[%s705 + $0x80] sm:$0xff]
        %v1951 = vld [vmem:[%s705 + $0x88] sm:$0xff]
        %v1952 = vld [vmem:[%s705 + $0x90] sm:$0xff]
        %v1953 = vld [vmem:[%s705 + $0x98] sm:$0xff]
        %v1954 = vld [vmem:[%s705 + $0xa0] sm:$0xff]
        %v1955 = vld [vmem:[%s705 + $0xa8] sm:$0xff]
        %v1956 = vld [vmem:[%s705 + $0xb0] sm:$0xff]
        %v1957 = vld [vmem:[%s705 + $0xb8] sm:$0xff]
        %v1958 = vld [vmem:[%s705 + $0xc0] sm:$0xff]
        %v1959 = vld [vmem:[%s705 + $0xc8] sm:$0xff]
        %v1960 = vld [vmem:[%s705 + $0xd0] sm:$0xff]
        %v1961 = vld [vmem:[%s705 + $0xd8] sm:$0xff]
        %v1962 = vld [vmem:[%s705 + $0xe0] sm:$0xff]
        %v1963 = vld [vmem:[%s705 + $0xe8] sm:$0xff]
        %v1964 = vld [vmem:[%s705 + $0xf0] sm:$0xff]
        %v1965 = vld [vmem:[%s705 + $0xf8] sm:$0xff]
        %v1966 = vld [vmem:[%s705 + $0x100] sm:$0xff]
        %v1967 = vld [vmem:[%s705 + $0x108] sm:$0xff]
        %v1968 = vld [vmem:[%s705 + $0x110] sm:$0xff]
        %v1969 = vld [vmem:[%s705 + $0x118] sm:$0xff]
        %v1970 = vld [vmem:[%s705 + $0x120] sm:$0xff]
        %v1971 = vld [vmem:[%s705 + $0x128] sm:$0xff]
        %v1972 = vld [vmem:[%s705 + $0x130] sm:$0xff]
        %v1973 = vld [vmem:[%s705 + $0x138] sm:$0xff]
        %v1974 = vld [vmem:[%s705 + $0x140] sm:$0xff]
        %v1975 = vld [vmem:[%s705 + $0x148] sm:$0xff]
        %v1976 = vld [vmem:[%s705 + $0x150] sm:$0xff]
        %v1977 = vld [vmem:[%s705 + $0x158] sm:$0xff]
        %v1978 = vld [vmem:[%s705 + $0x160] sm:$0xff]
        %v1979 = vld [vmem:[%s705 + $0x168] sm:$0xff]
        %v1980 = vld [vmem:[%s705 + $0x170] sm:$0xff]
        %v1981 = vld [vmem:[%s705 + $0x178] sm:$0xff]
        %v1982 = vld [vmem:[%s705 + $0x180] sm:$0xff]
        %v1983 = vld [vmem:[%s705 + $0x188] sm:$0xff]
        %v1984 = vld [vmem:[%s705 + $0x190] sm:$0xff]
        %v1985 = vld [vmem:[%s705 + $0x198] sm:$0xff]
        %v1986 = vld [vmem:[%s705 + $0x1a0] sm:$0xff]
        %v1987 = vld [vmem:[%s705 + $0x1a8] sm:$0xff]
        %v1988 = vld [vmem:[%s705 + $0x1b0] sm:$0xff]
        %v1989 = vld [vmem:[%s705 + $0x1b8] sm:$0xff]
        %v1990 = vld [vmem:[%s705 + $0x1c0] sm:$0xff]
        %v1991 = vld [vmem:[%s705 + $0x1c8] sm:$0xff]
        %v1992 = vld [vmem:[%s705 + $0x1d0] sm:$0xff]
        %v1993 = vld [vmem:[%s705 + $0x1d8] sm:$0xff]
        %v1994 = vld [vmem:[%s705 + $0x1e0] sm:$0xff]
        %v1995 = vld [vmem:[%s705 + $0x1e8] sm:$0xff]
        %v1996 = vld [vmem:[%s705 + $0x1f0] sm:$0xff]
        %v1997 = vld [vmem:[%s705 + $0x1f8] sm:$0xff]
        %v1998 = vld [vmem:[%s714] sm:$0xff]
        %v2000 = vlaneseq
        %v2001 = vshrl.u32 %v2000, 7
        %v2002 = vsub.s32 0, %v2001
        %v2003 = vrot.slane %v1998, %v2002
        %v2004 = vlaneseq
        %v2005 = vshrl.u32 %v2004, 7
        %v2006 = vsub.s32 1, %v2005
        %v2007 = vrot.slane %v1998, %v2006
        %v2008 = vlaneseq
        %v2009 = vshrl.u32 %v2008, 7
        %v2010 = vsub.s32 2, %v2009
        %v2011 = vrot.slane %v1998, %v2010
        %v2012 = vlaneseq
        %v2013 = vshrl.u32 %v2012, 7
        %v2014 = vsub.s32 3, %v2013
        %v2015 = vrot.slane %v1998, %v2014
        %v2016 = vlaneseq
        %v2017 = vshrl.u32 %v2016, 7
        %v2018 = vsub.s32 4, %v2017
        %v2019 = vrot.slane %v1998, %v2018
        %v2020 = vlaneseq
        %v2021 = vshrl.u32 %v2020, 7
        %v2022 = vsub.s32 5, %v2021
        %v2023 = vrot.slane %v1998, %v2022
        %v2024 = vlaneseq
        %v2025 = vshrl.u32 %v2024, 7
        %v2026 = vsub.s32 6, %v2025
        %v2027 = vrot.slane %v1998, %v2026
        %v2028 = vlaneseq
        %v2029 = vshrl.u32 %v2028, 7
        %v2030 = vsub.s32 7, %v2029
        %v2031 = vrot.slane %v1998, %v2030
        %v2104 = vunpack.c.l.b16 %v1934
        %v2105 = vunpack.c.h.b16 %v1934
        %v2106 = vunpack.c.l.b16 %v1935
        %v2107 = vunpack.c.h.b16 %v1935
        %v2108 = vunpack.c.l.b16 %v1936
        %v2109 = vunpack.c.h.b16 %v1936
        %v2110 = vunpack.c.l.b16 %v1937
        %v2111 = vunpack.c.h.b16 %v1937
        %v2112 = vunpack.c.l.b16 %v1938
        %v2113 = vunpack.c.h.b16 %v1938
        %v2114 = vunpack.c.l.b16 %v1939
        %v2115 = vunpack.c.h.b16 %v1939
        %v2116 = vunpack.c.l.b16 %v1940
        %v2117 = vunpack.c.h.b16 %v1940
        %v2118 = vunpack.c.l.b16 %v1941
        %v2119 = vunpack.c.h.b16 %v1941
        %v2120 = vunpack.c.l.b16 %v1942
        %v2121 = vunpack.c.h.b16 %v1942
        %v2122 = vunpack.c.l.b16 %v1943
        %v2123 = vunpack.c.h.b16 %v1943
        %v2124 = vunpack.c.l.b16 %v1944
        %v2125 = vunpack.c.h.b16 %v1944
        %v2126 = vunpack.c.l.b16 %v1945
        %v2127 = vunpack.c.h.b16 %v1945
        %v2128 = vunpack.c.l.b16 %v1946
        %v2129 = vunpack.c.h.b16 %v1946
        %v2130 = vunpack.c.l.b16 %v1947
        %v2131 = vunpack.c.h.b16 %v1947
        %v2132 = vunpack.c.l.b16 %v1948
        %v2133 = vunpack.c.h.b16 %v1948
        %v2134 = vunpack.c.l.b16 %v1949
        %v2135 = vunpack.c.h.b16 %v1949
        %v2136 = vunpack.c.l.b16 %v1950
        %v2137 = vunpack.c.h.b16 %v1950
        %v2138 = vunpack.c.l.b16 %v1951
        %v2139 = vunpack.c.h.b16 %v1951
        %v2140 = vunpack.c.l.b16 %v1952
        %v2141 = vunpack.c.h.b16 %v1952
        %v2142 = vunpack.c.l.b16 %v1953
        %v2143 = vunpack.c.h.b16 %v1953
        %v2144 = vunpack.c.l.b16 %v1954
        %v2145 = vunpack.c.h.b16 %v1954
        %v2146 = vunpack.c.l.b16 %v1955
        %v2147 = vunpack.c.h.b16 %v1955
        %v2148 = vunpack.c.l.b16 %v1956
        %v2149 = vunpack.c.h.b16 %v1956
        %v2150 = vunpack.c.l.b16 %v1957
        %v2151 = vunpack.c.h.b16 %v1957
        %v2152 = vunpack.c.l.b16 %v1958
        %v2153 = vunpack.c.h.b16 %v1958
        %v2154 = vunpack.c.l.b16 %v1959
        %v2155 = vunpack.c.h.b16 %v1959
        %v2156 = vunpack.c.l.b16 %v1960
        %v2157 = vunpack.c.h.b16 %v1960
        %v2158 = vunpack.c.l.b16 %v1961
        %v2159 = vunpack.c.h.b16 %v1961
        %v2160 = vunpack.c.l.b16 %v1962
        %v2161 = vunpack.c.h.b16 %v1962
        %v2162 = vunpack.c.l.b16 %v1963
        %v2163 = vunpack.c.h.b16 %v1963
        %v2164 = vunpack.c.l.b16 %v1964
        %v2165 = vunpack.c.h.b16 %v1964
        %v2166 = vunpack.c.l.b16 %v1965
        %v2167 = vunpack.c.h.b16 %v1965
        %v2168 = vunpack.c.l.b16 %v1966
        %v2169 = vunpack.c.h.b16 %v1966
        %v2170 = vunpack.c.l.b16 %v1967
        %v2171 = vunpack.c.h.b16 %v1967
        %v2172 = vunpack.c.l.b16 %v1968
        %v2173 = vunpack.c.h.b16 %v1968
        %v2174 = vunpack.c.l.b16 %v1969
        %v2175 = vunpack.c.h.b16 %v1969
        %v2176 = vunpack.c.l.b16 %v1970
        %v2177 = vunpack.c.h.b16 %v1970
        %v2178 = vunpack.c.l.b16 %v1971
        %v2179 = vunpack.c.h.b16 %v1971
        %v2180 = vunpack.c.l.b16 %v1972
        %v2181 = vunpack.c.h.b16 %v1972
        %v2182 = vunpack.c.l.b16 %v1973
        %v2183 = vunpack.c.h.b16 %v1973
        %v2184 = vunpack.c.l.b16 %v1974
        %v2185 = vunpack.c.h.b16 %v1974
        %v2186 = vunpack.c.l.b16 %v1975
        %v2187 = vunpack.c.h.b16 %v1975
        %v2188 = vunpack.c.l.b16 %v1976
        %v2189 = vunpack.c.h.b16 %v1976
        %v2190 = vunpack.c.l.b16 %v1977
        %v2191 = vunpack.c.h.b16 %v1977
        %v2192 = vunpack.c.l.b16 %v1978
        %v2193 = vunpack.c.h.b16 %v1978
        %v2194 = vunpack.c.l.b16 %v1979
        %v2195 = vunpack.c.h.b16 %v1979
        %v2196 = vunpack.c.l.b16 %v1980
        %v2197 = vunpack.c.h.b16 %v1980
        %v2198 = vunpack.c.l.b16 %v1981
        %v2199 = vunpack.c.h.b16 %v1981
        %v2200 = vunpack.c.l.b16 %v1982
        %v2201 = vunpack.c.h.b16 %v1982
        %v2202 = vunpack.c.l.b16 %v1983
        %v2203 = vunpack.c.h.b16 %v1983
        %v2204 = vunpack.c.l.b16 %v1984
        %v2205 = vunpack.c.h.b16 %v1984
        %v2206 = vunpack.c.l.b16 %v1985
        %v2207 = vunpack.c.h.b16 %v1985
        %v2208 = vunpack.c.l.b16 %v1986
        %v2209 = vunpack.c.h.b16 %v1986
        %v2210 = vunpack.c.l.b16 %v1987
        %v2211 = vunpack.c.h.b16 %v1987
        %v2212 = vunpack.c.l.b16 %v1988
        %v2213 = vunpack.c.h.b16 %v1988
        %v2214 = vunpack.c.l.b16 %v1989
        %v2215 = vunpack.c.h.b16 %v1989
        %v2216 = vunpack.c.l.b16 %v1990
        %v2217 = vunpack.c.h.b16 %v1990
        %v2218 = vunpack.c.l.b16 %v1991
        %v2219 = vunpack.c.h.b16 %v1991
        %v2220 = vunpack.c.l.b16 %v1992
        %v2221 = vunpack.c.h.b16 %v1992
        %v2222 = vunpack.c.l.b16 %v1993
        %v2223 = vunpack.c.h.b16 %v1993
        %v2224 = vunpack.c.l.b16 %v1994
        %v2225 = vunpack.c.h.b16 %v1994
        %v2226 = vunpack.c.l.b16 %v1995
        %v2227 = vunpack.c.h.b16 %v1995
        %v2228 = vunpack.c.l.b16 %v1996
        %v2229 = vunpack.c.h.b16 %v1996
        %v2230 = vunpack.c.l.b16 %v1997
        %v2231 = vunpack.c.h.b16 %v1997
        %v2232 = vpack.c.b16 %v2112, %v2104
        %v2233 = vpack.c.b16 %v2113, %v2105
        %v2234 = vpack.c.b16 %v2114, %v2106
        %v2235 = vpack.c.b16 %v2115, %v2107
        %v2236 = vpack.c.b16 %v2116, %v2108
        %v2237 = vpack.c.b16 %v2117, %v2109
        %v2238 = vpack.c.b16 %v2118, %v2110
        %v2239 = vpack.c.b16 %v2119, %v2111
        %v2240 = vpack.c.b16 %v2128, %v2120
        %v2241 = vpack.c.b16 %v2129, %v2121
        %v2242 = vpack.c.b16 %v2130, %v2122
        %v2243 = vpack.c.b16 %v2131, %v2123
        %v2244 = vpack.c.b16 %v2132, %v2124
        %v2245 = vpack.c.b16 %v2133, %v2125
        %v2246 = vpack.c.b16 %v2134, %v2126
        %v2247 = vpack.c.b16 %v2135, %v2127
        %v2248 = vpack.c.b16 %v2144, %v2136
        %v2249 = vpack.c.b16 %v2145, %v2137
        %v2250 = vpack.c.b16 %v2146, %v2138
        %v2251 = vpack.c.b16 %v2147, %v2139
        %v2252 = vpack.c.b16 %v2148, %v2140
        %v2253 = vpack.c.b16 %v2149, %v2141
        %v2254 = vpack.c.b16 %v2150, %v2142
        %v2255 = vpack.c.b16 %v2151, %v2143
        %v2256 = vpack.c.b16 %v2160, %v2152
        %v2257 = vpack.c.b16 %v2161, %v2153
        %v2258 = vpack.c.b16 %v2162, %v2154
        %v2259 = vpack.c.b16 %v2163, %v2155
        %v2260 = vpack.c.b16 %v2164, %v2156
        %v2261 = vpack.c.b16 %v2165, %v2157
        %v2262 = vpack.c.b16 %v2166, %v2158
        %v2263 = vpack.c.b16 %v2167, %v2159
        %v2264 = vpack.c.b16 %v2176, %v2168
        %v2265 = vpack.c.b16 %v2177, %v2169
        %v2266 = vpack.c.b16 %v2178, %v2170
        %v2267 = vpack.c.b16 %v2179, %v2171
        %v2268 = vpack.c.b16 %v2180, %v2172
        %v2269 = vpack.c.b16 %v2181, %v2173
        %v2270 = vpack.c.b16 %v2182, %v2174
        %v2271 = vpack.c.b16 %v2183, %v2175
        %v2272 = vpack.c.b16 %v2192, %v2184
        %v2273 = vpack.c.b16 %v2193, %v2185
        %v2274 = vpack.c.b16 %v2194, %v2186
        %v2275 = vpack.c.b16 %v2195, %v2187
        %v2276 = vpack.c.b16 %v2196, %v2188
        %v2277 = vpack.c.b16 %v2197, %v2189
        %v2278 = vpack.c.b16 %v2198, %v2190
        %v2279 = vpack.c.b16 %v2199, %v2191
        %v2280 = vpack.c.b16 %v2208, %v2200
        %v2281 = vpack.c.b16 %v2209, %v2201
        %v2282 = vpack.c.b16 %v2210, %v2202
        %v2283 = vpack.c.b16 %v2211, %v2203
        %v2284 = vpack.c.b16 %v2212, %v2204
        %v2285 = vpack.c.b16 %v2213, %v2205
        %v2286 = vpack.c.b16 %v2214, %v2206
        %v2287 = vpack.c.b16 %v2215, %v2207
        %v2288 = vpack.c.b16 %v2224, %v2216
        %v2289 = vpack.c.b16 %v2225, %v2217
        %v2290 = vpack.c.b16 %v2226, %v2218
        %v2291 = vpack.c.b16 %v2227, %v2219
        %v2292 = vpack.c.b16 %v2228, %v2220
        %v2293 = vpack.c.b16 %v2229, %v2221
        %v2294 = vpack.c.b16 %v2230, %v2222
        %v2295 = vpack.c.b16 %v2231, %v2223
        %2360 = vmatprep.subr.bf16.mxu0 %v2289
        %2361 = vmatpush1.bf16.msra.mxu0 %v2288
        %2362 = vmatprep.subr.bf16.mxu0 %v2281
        %2363 = vmatpush1.bf16.msra.mxu0 %v2280
        %2364 = vmatprep.subr.bf16.mxu0 %v2273
        %2365 = vmatpush1.bf16.msra.mxu0 %v2272
        %2366 = vmatprep.subr.bf16.mxu0 %v2265
        %2367 = vmatpush1.bf16.msra.mxu0 %v2264
        %2368 = vmatprep.subr.bf16.mxu0 %v2257
        %2369 = vmatpush1.bf16.msra.mxu0 %v2256
        %2370 = vmatprep.subr.bf16.mxu0 %v2249
        %2371 = vmatpush1.bf16.msra.mxu0 %v2248
        %2372 = vmatprep.subr.bf16.mxu0 %v2241
        %2373 = vmatpush1.bf16.msra.mxu0 %v2240
        %2374 = vmatprep.subr.bf16.mxu0 %v2233
        %2375 = vmatpush1.bf16.msra.mxu0 %v2232
        %2376 = vmatprep.subr.bf16.mxu0 0
        %2377 = vmatpush2.bf16.msra.mxu0 0
        %2378 = vmatprep.subr.bf16.mxu0 0
        %2379 = vmatpush2.bf16.msra.mxu0 0
        %2380 = vmatprep.subr.bf16.mxu0 0
        %2381 = vmatpush2.bf16.msra.mxu0 0
        %2382 = vmatprep.subr.bf16.mxu0 0
        %2383 = vmatpush2.bf16.msra.mxu0 0
        %2384 = vmatprep.subr.bf16.mxu0 0
        %2385 = vmatpush2.bf16.msra.mxu0 0
        %2386 = vmatprep.subr.bf16.mxu0 0
        %2387 = vmatpush2.bf16.msra.mxu0 0
        %2388 = vmatprep.subr.bf16.mxu0 0
        %2389 = vmatpush2.bf16.msra.mxu0 0
        %2390 = vmatprep.subr.bf16.mxu0 0
        %2391 = vmatpush2.bf16.msra.mxu0 0
        %2392 = vmatprep.mubr.bf16.mxu0 0
        %2393 = vmatmul.mubr.bf16.gmra.mxu0 %v1933
        %v2394 = vpop.f32.mrf.mxu0
        %v2395 = vadd.f32 %v2003, %v2394
        %v2396 = vpop.f32.mrf.mxu0
        %v2397 = vadd.f32 %v2007, %v2396
        %v2398 = vpop.f32.mrf.mxu0
        %v2399 = vadd.f32 %v2003, %v2398
        %v2400 = vpop.f32.mrf.mxu0
        %v2401 = vadd.f32 %v2007, %v2400
        %2402 = vdwg.mxu0
        %2403 = vmatprep.subr.bf16.mxu0 %v2291
        %2404 = vmatpush1.bf16.msra.mxu0 %v2290
        %2405 = vmatprep.subr.bf16.mxu0 %v2283
        %2406 = vmatpush1.bf16.msra.mxu0 %v2282
        %2407 = vmatprep.subr.bf16.mxu0 %v2275
        %2408 = vmatpush1.bf16.msra.mxu0 %v2274
        %2409 = vmatprep.subr.bf16.mxu0 %v2267
        %2410 = vmatpush1.bf16.msra.mxu0 %v2266
        %2411 = vmatprep.subr.bf16.mxu0 %v2259
        %2412 = vmatpush1.bf16.msra.mxu0 %v2258
        %2413 = vmatprep.subr.bf16.mxu0 %v2251
        %2414 = vmatpush1.bf16.msra.mxu0 %v2250
        %2415 = vmatprep.subr.bf16.mxu0 %v2243
        %2416 = vmatpush1.bf16.msra.mxu0 %v2242
        %2417 = vmatprep.subr.bf16.mxu0 %v2235
        %2418 = vmatpush1.bf16.msra.mxu0 %v2234
        %2419 = vmatprep.subr.bf16.mxu0 0
        %2420 = vmatpush2.bf16.msra.mxu0 0
        %2421 = vmatprep.subr.bf16.mxu0 0
        %2422 = vmatpush2.bf16.msra.mxu0 0
        %2423 = vmatprep.subr.bf16.mxu0 0
        %2424 = vmatpush2.bf16.msra.mxu0 0
        %2425 = vmatprep.subr.bf16.mxu0 0
        %2426 = vmatpush2.bf16.msra.mxu0 0
        %2427 = vmatprep.subr.bf16.mxu0 0
        %2428 = vmatpush2.bf16.msra.mxu0 0
        %2429 = vmatprep.subr.bf16.mxu0 0
        %2430 = vmatpush2.bf16.msra.mxu0 0
        %2431 = vmatprep.subr.bf16.mxu0 0
        %2432 = vmatpush2.bf16.msra.mxu0 0
        %2433 = vmatprep.subr.bf16.mxu0 0
        %2434 = vmatpush2.bf16.msra.mxu0 0
        %2435 = vmatprep.mubr.bf16.mxu0 0
        %2436 = vmatmul.mubr.bf16.gmra.mxu0 %v1933
        %v2437 = vpop.f32.mrf.mxu0
        %v2438 = vadd.f32 %v2011, %v2437
        %v2439 = vpop.f32.mrf.mxu0
        %v2440 = vadd.f32 %v2015, %v2439
        %v2441 = vpop.f32.mrf.mxu0
        %v2442 = vadd.f32 %v2011, %v2441
        %v2443 = vpop.f32.mrf.mxu0
        %v2444 = vadd.f32 %v2015, %v2443
        %2445 = vdwg.mxu0
        %2446 = vmatprep.subr.bf16.mxu0 %v2293
        %2447 = vmatpush1.bf16.msra.mxu0 %v2292
        %2448 = vmatprep.subr.bf16.mxu0 %v2285
        %2449 = vmatpush1.bf16.msra.mxu0 %v2284
        %2450 = vmatprep.subr.bf16.mxu0 %v2277
        %2451 = vmatpush1.bf16.msra.mxu0 %v2276
        %2452 = vmatprep.subr.bf16.mxu0 %v2269
        %2453 = vmatpush1.bf16.msra.mxu0 %v2268
        %2454 = vmatprep.subr.bf16.mxu0 %v2261
        %2455 = vmatpush1.bf16.msra.mxu0 %v2260
        %2456 = vmatprep.subr.bf16.mxu0 %v2253
        %2457 = vmatpush1.bf16.msra.mxu0 %v2252
        %2458 = vmatprep.subr.bf16.mxu0 %v2245
        %2459 = vmatpush1.bf16.msra.mxu0 %v2244
        %2460 = vmatprep.subr.bf16.mxu0 %v2237
        %2461 = vmatpush1.bf16.msra.mxu0 %v2236
        %2462 = vmatprep.subr.bf16.mxu0 0
        %2463 = vmatpush2.bf16.msra.mxu0 0
        %2464 = vmatprep.subr.bf16.mxu0 0
        %2465 = vmatpush2.bf16.msra.mxu0 0
        %2466 = vmatprep.subr.bf16.mxu0 0
        %2467 = vmatpush2.bf16.msra.mxu0 0
        %2468 = vmatprep.subr.bf16.mxu0 0
        %2469 = vmatpush2.bf16.msra.mxu0 0
        %2470 = vmatprep.subr.bf16.mxu0 0
        %2471 = vmatpush2.bf16.msra.mxu0 0
        %2472 = vmatprep.subr.bf16.mxu0 0
        %2473 = vmatpush2.bf16.msra.mxu0 0
        %2474 = vmatprep.subr.bf16.mxu0 0
        %2475 = vmatpush2.bf16.msra.mxu0 0
        %2476 = vmatprep.subr.bf16.mxu0 0
        %2477 = vmatpush2.bf16.msra.mxu0 0
        %2478 = vmatprep.mubr.bf16.mxu0 0
        %2479 = vmatmul.mubr.bf16.gmra.mxu0 %v1933
        %v2480 = vpop.f32.mrf.mxu0
        %v2481 = vadd.f32 %v2019, %v2480
        %v2482 = vpop.f32.mrf.mxu0
        %v2483 = vadd.f32 %v2023, %v2482
        %v2484 = vpop.f32.mrf.mxu0
        %v2485 = vadd.f32 %v2019, %v2484
        %v2486 = vpop.f32.mrf.mxu0
        %v2487 = vadd.f32 %v2023, %v2486
        %2488 = vdwg.mxu0
        %2489 = vmatprep.subr.bf16.mxu0 %v2295
        %2490 = vmatpush1.bf16.msra.mxu0 %v2294
        %2491 = vmatprep.subr.bf16.mxu0 %v2287
        %2492 = vmatpush1.bf16.msra.mxu0 %v2286
        %2493 = vmatprep.subr.bf16.mxu0 %v2279
        %2494 = vmatpush1.bf16.msra.mxu0 %v2278
        %2495 = vmatprep.subr.bf16.mxu0 %v2271
        %2496 = vmatpush1.bf16.msra.mxu0 %v2270
        %2497 = vmatprep.subr.bf16.mxu0 %v2263
        %2498 = vmatpush1.bf16.msra.mxu0 %v2262
        %2499 = vmatprep.subr.bf16.mxu0 %v2255
        %2500 = vmatpush1.bf16.msra.mxu0 %v2254
        %2501 = vmatprep.subr.bf16.mxu0 %v2247
        %2502 = vmatpush1.bf16.msra.mxu0 %v2246
        %2503 = vmatprep.subr.bf16.mxu0 %v2239
        %2504 = vmatpush1.bf16.msra.mxu0 %v2238
        %2505 = vmatprep.subr.bf16.mxu0 0
        %2506 = vmatpush2.bf16.msra.mxu0 0
        %2507 = vmatprep.subr.bf16.mxu0 0
        %2508 = vmatpush2.bf16.msra.mxu0 0
        %2509 = vmatprep.subr.bf16.mxu0 0
        %2510 = vmatpush2.bf16.msra.mxu0 0
        %2511 = vmatprep.subr.bf16.mxu0 0
        %2512 = vmatpush2.bf16.msra.mxu0 0
        %2513 = vmatprep.subr.bf16.mxu0 0
        %2514 = vmatpush2.bf16.msra.mxu0 0
        %2515 = vmatprep.subr.bf16.mxu0 0
        %2516 = vmatpush2.bf16.msra.mxu0 0
        %2517 = vmatprep.subr.bf16.mxu0 0
        %2518 = vmatpush2.bf16.msra.mxu0 0
        %2519 = vmatprep.subr.bf16.mxu0 0
        %2520 = vmatpush2.bf16.msra.mxu0 0
        %2521 = vmatprep.mubr.bf16.mxu0 0
        %2522 = vmatmul.mubr.bf16.gmra.mxu0 %v1933
        %v2523 = vpop.f32.mrf.mxu0
        %v2524 = vadd.f32 %v2027, %v2523
        %v2525 = vpop.f32.mrf.mxu0
        %v2526 = vadd.f32 %v2031, %v2525
        %v2527 = vpop.f32.mrf.mxu0
        %v2528 = vadd.f32 %v2027, %v2527
        %v2529 = vpop.f32.mrf.mxu0
        %v2530 = vadd.f32 %v2031, %v2529
        %2531 = vdwg.mxu0
        %v2532 = vmul.f32 %v2395, 0.5
        %v2533 = vmul.f32 %v2397, 0.5
        %v2534 = vmul.f32 %v2438, 0.5
        %v2535 = vmul.f32 %v2440, 0.5
        %v2536 = vmul.f32 %v2481, 0.5
        %v2537 = vmul.f32 %v2483, 0.5
        %v2538 = vmul.f32 %v2524, 0.5
        %v2539 = vmul.f32 %v2526, 0.5
        %v2540 = vmul.f32 %v2399, 0.5
        %v2541 = vmul.f32 %v2401, 0.5
        %v2542 = vmul.f32 %v2442, 0.5
        %v2543 = vmul.f32 %v2444, 0.5
        %v2544 = vmul.f32 %v2485, 0.5
        %v2545 = vmul.f32 %v2487, 0.5
        %v2546 = vmul.f32 %v2528, 0.5
        %v2547 = vmul.f32 %v2530, 0.5
        %v2548 = vmul.f32 %v2395, 0.70710677
        %v2549 = vmul.f32 %v2397, 0.70710677
        %v2550 = vmul.f32 %v2438, 0.70710677
        %v2551 = vmul.f32 %v2440, 0.70710677
        %v2552 = vmul.f32 %v2481, 0.70710677
        %v2553 = vmul.f32 %v2483, 0.70710677
        %v2554 = vmul.f32 %v2524, 0.70710677
        %v2555 = vmul.f32 %v2526, 0.70710677
        %v2556 = vmul.f32 %v2399, 0.70710677
        %v2557 = vmul.f32 %v2401, 0.70710677
        %v2558 = vmul.f32 %v2442, 0.70710677
        %v2559 = vmul.f32 %v2444, 0.70710677
        %v2560 = vmul.f32 %v2485, 0.70710677
        %v2561 = vmul.f32 %v2487, 0.70710677
        %v2562 = vmul.f32 %v2528, 0.70710677
        %v2563 = vmul.f32 %v2530, 0.70710677
        %v2564 = vand.u32 2147483647, %v2548
        %v2565 = vand.u32 2147483647, %v2549
        %v2566 = vand.u32 2147483647, %v2550
        %v2567 = vand.u32 2147483647, %v2551
        %v2568 = vand.u32 2147483647, %v2552
        %v2569 = vand.u32 2147483647, %v2553
        %v2570 = vand.u32 2147483647, %v2554
        %v2571 = vand.u32 2147483647, %v2555
        %v2572 = vand.u32 2147483647, %v2556
        %v2573 = vand.u32 2147483647, %v2557
        %v2574 = vand.u32 2147483647, %v2558
        %v2575 = vand.u32 2147483647, %v2559
        %v2576 = vand.u32 2147483647, %v2560
        %v2577 = vand.u32 2147483647, %v2561
        %v2578 = vand.u32 2147483647, %v2562
        %v2579 = vand.u32 2147483647, %v2563
        %v2580 = vmul.f32 %v2564, 0.3275911
        %v2581 = vmul.f32 %v2565, 0.3275911
        %v2582 = vmul.f32 %v2566, 0.3275911
        %v2583 = vmul.f32 %v2567, 0.3275911
        %v2584 = vmul.f32 %v2568, 0.3275911
        %v2585 = vmul.f32 %v2569, 0.3275911
        %v2586 = vmul.f32 %v2570, 0.3275911
        %v2587 = vmul.f32 %v2571, 0.3275911
        %v2588 = vmul.f32 %v2572, 0.3275911
        %v2589 = vmul.f32 %v2573, 0.3275911
        %v2590 = vmul.f32 %v2574, 0.3275911
        %v2591 = vmul.f32 %v2575, 0.3275911
        %v2592 = vmul.f32 %v2576, 0.3275911
        %v2593 = vmul.f32 %v2577, 0.3275911
        %v2594 = vmul.f32 %v2578, 0.3275911
        %v2595 = vmul.f32 %v2579, 0.3275911
        %v2596 = vadd.f32 %v2580, 1.0
        %v2597 = vadd.f32 %v2581, 1.0
        %v2598 = vadd.f32 %v2582, 1.0
        %v2599 = vadd.f32 %v2583, 1.0
        %v2600 = vadd.f32 %v2584, 1.0
        %v2601 = vadd.f32 %v2585, 1.0
        %v2602 = vadd.f32 %v2586, 1.0
        %v2603 = vadd.f32 %v2587, 1.0
        %v2604 = vadd.f32 %v2588, 1.0
        %v2605 = vadd.f32 %v2589, 1.0
        %v2606 = vadd.f32 %v2590, 1.0
        %v2607 = vadd.f32 %v2591, 1.0
        %v2608 = vadd.f32 %v2592, 1.0
        %v2609 = vadd.f32 %v2593, 1.0
        %v2610 = vadd.f32 %v2594, 1.0
        %v2611 = vadd.f32 %v2595, 1.0
        %v2612 = vrcp.pop %v2596
        %v2613 = vmul.f32 1.0, %v2612
        %v2614 = vrcp.pop %v2597
        %v2615 = vmul.f32 1.0, %v2614
        %v2616 = vrcp.pop %v2598
        %v2617 = vmul.f32 1.0, %v2616
        %v2618 = vrcp.pop %v2599
        %v2619 = vmul.f32 1.0, %v2618
        %v2620 = vrcp.pop %v2600
        %v2621 = vmul.f32 1.0, %v2620
        %v2622 = vrcp.pop %v2601
        %v2623 = vmul.f32 1.0, %v2622
        %v2624 = vrcp.pop %v2602
        %v2625 = vmul.f32 1.0, %v2624
        %v2626 = vrcp.pop %v2603
        %v2627 = vmul.f32 1.0, %v2626
        %v2628 = vrcp.pop %v2604
        %v2629 = vmul.f32 1.0, %v2628
        %v2630 = vrcp.pop %v2605
        %v2631 = vmul.f32 1.0, %v2630
        %v2632 = vrcp.pop %v2606
        %v2633 = vmul.f32 1.0, %v2632
        %v2634 = vrcp.pop %v2607
        %v2635 = vmul.f32 1.0, %v2634
        %v2636 = vrcp.pop %v2608
        %v2637 = vmul.f32 1.0, %v2636
        %v2638 = vrcp.pop %v2609
        %v2639 = vmul.f32 1.0, %v2638
        %v2640 = vrcp.pop %v2610
        %v2641 = vmul.f32 1.0, %v2640
        %v2642 = vrcp.pop %v2611
        %v2643 = vmul.f32 1.0, %v2642
        %v2644 = vmul.f32 %v2613, 1.0614054
        %v2645 = vmul.f32 %v2615, 1.0614054
        %v2646 = vmul.f32 %v2617, 1.0614054
        %v2647 = vmul.f32 %v2619, 1.0614054
        %v2648 = vmul.f32 %v2621, 1.0614054
        %v2649 = vmul.f32 %v2623, 1.0614054
        %v2650 = vmul.f32 %v2625, 1.0614054
        %v2651 = vmul.f32 %v2627, 1.0614054
        %v2652 = vmul.f32 %v2629, 1.0614054
        %v2653 = vmul.f32 %v2631, 1.0614054
        %v2654 = vmul.f32 %v2633, 1.0614054
        %v2655 = vmul.f32 %v2635, 1.0614054
        %v2656 = vmul.f32 %v2637, 1.0614054
        %v2657 = vmul.f32 %v2639, 1.0614054
        %v2658 = vmul.f32 %v2641, 1.0614054
        %v2659 = vmul.f32 %v2643, 1.0614054
        %v2660 = vadd.f32 %v2644, -1.4531521
        %v2661 = vadd.f32 %v2645, -1.4531521
        %v2662 = vadd.f32 %v2646, -1.4531521
        %v2663 = vadd.f32 %v2647, -1.4531521
        %v2664 = vadd.f32 %v2648, -1.4531521
        %v2665 = vadd.f32 %v2649, -1.4531521
        %v2666 = vadd.f32 %v2650, -1.4531521
        %v2667 = vadd.f32 %v2651, -1.4531521
        %v2668 = vadd.f32 %v2652, -1.4531521
        %v2669 = vadd.f32 %v2653, -1.4531521
        %v2670 = vadd.f32 %v2654, -1.4531521
        %v2671 = vadd.f32 %v2655, -1.4531521
        %v2672 = vadd.f32 %v2656, -1.4531521
        %v2673 = vadd.f32 %v2657, -1.4531521
        %v2674 = vadd.f32 %v2658, -1.4531521
        %v2675 = vadd.f32 %v2659, -1.4531521
        %v2676 = vmul.f32 %v2660, %v2613
        %v2677 = vmul.f32 %v2661, %v2615
        %v2678 = vmul.f32 %v2662, %v2617
        %v2679 = vmul.f32 %v2663, %v2619
        %v2680 = vmul.f32 %v2664, %v2621
        %v2681 = vmul.f32 %v2665, %v2623
        %v2682 = vmul.f32 %v2666, %v2625
        %v2683 = vmul.f32 %v2667, %v2627
        %v2684 = vmul.f32 %v2668, %v2629
        %v2685 = vmul.f32 %v2669, %v2631
        %v2686 = vmul.f32 %v2670, %v2633
        %v2687 = vmul.f32 %v2671, %v2635
        %v2688 = vmul.f32 %v2672, %v2637
        %v2689 = vmul.f32 %v2673, %v2639
        %v2690 = vmul.f32 %v2674, %v2641
        %v2691 = vmul.f32 %v2675, %v2643
        %v2692 = vadd.f32 %v2676, 1.4214138
        %v2693 = vadd.f32 %v2677, 1.4214138
        %v2694 = vadd.f32 %v2678, 1.4214138
        %v2695 = vadd.f32 %v2679, 1.4214138
        %v2696 = vadd.f32 %v2680, 1.4214138
        %v2697 = vadd.f32 %v2681, 1.4214138
        %v2698 = vadd.f32 %v2682, 1.4214138
        %v2699 = vadd.f32 %v2683, 1.4214138
        %v2700 = vadd.f32 %v2684, 1.4214138
        %v2701 = vadd.f32 %v2685, 1.4214138
        %v2702 = vadd.f32 %v2686, 1.4214138
        %v2703 = vadd.f32 %v2687, 1.4214138
        %v2704 = vadd.f32 %v2688, 1.4214138
        %v2705 = vadd.f32 %v2689, 1.4214138
        %v2706 = vadd.f32 %v2690, 1.4214138
        %v2707 = vadd.f32 %v2691, 1.4214138
        %v2708 = vmul.f32 %v2692, %v2613
        %v2709 = vmul.f32 %v2693, %v2615
        %v2710 = vmul.f32 %v2694, %v2617
        %v2711 = vmul.f32 %v2695, %v2619
        %v2712 = vmul.f32 %v2696, %v2621
        %v2713 = vmul.f32 %v2697, %v2623
        %v2714 = vmul.f32 %v2698, %v2625
        %v2715 = vmul.f32 %v2699, %v2627
        %v2716 = vmul.f32 %v2700, %v2629
        %v2717 = vmul.f32 %v2701, %v2631
        %v2718 = vmul.f32 %v2702, %v2633
        %v2719 = vmul.f32 %v2703, %v2635
        %v2720 = vmul.f32 %v2704, %v2637
        %v2721 = vmul.f32 %v2705, %v2639
        %v2722 = vmul.f32 %v2706, %v2641
        %v2723 = vmul.f32 %v2707, %v2643
        %v2724 = vadd.f32 %v2708, -0.28449672
        %v2725 = vadd.f32 %v2709, -0.28449672
        %v2726 = vadd.f32 %v2710, -0.28449672
        %v2727 = vadd.f32 %v2711, -0.28449672
        %v2728 = vadd.f32 %v2712, -0.28449672
        %v2729 = vadd.f32 %v2713, -0.28449672
        %v2730 = vadd.f32 %v2714, -0.28449672
        %v2731 = vadd.f32 %v2715, -0.28449672
        %v2732 = vadd.f32 %v2716, -0.28449672
        %v2733 = vadd.f32 %v2717, -0.28449672
        %v2734 = vadd.f32 %v2718, -0.28449672
        %v2735 = vadd.f32 %v2719, -0.28449672
        %v2736 = vadd.f32 %v2720, -0.28449672
        %v2737 = vadd.f32 %v2721, -0.28449672
        %v2738 = vadd.f32 %v2722, -0.28449672
        %v2739 = vadd.f32 %v2723, -0.28449672
        %v2740 = vmul.f32 %v2724, %v2613
        %v2741 = vmul.f32 %v2725, %v2615
        %v2742 = vmul.f32 %v2726, %v2617
        %v2743 = vmul.f32 %v2727, %v2619
        %v2744 = vmul.f32 %v2728, %v2621
        %v2745 = vmul.f32 %v2729, %v2623
        %v2746 = vmul.f32 %v2730, %v2625
        %v2747 = vmul.f32 %v2731, %v2627
        %v2748 = vmul.f32 %v2732, %v2629
        %v2749 = vmul.f32 %v2733, %v2631
        %v2750 = vmul.f32 %v2734, %v2633
        %v2751 = vmul.f32 %v2735, %v2635
        %v2752 = vmul.f32 %v2736, %v2637
        %v2753 = vmul.f32 %v2737, %v2639
        %v2754 = vmul.f32 %v2738, %v2641
        %v2755 = vmul.f32 %v2739, %v2643
        %v2756 = vadd.f32 %v2740, 0.2548296
        %v2757 = vadd.f32 %v2741, 0.2548296
        %v2758 = vadd.f32 %v2742, 0.2548296
        %v2759 = vadd.f32 %v2743, 0.2548296
        %v2760 = vadd.f32 %v2744, 0.2548296
        %v2761 = vadd.f32 %v2745, 0.2548296
        %v2762 = vadd.f32 %v2746, 0.2548296
        %v2763 = vadd.f32 %v2747, 0.2548296
        %v2764 = vadd.f32 %v2748, 0.2548296
        %v2765 = vadd.f32 %v2749, 0.2548296
        %v2766 = vadd.f32 %v2750, 0.2548296
        %v2767 = vadd.f32 %v2751, 0.2548296
        %v2768 = vadd.f32 %v2752, 0.2548296
        %v2769 = vadd.f32 %v2753, 0.2548296
        %v2770 = vadd.f32 %v2754, 0.2548296
        %v2771 = vadd.f32 %v2755, 0.2548296
        %v2772 = vmul.f32 %v2756, %v2613
        %v2773 = vmul.f32 %v2757, %v2615
        %v2774 = vmul.f32 %v2758, %v2617
        %v2775 = vmul.f32 %v2759, %v2619
        %v2776 = vmul.f32 %v2760, %v2621
        %v2777 = vmul.f32 %v2761, %v2623
        %v2778 = vmul.f32 %v2762, %v2625
        %v2779 = vmul.f32 %v2763, %v2627
        %v2780 = vmul.f32 %v2764, %v2629
        %v2781 = vmul.f32 %v2765, %v2631
        %v2782 = vmul.f32 %v2766, %v2633
        %v2783 = vmul.f32 %v2767, %v2635
        %v2784 = vmul.f32 %v2768, %v2637
        %v2785 = vmul.f32 %v2769, %v2639
        %v2786 = vmul.f32 %v2770, %v2641
        %v2787 = vmul.f32 %v2771, %v2643
        %v2788 = vsub.f32 0.0, %v2564
        %v2789 = vsub.f32 0.0, %v2565
        %v2790 = vsub.f32 0.0, %v2566
        %v2791 = vsub.f32 0.0, %v2567
        %v2792 = vsub.f32 0.0, %v2568
        %v2793 = vsub.f32 0.0, %v2569
        %v2794 = vsub.f32 0.0, %v2570
        %v2795 = vsub.f32 0.0, %v2571
        %v2796 = vsub.f32 0.0, %v2572
        %v2797 = vsub.f32 0.0, %v2573
        %v2798 = vsub.f32 0.0, %v2574
        %v2799 = vsub.f32 0.0, %v2575
        %v2800 = vsub.f32 0.0, %v2576
        %v2801 = vsub.f32 0.0, %v2577
        %v2802 = vsub.f32 0.0, %v2578
        %v2803 = vsub.f32 0.0, %v2579
        %v2804 = vmul.f32 %v2788, %v2564
        %v2805 = vmul.f32 %v2789, %v2565
        %v2806 = vmul.f32 %v2790, %v2566
        %v2807 = vmul.f32 %v2791, %v2567
        %v2808 = vmul.f32 %v2792, %v2568
        %v2809 = vmul.f32 %v2793, %v2569
        %v2810 = vmul.f32 %v2794, %v2570
        %v2811 = vmul.f32 %v2795, %v2571
        %v2812 = vmul.f32 %v2796, %v2572
        %v2813 = vmul.f32 %v2797, %v2573
        %v2814 = vmul.f32 %v2798, %v2574
        %v2815 = vmul.f32 %v2799, %v2575
        %v2816 = vmul.f32 %v2800, %v2576
        %v2817 = vmul.f32 %v2801, %v2577
        %v2818 = vmul.f32 %v2802, %v2578
        %v2819 = vmul.f32 %v2803, %v2579
        %v2820 = vmul.f32 %v2804, 1.442695
        %v2821 = vpow.pop %v2820
        %v2822 = vmul.f32 %v2805, 1.442695
        %v2823 = vpow.pop %v2822
        %v2824 = vmul.f32 %v2806, 1.442695
        %v2825 = vpow.pop %v2824
        %v2826 = vmul.f32 %v2807, 1.442695
        %v2827 = vpow.pop %v2826
        %v2828 = vmul.f32 %v2808, 1.442695
        %v2829 = vpow.pop %v2828
        %v2830 = vmul.f32 %v2809, 1.442695
        %v2831 = vpow.pop %v2830
        %v2832 = vmul.f32 %v2810, 1.442695
        %v2833 = vpow.pop %v2832
        %v2834 = vmul.f32 %v2811, 1.442695
        %v2835 = vpow.pop %v2834
        %v2836 = vmul.f32 %v2812, 1.442695
        %v2837 = vpow.pop %v2836
        %v2838 = vmul.f32 %v2813, 1.442695
        %v2839 = vpow.pop %v2838
        %v2840 = vmul.f32 %v2814, 1.442695
        %v2841 = vpow.pop %v2840
        %v2842 = vmul.f32 %v2815, 1.442695
        %v2843 = vpow.pop %v2842
        %v2844 = vmul.f32 %v2816, 1.442695
        %v2845 = vpow.pop %v2844
        %v2846 = vmul.f32 %v2817, 1.442695
        %v2847 = vpow.pop %v2846
        %v2848 = vmul.f32 %v2818, 1.442695
        %v2849 = vpow.pop %v2848
        %v2850 = vmul.f32 %v2819, 1.442695
        %v2851 = vpow.pop %v2850
        %v2852 = vmul.f32 %v2772, %v2821
        %v2853 = vmul.f32 %v2773, %v2823
        %v2854 = vmul.f32 %v2774, %v2825
        %v2855 = vmul.f32 %v2775, %v2827
        %v2856 = vmul.f32 %v2776, %v2829
        %v2857 = vmul.f32 %v2777, %v2831
        %v2858 = vmul.f32 %v2778, %v2833
        %v2859 = vmul.f32 %v2779, %v2835
        %v2860 = vmul.f32 %v2780, %v2837
        %v2861 = vmul.f32 %v2781, %v2839
        %v2862 = vmul.f32 %v2782, %v2841
        %v2863 = vmul.f32 %v2783, %v2843
        %v2864 = vmul.f32 %v2784, %v2845
        %v2865 = vmul.f32 %v2785, %v2847
        %v2866 = vmul.f32 %v2786, %v2849
        %v2867 = vmul.f32 %v2787, %v2851
        %v2868 = vsub.f32 1.0, %v2852
        %v2869 = vsub.f32 1.0, %v2853
        %v2870 = vsub.f32 1.0, %v2854
        %v2871 = vsub.f32 1.0, %v2855
        %v2872 = vsub.f32 1.0, %v2856
        %v2873 = vsub.f32 1.0, %v2857
        %v2874 = vsub.f32 1.0, %v2858
        %v2875 = vsub.f32 1.0, %v2859
        %v2876 = vsub.f32 1.0, %v2860
        %v2877 = vsub.f32 1.0, %v2861
        %v2878 = vsub.f32 1.0, %v2862
        %v2879 = vsub.f32 1.0, %v2863
        %v2880 = vsub.f32 1.0, %v2864
        %v2881 = vsub.f32 1.0, %v2865
        %v2882 = vsub.f32 1.0, %v2866
        %v2883 = vsub.f32 1.0, %v2867
        %vm2884 = vcmp.ge.f32.partialorder %v2548, 0.0
        %vm2885 = vcmp.ge.f32.partialorder %v2549, 0.0
        %vm2886 = vcmp.ge.f32.partialorder %v2550, 0.0
        %vm2887 = vcmp.ge.f32.partialorder %v2551, 0.0
        %vm2888 = vcmp.ge.f32.partialorder %v2552, 0.0
        %vm2889 = vcmp.ge.f32.partialorder %v2553, 0.0
        %vm2890 = vcmp.ge.f32.partialorder %v2554, 0.0
        %vm2891 = vcmp.ge.f32.partialorder %v2555, 0.0
        %vm2892 = vcmp.ge.f32.partialorder %v2556, 0.0
        %vm2893 = vcmp.ge.f32.partialorder %v2557, 0.0
        %vm2894 = vcmp.ge.f32.partialorder %v2558, 0.0
        %vm2895 = vcmp.ge.f32.partialorder %v2559, 0.0
        %vm2896 = vcmp.ge.f32.partialorder %v2560, 0.0
        %vm2897 = vcmp.ge.f32.partialorder %v2561, 0.0
        %vm2898 = vcmp.ge.f32.partialorder %v2562, 0.0
        %vm2899 = vcmp.ge.f32.partialorder %v2563, 0.0
        %v2900 = vsub.f32 0.0, %v2868
        %v2901 = vsub.f32 0.0, %v2869
        %v2902 = vsub.f32 0.0, %v2870
        %v2903 = vsub.f32 0.0, %v2871
        %v2904 = vsub.f32 0.0, %v2872
        %v2905 = vsub.f32 0.0, %v2873
        %v2906 = vsub.f32 0.0, %v2874
        %v2907 = vsub.f32 0.0, %v2875
        %v2908 = vsub.f32 0.0, %v2876
        %v2909 = vsub.f32 0.0, %v2877
        %v2910 = vsub.f32 0.0, %v2878
        %v2911 = vsub.f32 0.0, %v2879
        %v2912 = vsub.f32 0.0, %v2880
        %v2913 = vsub.f32 0.0, %v2881
        %v2914 = vsub.f32 0.0, %v2882
        %v2915 = vsub.f32 0.0, %v2883
        %v2916 = vsel %vm2884, %v2868, %v2900
        %v2917 = vsel %vm2885, %v2869, %v2901
        %v2918 = vsel %vm2886, %v2870, %v2902
        %v2919 = vsel %vm2887, %v2871, %v2903
        %v2920 = vsel %vm2888, %v2872, %v2904
        %v2921 = vsel %vm2889, %v2873, %v2905
        %v2922 = vsel %vm2890, %v2874, %v2906
        %v2923 = vsel %vm2891, %v2875, %v2907
        %v2924 = vsel %vm2892, %v2876, %v2908
        %v2925 = vsel %vm2893, %v2877, %v2909
        %v2926 = vsel %vm2894, %v2878, %v2910
        %v2927 = vsel %vm2895, %v2879, %v2911
        %v2928 = vsel %vm2896, %v2880, %v2912
        %v2929 = vsel %vm2897, %v2881, %v2913
        %v2930 = vsel %vm2898, %v2882, %v2914
        %v2931 = vsel %vm2899, %v2883, %v2915
        %v2932 = vadd.f32 %v2916, 1.0
        %v2933 = vadd.f32 %v2917, 1.0
        %v2934 = vadd.f32 %v2918, 1.0
        %v2935 = vadd.f32 %v2919, 1.0
        %v2936 = vadd.f32 %v2920, 1.0
        %v2937 = vadd.f32 %v2921, 1.0
        %v2938 = vadd.f32 %v2922, 1.0
        %v2939 = vadd.f32 %v2923, 1.0
        %v2940 = vadd.f32 %v2924, 1.0
        %v2941 = vadd.f32 %v2925, 1.0
        %v2942 = vadd.f32 %v2926, 1.0
        %v2943 = vadd.f32 %v2927, 1.0
        %v2944 = vadd.f32 %v2928, 1.0
        %v2945 = vadd.f32 %v2929, 1.0
        %v2946 = vadd.f32 %v2930, 1.0
        %v2947 = vadd.f32 %v2931, 1.0
        %v2948 = vmul.f32 %v2532, %v2932
        %v2949 = vmul.f32 %v2533, %v2933
        %v2950 = vmul.f32 %v2534, %v2934
        %v2951 = vmul.f32 %v2535, %v2935
        %v2952 = vmul.f32 %v2536, %v2936
        %v2953 = vmul.f32 %v2537, %v2937
        %v2954 = vmul.f32 %v2538, %v2938
        %v2955 = vmul.f32 %v2539, %v2939
        %v2956 = vmul.f32 %v2540, %v2940
        %v2957 = vmul.f32 %v2541, %v2941
        %v2958 = vmul.f32 %v2542, %v2942
        %v2959 = vmul.f32 %v2543, %v2943
        %v2960 = vmul.f32 %v2544, %v2944
        %v2961 = vmul.f32 %v2545, %v2945
        %v2962 = vmul.f32 %v2546, %v2946
        %v2963 = vmul.f32 %v2547, %v2947
        %v2964 = vpack.c.bf16 %v2956, %v2948
        %v2965 = vpack.c.bf16 %v2957, %v2949
        %v2966 = vpack.c.bf16 %v2958, %v2950
        %v2967 = vpack.c.bf16 %v2959, %v2951
        %v2968 = vpack.c.bf16 %v2960, %v2952
        %v2969 = vpack.c.bf16 %v2961, %v2953
        %v2970 = vpack.c.bf16 %v2962, %v2954
        %v2971 = vpack.c.bf16 %v2963, %v2955
        %v2972 = vld [vmem:[%s723] sm:$0xf]
        %v2973 = vld [vmem:[%s723 + $0x4] sm:$0xf]
        %v2974 = vld [vmem:[%s723 + $0x8] sm:$0xf]
        %v2975 = vld [vmem:[%s723 + $0xc] sm:$0xf]
        %v2976 = vld [vmem:[%s723 + $0x10] sm:$0xf]
        %v2977 = vld [vmem:[%s723 + $0x14] sm:$0xf]
        %v2978 = vld [vmem:[%s723 + $0x18] sm:$0xf]
        %v2979 = vld [vmem:[%s723 + $0x1c] sm:$0xf]
        %v2980 = vld [vmem:[%s723 + $0x20] sm:$0xf]
        %v2981 = vld [vmem:[%s723 + $0x24] sm:$0xf]
        %v2982 = vld [vmem:[%s723 + $0x28] sm:$0xf]
        %v2983 = vld [vmem:[%s723 + $0x2c] sm:$0xf]
        %v2984 = vld [vmem:[%s723 + $0x30] sm:$0xf]
        %v2985 = vld [vmem:[%s723 + $0x34] sm:$0xf]
        %v2986 = vld [vmem:[%s723 + $0x38] sm:$0xf]
        %v2987 = vld [vmem:[%s723 + $0x3c] sm:$0xf]
        %v2988 = vld [vmem:[%s723 + $0x40] sm:$0xf]
        %v2989 = vld [vmem:[%s723 + $0x44] sm:$0xf]
        %v2990 = vld [vmem:[%s723 + $0x48] sm:$0xf]
        %v2991 = vld [vmem:[%s723 + $0x4c] sm:$0xf]
        %v2992 = vld [vmem:[%s723 + $0x50] sm:$0xf]
        %v2993 = vld [vmem:[%s723 + $0x54] sm:$0xf]
        %v2994 = vld [vmem:[%s723 + $0x58] sm:$0xf]
        %v2995 = vld [vmem:[%s723 + $0x5c] sm:$0xf]
        %v2996 = vld [vmem:[%s723 + $0x60] sm:$0xf]
        %v2997 = vld [vmem:[%s723 + $0x64] sm:$0xf]
        %v2998 = vld [vmem:[%s723 + $0x68] sm:$0xf]
        %v2999 = vld [vmem:[%s723 + $0x6c] sm:$0xf]
        %v3000 = vld [vmem:[%s723 + $0x70] sm:$0xf]
        %v3001 = vld [vmem:[%s723 + $0x74] sm:$0xf]
        %v3002 = vld [vmem:[%s723 + $0x78] sm:$0xf]
        %v3003 = vld [vmem:[%s723 + $0x7c] sm:$0xf]
        %v3004 = vld [vmem:[%s723 + $0x80] sm:$0xf]
        %v3005 = vld [vmem:[%s723 + $0x84] sm:$0xf]
        %v3006 = vld [vmem:[%s723 + $0x88] sm:$0xf]
        %v3007 = vld [vmem:[%s723 + $0x8c] sm:$0xf]
        %v3008 = vld [vmem:[%s723 + $0x90] sm:$0xf]
        %v3009 = vld [vmem:[%s723 + $0x94] sm:$0xf]
        %v3010 = vld [vmem:[%s723 + $0x98] sm:$0xf]
        %v3011 = vld [vmem:[%s723 + $0x9c] sm:$0xf]
        %v3012 = vld [vmem:[%s723 + $0xa0] sm:$0xf]
        %v3013 = vld [vmem:[%s723 + $0xa4] sm:$0xf]
        %v3014 = vld [vmem:[%s723 + $0xa8] sm:$0xf]
        %v3015 = vld [vmem:[%s723 + $0xac] sm:$0xf]
        %v3016 = vld [vmem:[%s723 + $0xb0] sm:$0xf]
        %v3017 = vld [vmem:[%s723 + $0xb4] sm:$0xf]
        %v3018 = vld [vmem:[%s723 + $0xb8] sm:$0xf]
        %v3019 = vld [vmem:[%s723 + $0xbc] sm:$0xf]
        %v3020 = vld [vmem:[%s723 + $0xc0] sm:$0xf]
        %v3021 = vld [vmem:[%s723 + $0xc4] sm:$0xf]
        %v3022 = vld [vmem:[%s723 + $0xc8] sm:$0xf]
        %v3023 = vld [vmem:[%s723 + $0xcc] sm:$0xf]
        %v3024 = vld [vmem:[%s723 + $0xd0] sm:$0xf]
        %v3025 = vld [vmem:[%s723 + $0xd4] sm:$0xf]
        %v3026 = vld [vmem:[%s723 + $0xd8] sm:$0xf]
        %v3027 = vld [vmem:[%s723 + $0xdc] sm:$0xf]
        %v3028 = vld [vmem:[%s723 + $0xe0] sm:$0xf]
        %v3029 = vld [vmem:[%s723 + $0xe4] sm:$0xf]
        %v3030 = vld [vmem:[%s723 + $0xe8] sm:$0xf]
        %v3031 = vld [vmem:[%s723 + $0xec] sm:$0xf]
        %v3032 = vld [vmem:[%s723 + $0xf0] sm:$0xf]
        %v3033 = vld [vmem:[%s723 + $0xf4] sm:$0xf]
        %v3034 = vld [vmem:[%s723 + $0xf8] sm:$0xf]
        %v3035 = vld [vmem:[%s723 + $0xfc] sm:$0xf]
        %v3036 = vld [vmem:[%s723 + $0x100] sm:$0xf]
        %v3037 = vld [vmem:[%s723 + $0x104] sm:$0xf]
        %v3038 = vld [vmem:[%s723 + $0x108] sm:$0xf]
        %v3039 = vld [vmem:[%s723 + $0x10c] sm:$0xf]
        %v3040 = vld [vmem:[%s723 + $0x110] sm:$0xf]
        %v3041 = vld [vmem:[%s723 + $0x114] sm:$0xf]
        %v3042 = vld [vmem:[%s723 + $0x118] sm:$0xf]
        %v3043 = vld [vmem:[%s723 + $0x11c] sm:$0xf]
        %v3044 = vld [vmem:[%s723 + $0x120] sm:$0xf]
        %v3045 = vld [vmem:[%s723 + $0x124] sm:$0xf]
        %v3046 = vld [vmem:[%s723 + $0x128] sm:$0xf]
        %v3047 = vld [vmem:[%s723 + $0x12c] sm:$0xf]
        %v3048 = vld [vmem:[%s723 + $0x130] sm:$0xf]
        %v3049 = vld [vmem:[%s723 + $0x134] sm:$0xf]
        %v3050 = vld [vmem:[%s723 + $0x138] sm:$0xf]
        %v3051 = vld [vmem:[%s723 + $0x13c] sm:$0xf]
        %v3052 = vld [vmem:[%s723 + $0x140] sm:$0xf]
        %v3053 = vld [vmem:[%s723 + $0x144] sm:$0xf]
        %v3054 = vld [vmem:[%s723 + $0x148] sm:$0xf]
        %v3055 = vld [vmem:[%s723 + $0x14c] sm:$0xf]
        %v3056 = vld [vmem:[%s723 + $0x150] sm:$0xf]
        %v3057 = vld [vmem:[%s723 + $0x154] sm:$0xf]
        %v3058 = vld [vmem:[%s723 + $0x158] sm:$0xf]
        %v3059 = vld [vmem:[%s723 + $0x15c] sm:$0xf]
        %v3060 = vld [vmem:[%s723 + $0x160] sm:$0xf]
        %v3061 = vld [vmem:[%s723 + $0x164] sm:$0xf]
        %v3062 = vld [vmem:[%s723 + $0x168] sm:$0xf]
        %v3063 = vld [vmem:[%s723 + $0x16c] sm:$0xf]
        %v3064 = vld [vmem:[%s723 + $0x170] sm:$0xf]
        %v3065 = vld [vmem:[%s723 + $0x174] sm:$0xf]
        %v3066 = vld [vmem:[%s723 + $0x178] sm:$0xf]
        %v3067 = vld [vmem:[%s723 + $0x17c] sm:$0xf]
        %v3068 = vld [vmem:[%s723 + $0x180] sm:$0xf]
        %v3069 = vld [vmem:[%s723 + $0x184] sm:$0xf]
        %v3070 = vld [vmem:[%s723 + $0x188] sm:$0xf]
        %v3071 = vld [vmem:[%s723 + $0x18c] sm:$0xf]
        %v3072 = vld [vmem:[%s723 + $0x190] sm:$0xf]
        %v3073 = vld [vmem:[%s723 + $0x194] sm:$0xf]
        %v3074 = vld [vmem:[%s723 + $0x198] sm:$0xf]
        %v3075 = vld [vmem:[%s723 + $0x19c] sm:$0xf]
        %v3076 = vld [vmem:[%s723 + $0x1a0] sm:$0xf]
        %v3077 = vld [vmem:[%s723 + $0x1a4] sm:$0xf]
        %v3078 = vld [vmem:[%s723 + $0x1a8] sm:$0xf]
        %v3079 = vld [vmem:[%s723 + $0x1ac] sm:$0xf]
        %v3080 = vld [vmem:[%s723 + $0x1b0] sm:$0xf]
        %v3081 = vld [vmem:[%s723 + $0x1b4] sm:$0xf]
        %v3082 = vld [vmem:[%s723 + $0x1b8] sm:$0xf]
        %v3083 = vld [vmem:[%s723 + $0x1bc] sm:$0xf]
        %v3084 = vld [vmem:[%s723 + $0x1c0] sm:$0xf]
        %v3085 = vld [vmem:[%s723 + $0x1c4] sm:$0xf]
        %v3086 = vld [vmem:[%s723 + $0x1c8] sm:$0xf]
        %v3087 = vld [vmem:[%s723 + $0x1cc] sm:$0xf]
        %v3088 = vld [vmem:[%s723 + $0x1d0] sm:$0xf]
        %v3089 = vld [vmem:[%s723 + $0x1d4] sm:$0xf]
        %v3090 = vld [vmem:[%s723 + $0x1d8] sm:$0xf]
        %v3091 = vld [vmem:[%s723 + $0x1dc] sm:$0xf]
        %v3092 = vld [vmem:[%s723 + $0x1e0] sm:$0xf]
        %v3093 = vld [vmem:[%s723 + $0x1e4] sm:$0xf]
        %v3094 = vld [vmem:[%s723 + $0x1e8] sm:$0xf]
        %v3095 = vld [vmem:[%s723 + $0x1ec] sm:$0xf]
        %v3096 = vld [vmem:[%s723 + $0x1f0] sm:$0xf]
        %v3097 = vld [vmem:[%s723 + $0x1f4] sm:$0xf]
        %v3098 = vld [vmem:[%s723 + $0x1f8] sm:$0xf]
        %v3099 = vld [vmem:[%s723 + $0x1fc] sm:$0xf]
        %v3100 = vld [vmem:[%s824] sm:$0x1]
        %v3102 = vlaneseq
        %v3103 = vshrl.u32 %v3102, 7
        %v3104 = vsub.s32 0, %v3103
        %v3105 = vrot.slane %v3100, %v3104
        %v3235 = vunpack.c.l.b16 %v2972
        %v3236 = vunpack.c.l.b16 %v2973
        %v3237 = vunpack.c.l.b16 %v2974
        %v3238 = vunpack.c.l.b16 %v2975
        %v3239 = vunpack.c.l.b16 %v2976
        %v3240 = vunpack.c.l.b16 %v2977
        %v3241 = vunpack.c.l.b16 %v2978
        %v3242 = vunpack.c.l.b16 %v2979
        %v3243 = vunpack.c.l.b16 %v2980
        %v3244 = vunpack.c.l.b16 %v2981
        %v3245 = vunpack.c.l.b16 %v2982
        %v3246 = vunpack.c.l.b16 %v2983
        %v3247 = vunpack.c.l.b16 %v2984
        %v3248 = vunpack.c.l.b16 %v2985
        %v3249 = vunpack.c.l.b16 %v2986
        %v3250 = vunpack.c.l.b16 %v2987
        %v3251 = vunpack.c.l.b16 %v2988
        %v3252 = vunpack.c.l.b16 %v2989
        %v3253 = vunpack.c.l.b16 %v2990
        %v3254 = vunpack.c.l.b16 %v2991
        %v3255 = vunpack.c.l.b16 %v2992
        %v3256 = vunpack.c.l.b16 %v2993
        %v3257 = vunpack.c.l.b16 %v2994
        %v3258 = vunpack.c.l.b16 %v2995
        %v3259 = vunpack.c.l.b16 %v2996
        %v3260 = vunpack.c.l.b16 %v2997
        %v3261 = vunpack.c.l.b16 %v2998
        %v3262 = vunpack.c.l.b16 %v2999
        %v3263 = vunpack.c.l.b16 %v3000
        %v3264 = vunpack.c.l.b16 %v3001
        %v3265 = vunpack.c.l.b16 %v3002
        %v3266 = vunpack.c.l.b16 %v3003
        %v3267 = vunpack.c.l.b16 %v3004
        %v3268 = vunpack.c.l.b16 %v3005
        %v3269 = vunpack.c.l.b16 %v3006
        %v3270 = vunpack.c.l.b16 %v3007
        %v3271 = vunpack.c.l.b16 %v3008
        %v3272 = vunpack.c.l.b16 %v3009
        %v3273 = vunpack.c.l.b16 %v3010
        %v3274 = vunpack.c.l.b16 %v3011
        %v3275 = vunpack.c.l.b16 %v3012
        %v3276 = vunpack.c.l.b16 %v3013
        %v3277 = vunpack.c.l.b16 %v3014
        %v3278 = vunpack.c.l.b16 %v3015
        %v3279 = vunpack.c.l.b16 %v3016
        %v3280 = vunpack.c.l.b16 %v3017
        %v3281 = vunpack.c.l.b16 %v3018
        %v3282 = vunpack.c.l.b16 %v3019
        %v3283 = vunpack.c.l.b16 %v3020
        %v3284 = vunpack.c.l.b16 %v3021
        %v3285 = vunpack.c.l.b16 %v3022
        %v3286 = vunpack.c.l.b16 %v3023
        %v3287 = vunpack.c.l.b16 %v3024
        %v3288 = vunpack.c.l.b16 %v3025
        %v3289 = vunpack.c.l.b16 %v3026
        %v3290 = vunpack.c.l.b16 %v3027
        %v3291 = vunpack.c.l.b16 %v3028
        %v3292 = vunpack.c.l.b16 %v3029
        %v3293 = vunpack.c.l.b16 %v3030
        %v3294 = vunpack.c.l.b16 %v3031
        %v3295 = vunpack.c.l.b16 %v3032
        %v3296 = vunpack.c.l.b16 %v3033
        %v3297 = vunpack.c.l.b16 %v3034
        %v3298 = vunpack.c.l.b16 %v3035
        %v3299 = vunpack.c.l.b16 %v3036
        %v3300 = vunpack.c.l.b16 %v3037
        %v3301 = vunpack.c.l.b16 %v3038
        %v3302 = vunpack.c.l.b16 %v3039
        %v3303 = vunpack.c.l.b16 %v3040
        %v3304 = vunpack.c.l.b16 %v3041
        %v3305 = vunpack.c.l.b16 %v3042
        %v3306 = vunpack.c.l.b16 %v3043
        %v3307 = vunpack.c.l.b16 %v3044
        %v3308 = vunpack.c.l.b16 %v3045
        %v3309 = vunpack.c.l.b16 %v3046
        %v3310 = vunpack.c.l.b16 %v3047
        %v3311 = vunpack.c.l.b16 %v3048
        %v3312 = vunpack.c.l.b16 %v3049
        %v3313 = vunpack.c.l.b16 %v3050
        %v3314 = vunpack.c.l.b16 %v3051
        %v3315 = vunpack.c.l.b16 %v3052
        %v3316 = vunpack.c.l.b16 %v3053
        %v3317 = vunpack.c.l.b16 %v3054
        %v3318 = vunpack.c.l.b16 %v3055
        %v3319 = vunpack.c.l.b16 %v3056
        %v3320 = vunpack.c.l.b16 %v3057
        %v3321 = vunpack.c.l.b16 %v3058
        %v3322 = vunpack.c.l.b16 %v3059
        %v3323 = vunpack.c.l.b16 %v3060
        %v3324 = vunpack.c.l.b16 %v3061
        %v3325 = vunpack.c.l.b16 %v3062
        %v3326 = vunpack.c.l.b16 %v3063
        %v3327 = vunpack.c.l.b16 %v3064
        %v3328 = vunpack.c.l.b16 %v3065
        %v3329 = vunpack.c.l.b16 %v3066
        %v3330 = vunpack.c.l.b16 %v3067
        %v3331 = vunpack.c.l.b16 %v3068
        %v3332 = vunpack.c.l.b16 %v3069
        %v3333 = vunpack.c.l.b16 %v3070
        %v3334 = vunpack.c.l.b16 %v3071
        %v3335 = vunpack.c.l.b16 %v3072
        %v3336 = vunpack.c.l.b16 %v3073
        %v3337 = vunpack.c.l.b16 %v3074
        %v3338 = vunpack.c.l.b16 %v3075
        %v3339 = vunpack.c.l.b16 %v3076
        %v3340 = vunpack.c.l.b16 %v3077
        %v3341 = vunpack.c.l.b16 %v3078
        %v3342 = vunpack.c.l.b16 %v3079
        %v3343 = vunpack.c.l.b16 %v3080
        %v3344 = vunpack.c.l.b16 %v3081
        %v3345 = vunpack.c.l.b16 %v3082
        %v3346 = vunpack.c.l.b16 %v3083
        %v3347 = vunpack.c.l.b16 %v3084
        %v3348 = vunpack.c.l.b16 %v3085
        %v3349 = vunpack.c.l.b16 %v3086
        %v3350 = vunpack.c.l.b16 %v3087
        %v3351 = vunpack.c.l.b16 %v3088
        %v3352 = vunpack.c.l.b16 %v3089
        %v3353 = vunpack.c.l.b16 %v3090
        %v3354 = vunpack.c.l.b16 %v3091
        %v3355 = vunpack.c.l.b16 %v3092
        %v3356 = vunpack.c.l.b16 %v3093
        %v3357 = vunpack.c.l.b16 %v3094
        %v3358 = vunpack.c.l.b16 %v3095
        %v3359 = vunpack.c.l.b16 %v3096
        %v3360 = vunpack.c.l.b16 %v3097
        %v3361 = vunpack.c.l.b16 %v3098
        %v3362 = vunpack.c.l.b16 %v3099
        %v3363 = vpack.c.b16 %v3236, %v3235
        %v3364 = vpack.c.b16 %v3238, %v3237
        %v3365 = vpack.c.b16 %v3240, %v3239
        %v3366 = vpack.c.b16 %v3242, %v3241
        %v3367 = vpack.c.b16 %v3244, %v3243
        %v3368 = vpack.c.b16 %v3246, %v3245
        %v3369 = vpack.c.b16 %v3248, %v3247
        %v3370 = vpack.c.b16 %v3250, %v3249
        %v3371 = vpack.c.b16 %v3252, %v3251
        %v3372 = vpack.c.b16 %v3254, %v3253
        %v3373 = vpack.c.b16 %v3256, %v3255
        %v3374 = vpack.c.b16 %v3258, %v3257
        %v3375 = vpack.c.b16 %v3260, %v3259
        %v3376 = vpack.c.b16 %v3262, %v3261
        %v3377 = vpack.c.b16 %v3264, %v3263
        %v3378 = vpack.c.b16 %v3266, %v3265
        %v3379 = vpack.c.b16 %v3268, %v3267
        %v3380 = vpack.c.b16 %v3270, %v3269
        %v3381 = vpack.c.b16 %v3272, %v3271
        %v3382 = vpack.c.b16 %v3274, %v3273
        %v3383 = vpack.c.b16 %v3276, %v3275
        %v3384 = vpack.c.b16 %v3278, %v3277
        %v3385 = vpack.c.b16 %v3280, %v3279
        %v3386 = vpack.c.b16 %v3282, %v3281
        %v3387 = vpack.c.b16 %v3284, %v3283
        %v3388 = vpack.c.b16 %v3286, %v3285
        %v3389 = vpack.c.b16 %v3288, %v3287
        %v3390 = vpack.c.b16 %v3290, %v3289
        %v3391 = vpack.c.b16 %v3292, %v3291
        %v3392 = vpack.c.b16 %v3294, %v3293
        %v3393 = vpack.c.b16 %v3296, %v3295
        %v3394 = vpack.c.b16 %v3298, %v3297
        %v3395 = vpack.c.b16 %v3300, %v3299
        %v3396 = vpack.c.b16 %v3302, %v3301
        %v3397 = vpack.c.b16 %v3304, %v3303
        %v3398 = vpack.c.b16 %v3306, %v3305
        %v3399 = vpack.c.b16 %v3308, %v3307
        %v3400 = vpack.c.b16 %v3310, %v3309
        %v3401 = vpack.c.b16 %v3312, %v3311
        %v3402 = vpack.c.b16 %v3314, %v3313
        %v3403 = vpack.c.b16 %v3316, %v3315
        %v3404 = vpack.c.b16 %v3318, %v3317
        %v3405 = vpack.c.b16 %v3320, %v3319
        %v3406 = vpack.c.b16 %v3322, %v3321
        %v3407 = vpack.c.b16 %v3324, %v3323
        %v3408 = vpack.c.b16 %v3326, %v3325
        %v3409 = vpack.c.b16 %v3328, %v3327
        %v3410 = vpack.c.b16 %v3330, %v3329
        %v3411 = vpack.c.b16 %v3332, %v3331
        %v3412 = vpack.c.b16 %v3334, %v3333
        %v3413 = vpack.c.b16 %v3336, %v3335
        %v3414 = vpack.c.b16 %v3338, %v3337
        %v3415 = vpack.c.b16 %v3340, %v3339
        %v3416 = vpack.c.b16 %v3342, %v3341
        %v3417 = vpack.c.b16 %v3344, %v3343
        %v3418 = vpack.c.b16 %v3346, %v3345
        %v3419 = vpack.c.b16 %v3348, %v3347
        %v3420 = vpack.c.b16 %v3350, %v3349
        %v3421 = vpack.c.b16 %v3352, %v3351
        %v3422 = vpack.c.b16 %v3354, %v3353
        %v3423 = vpack.c.b16 %v3356, %v3355
        %v3424 = vpack.c.b16 %v3358, %v3357
        %v3425 = vpack.c.b16 %v3360, %v3359
        %v3426 = vpack.c.b16 %v3362, %v3361
        %3491 = vmatprep.subr.bf16.mxu0 0
        %3492 = vmatpush1.bf16.msra.mxu0 %v3370
        %3493 = vmatprep.subr.bf16.mxu0 0
        %3494 = vmatpush1.bf16.msra.mxu0 %v3369
        %3495 = vmatprep.subr.bf16.mxu0 0
        %3496 = vmatpush1.bf16.msra.mxu0 %v3368
        %3497 = vmatprep.subr.bf16.mxu0 0
        %3498 = vmatpush1.bf16.msra.mxu0 %v3367
        %3499 = vmatprep.subr.bf16.mxu0 0
        %3500 = vmatpush1.bf16.msra.mxu0 %v3366
        %3501 = vmatprep.subr.bf16.mxu0 0
        %3502 = vmatpush1.bf16.msra.mxu0 %v3365
        %3503 = vmatprep.subr.bf16.mxu0 0
        %3504 = vmatpush1.bf16.msra.mxu0 %v3364
        %3505 = vmatprep.subr.bf16.mxu0 0
        %3506 = vmatpush1.bf16.msra.mxu0 %v3363
        %3507 = vmatprep.subr.bf16.mxu0 0
        %3508 = vmatpush2.bf16.msra.mxu0 %v3378
        %3509 = vmatprep.subr.bf16.mxu0 0
        %3510 = vmatpush2.bf16.msra.mxu0 %v3377
        %3511 = vmatprep.subr.bf16.mxu0 0
        %3512 = vmatpush2.bf16.msra.mxu0 %v3376
        %3513 = vmatprep.subr.bf16.mxu0 0
        %3514 = vmatpush2.bf16.msra.mxu0 %v3375
        %3515 = vmatprep.subr.bf16.mxu0 0
        %3516 = vmatpush2.bf16.msra.mxu0 %v3374
        %3517 = vmatprep.subr.bf16.mxu0 0
        %3518 = vmatpush2.bf16.msra.mxu0 %v3373
        %3519 = vmatprep.subr.bf16.mxu0 0
        %3520 = vmatpush2.bf16.msra.mxu0 %v3372
        %3521 = vmatprep.subr.bf16.mxu0 0
        %3522 = vmatpush2.bf16.msra.mxu0 %v3371
        %3523 = vmatprep.mubr.bf16.mxu0 %v2965
        %3524 = vmatmul.mubr.bf16.gmra.mxu0 %v2964
        %v3525 = vpop.f32.mrf.mxu0
        %v3526 = vadd.f32 %v3105, %v3525
        %v3527 = vpop.f32.mrf.mxu0
        %v3528 = vpop.f32.mrf.mxu0
        %v3529 = vadd.f32 %v3105, %v3528
        %v3530 = vpop.f32.mrf.mxu0
        %3531 = vdwg.mxu0
        %3532 = vmatprep.subr.bf16.mxu0 0
        %3533 = vmatpush1.bf16.msra.mxu0 %v3386
        %3534 = vmatprep.subr.bf16.mxu0 0
        %3535 = vmatpush1.bf16.msra.mxu0 %v3385
        %3536 = vmatprep.subr.bf16.mxu0 0
        %3537 = vmatpush1.bf16.msra.mxu0 %v3384
        %3538 = vmatprep.subr.bf16.mxu0 0
        %3539 = vmatpush1.bf16.msra.mxu0 %v3383
        %3540 = vmatprep.subr.bf16.mxu0 0
        %3541 = vmatpush1.bf16.msra.mxu0 %v3382
        %3542 = vmatprep.subr.bf16.mxu0 0
        %3543 = vmatpush1.bf16.msra.mxu0 %v3381
        %3544 = vmatprep.subr.bf16.mxu0 0
        %3545 = vmatpush1.bf16.msra.mxu0 %v3380
        %3546 = vmatprep.subr.bf16.mxu0 0
        %3547 = vmatpush1.bf16.msra.mxu0 %v3379
        %3548 = vmatprep.subr.bf16.mxu0 0
        %3549 = vmatpush2.bf16.msra.mxu0 %v3394
        %3550 = vmatprep.subr.bf16.mxu0 0
        %3551 = vmatpush2.bf16.msra.mxu0 %v3393
        %3552 = vmatprep.subr.bf16.mxu0 0
        %3553 = vmatpush2.bf16.msra.mxu0 %v3392
        %3554 = vmatprep.subr.bf16.mxu0 0
        %3555 = vmatpush2.bf16.msra.mxu0 %v3391
        %3556 = vmatprep.subr.bf16.mxu0 0
        %3557 = vmatpush2.bf16.msra.mxu0 %v3390
        %3558 = vmatprep.subr.bf16.mxu0 0
        %3559 = vmatpush2.bf16.msra.mxu0 %v3389
        %3560 = vmatprep.subr.bf16.mxu0 0
        %3561 = vmatpush2.bf16.msra.mxu0 %v3388
        %3562 = vmatprep.subr.bf16.mxu0 0
        %3563 = vmatpush2.bf16.msra.mxu0 %v3387
        %3564 = vmatprep.mubr.bf16.mxu0 %v2967
        %3565 = vmatmul.mubr.bf16.gmra.mxu0 %v2966
        %v3566 = vpop.f32.mrf.mxu0
        %v3567 = vadd.f32 %v3526, %v3566
        %v3568 = vpop.f32.mrf.mxu0
        %v3569 = vpop.f32.mrf.mxu0
        %v3570 = vadd.f32 %v3529, %v3569
        %v3571 = vpop.f32.mrf.mxu0
        %3572 = vdwg.mxu0
        %3573 = vmatprep.subr.bf16.mxu0 0
        %3574 = vmatpush1.bf16.msra.mxu0 %v3402
        %3575 = vmatprep.subr.bf16.mxu0 0
        %3576 = vmatpush1.bf16.msra.mxu0 %v3401
        %3577 = vmatprep.subr.bf16.mxu0 0
        %3578 = vmatpush1.bf16.msra.mxu0 %v3400
        %3579 = vmatprep.subr.bf16.mxu0 0
        %3580 = vmatpush1.bf16.msra.mxu0 %v3399
        %3581 = vmatprep.subr.bf16.mxu0 0
        %3582 = vmatpush1.bf16.msra.mxu0 %v3398
        %3583 = vmatprep.subr.bf16.mxu0 0
        %3584 = vmatpush1.bf16.msra.mxu0 %v3397
        %3585 = vmatprep.subr.bf16.mxu0 0
        %3586 = vmatpush1.bf16.msra.mxu0 %v3396
        %3587 = vmatprep.subr.bf16.mxu0 0
        %3588 = vmatpush1.bf16.msra.mxu0 %v3395
        %3589 = vmatprep.subr.bf16.mxu0 0
        %3590 = vmatpush2.bf16.msra.mxu0 %v3410
        %3591 = vmatprep.subr.bf16.mxu0 0
        %3592 = vmatpush2.bf16.msra.mxu0 %v3409
        %3593 = vmatprep.subr.bf16.mxu0 0
        %3594 = vmatpush2.bf16.msra.mxu0 %v3408
        %3595 = vmatprep.subr.bf16.mxu0 0
        %3596 = vmatpush2.bf16.msra.mxu0 %v3407
        %3597 = vmatprep.subr.bf16.mxu0 0
        %3598 = vmatpush2.bf16.msra.mxu0 %v3406
        %3599 = vmatprep.subr.bf16.mxu0 0
        %3600 = vmatpush2.bf16.msra.mxu0 %v3405
        %3601 = vmatprep.subr.bf16.mxu0 0
        %3602 = vmatpush2.bf16.msra.mxu0 %v3404
        %3603 = vmatprep.subr.bf16.mxu0 0
        %3604 = vmatpush2.bf16.msra.mxu0 %v3403
        %3605 = vmatprep.mubr.bf16.mxu0 %v2969
        %3606 = vmatmul.mubr.bf16.gmra.mxu0 %v2968
        %v3607 = vpop.f32.mrf.mxu0
        %v3608 = vadd.f32 %v3567, %v3607
        %v3609 = vpop.f32.mrf.mxu0
        %v3610 = vpop.f32.mrf.mxu0
        %v3611 = vadd.f32 %v3570, %v3610
        %v3612 = vpop.f32.mrf.mxu0
        %3613 = vdwg.mxu0
        %3614 = vmatprep.subr.bf16.mxu0 0
        %3615 = vmatpush1.bf16.msra.mxu0 %v3418
        %3616 = vmatprep.subr.bf16.mxu0 0
        %3617 = vmatpush1.bf16.msra.mxu0 %v3417
        %3618 = vmatprep.subr.bf16.mxu0 0
        %3619 = vmatpush1.bf16.msra.mxu0 %v3416
        %3620 = vmatprep.subr.bf16.mxu0 0
        %3621 = vmatpush1.bf16.msra.mxu0 %v3415
        %3622 = vmatprep.subr.bf16.mxu0 0
        %3623 = vmatpush1.bf16.msra.mxu0 %v3414
        %3624 = vmatprep.subr.bf16.mxu0 0
        %3625 = vmatpush1.bf16.msra.mxu0 %v3413
        %3626 = vmatprep.subr.bf16.mxu0 0
        %3627 = vmatpush1.bf16.msra.mxu0 %v3412
        %3628 = vmatprep.subr.bf16.mxu0 0
        %3629 = vmatpush1.bf16.msra.mxu0 %v3411
        %3630 = vmatprep.subr.bf16.mxu0 0
        %3631 = vmatpush2.bf16.msra.mxu0 %v3426
        %3632 = vmatprep.subr.bf16.mxu0 0
        %3633 = vmatpush2.bf16.msra.mxu0 %v3425
        %3634 = vmatprep.subr.bf16.mxu0 0
        %3635 = vmatpush2.bf16.msra.mxu0 %v3424
        %3636 = vmatprep.subr.bf16.mxu0 0
        %3637 = vmatpush2.bf16.msra.mxu0 %v3423
        %3638 = vmatprep.subr.bf16.mxu0 0
        %3639 = vmatpush2.bf16.msra.mxu0 %v3422
        %3640 = vmatprep.subr.bf16.mxu0 0
        %3641 = vmatpush2.bf16.msra.mxu0 %v3421
        %3642 = vmatprep.subr.bf16.mxu0 0
        %3643 = vmatpush2.bf16.msra.mxu0 %v3420
        %3644 = vmatprep.subr.bf16.mxu0 0
        %3645 = vmatpush2.bf16.msra.mxu0 %v3419
        %3646 = vmatprep.mubr.bf16.mxu0 %v2971
        %3647 = vmatmul.mubr.bf16.gmra.mxu0 %v2970
        %v3648 = vpop.f32.mrf.mxu0
        %v3649 = vadd.f32 %v3608, %v3648
        %v3650 = vpop.f32.mrf.mxu0
        %v3651 = vpop.f32.mrf.mxu0
        %v3652 = vadd.f32 %v3611, %v3651
        %v3653 = vpop.f32.mrf.mxu0
        %3654 = vdwg.mxu0
        %v3655 = vadd.f32 %v1931, %v3649
        %v3656 = vadd.f32 %v1932, %v3652
        %v3657 = vld [vmem:[%s833] sm:$0x1]
        %v3658 = vld [vmem:[%s836] sm:$0x1]
        %3659 = vadd.xlane.f32.xlu0 %v3655
        %v3660 = vpop.xlane.xlu0 %3659
        %3661 = vadd.xlane.f32.xlu0 %v3656
        %v3662 = vpop.xlane.xlu0 %3661
        %v3663 = vmul.f32 %v3660, %v1898
        %v3664 = vmul.f32 %v3662, %v1898
        %v3665 = vsub.f32 %v3655, %v3663
        %v3666 = vsub.f32 %v3656, %v3664
        %v3667 = vmul.f32 %v3665, %v3665
        %v3668 = vmul.f32 %v3666, %v3666
        %3669 = vadd.xlane.f32.xlu0 %v3667
        %v3670 = vpop.xlane.xlu0 %3669
        %3671 = vadd.xlane.f32.xlu0 %v3668
        %v3672 = vpop.xlane.xlu0 %3671
        %v3673 = vmul.f32 %v3670, %v1898
        %v3674 = vmul.f32 %v3672, %v1898
        %v3675 = vadd.f32 %v3673, 1e-05
        %v3676 = vadd.f32 %v3674, 1e-05
        %v3677 = vrsqrt.pop %v3675
        %v3678 = vrsqrt.pop %v3676
        %v3679 = vmul.f32 %v3665, %v3677
        %v3680 = vmul.f32 %v3666, %v3678
        %v3682 = vlaneseq
        %v3683 = vshrl.u32 %v3682, 7
        %v3684 = vsub.s32 0, %v3683
        %v3685 = vrot.slane %v3657, %v3684
        %v3687 = vmul.f32 %v3679, %v3685
        %v3688 = vmul.f32 %v3680, %v3685
        %v3690 = vlaneseq
        %v3691 = vshrl.u32 %v3690, 7
        %v3692 = vsub.s32 0, %v3691
        %v3693 = vrot.slane %v3658, %v3692
        %v3695 = vadd.f32 %v3687, %v3693
        %v3696 = vadd.f32 %v3688, %v3693
        %3697 = vst [vmem:[#allocation2] sm:$0xff] %v3695
        %3698 = vst [vmem:[#allocation2 + $0x8] sm:$0xff] %v3696
        %p3699 = scmp.eq.s32.totalorder %s39, 1
        // Predicated region
        $region121: #{tpu_custom_call.1} parent=87 // pred_check
          %p3700 = pneg %p3699
        $region122: #{tpu_custom_call.1} parent=87 // pred_check_branch
          %3702 = sbr.rel (%p3700) target = $region124
        $region123: #{tpu_custom_call.1} parent=87 // pred_region
          %v3703 = vpack.c.bf16 %v3696, %v3695
          %v3704 = vld [vmem:[#allocation14] sm:$0xf]
          %v3705 = vld [vmem:[#allocation14 + $0x4] sm:$0xf]
          %v3706 = vld [vmem:[#allocation14 + $0x8] sm:$0xf]
          %v3707 = vld [vmem:[#allocation14 + $0xc] sm:$0xf]
          %v3708 = vld [vmem:[#allocation14 + $0x10] sm:$0xf]
          %v3709 = vld [vmem:[#allocation14 + $0x14] sm:$0xf]
          %v3710 = vld [vmem:[#allocation14 + $0x18] sm:$0xf]
          %v3711 = vld [vmem:[#allocation14 + $0x1c] sm:$0xf]
          %v3712 = vld [vmem:[#allocation14 + $0x20] sm:$0xf]
          %v3713 = vld [vmem:[#allocation14 + $0x24] sm:$0xf]
          %v3714 = vld [vmem:[#allocation14 + $0x28] sm:$0xf]
          %v3715 = vld [vmem:[#allocation14 + $0x2c] sm:$0xf]
          %v3716 = vld [vmem:[#allocation14 + $0x30] sm:$0xf]
          %v3717 = vld [vmem:[#allocation14 + $0x34] sm:$0xf]
          %v3718 = vld [vmem:[#allocation14 + $0x38] sm:$0xf]
          %v3719 = vld [vmem:[#allocation14 + $0x3c] sm:$0xf]
          %v3720 = vld [vmem:[%s16] sm:$0x1]
          %v3722 = vlaneseq
          %v3723 = vshrl.u32 %v3722, 7
          %v3724 = vsub.s32 0, %v3723
          %v3725 = vrot.slane %v3720, %v3724
          %v3743 = vunpack.c.l.b16 %v3704
          %v3744 = vunpack.c.l.b16 %v3705
          %v3745 = vunpack.c.l.b16 %v3706
          %v3746 = vunpack.c.l.b16 %v3707
          %v3747 = vunpack.c.l.b16 %v3708
          %v3748 = vunpack.c.l.b16 %v3709
          %v3749 = vunpack.c.l.b16 %v3710
          %v3750 = vunpack.c.l.b16 %v3711
          %v3751 = vunpack.c.l.b16 %v3712
          %v3752 = vunpack.c.l.b16 %v3713
          %v3753 = vunpack.c.l.b16 %v3714
          %v3754 = vunpack.c.l.b16 %v3715
          %v3755 = vunpack.c.l.b16 %v3716
          %v3756 = vunpack.c.l.b16 %v3717
          %v3757 = vunpack.c.l.b16 %v3718
          %v3758 = vunpack.c.l.b16 %v3719
          %v3759 = vpack.c.b16 %v3744, %v3743
          %v3760 = vpack.c.b16 %v3746, %v3745
          %v3761 = vpack.c.b16 %v3748, %v3747
          %v3762 = vpack.c.b16 %v3750, %v3749
          %v3763 = vpack.c.b16 %v3752, %v3751
          %v3764 = vpack.c.b16 %v3754, %v3753
          %v3765 = vpack.c.b16 %v3756, %v3755
          %v3766 = vpack.c.b16 %v3758, %v3757
          %3775 = vmatprep.subr.bf16.mxu0 0
          %3776 = vmatpush1.bf16.msra.mxu0 %v3766
          %3777 = vmatprep.subr.bf16.mxu0 0
          %3778 = vmatpush1.bf16.msra.mxu0 %v3765
          %3779 = vmatprep.subr.bf16.mxu0 0
          %3780 = vmatpush1.bf16.msra.mxu0 %v3764
          %3781 = vmatprep.subr.bf16.mxu0 0
          %3782 = vmatpush1.bf16.msra.mxu0 %v3763
          %3783 = vmatprep.subr.bf16.mxu0 0
          %3784 = vmatpush1.bf16.msra.mxu0 %v3762
          %3785 = vmatprep.subr.bf16.mxu0 0
          %3786 = vmatpush1.bf16.msra.mxu0 %v3761
          %3787 = vmatprep.subr.bf16.mxu0 0
          %3788 = vmatpush1.bf16.msra.mxu0 %v3760
          %3789 = vmatprep.subr.bf16.mxu0 0
          %3790 = vmatpush1.bf16.msra.mxu0 %v3759
          %3791 = vmatprep.subr.bf16.mxu0 0
          %3792 = vmatpush2.bf16.msra.mxu0 0
          %3793 = vmatprep.subr.bf16.mxu0 0
          %3794 = vmatpush2.bf16.msra.mxu0 0
          %3795 = vmatprep.subr.bf16.mxu0 0
          %3796 = vmatpush2.bf16.msra.mxu0 0
          %3797 = vmatprep.subr.bf16.mxu0 0
          %3798 = vmatpush2.bf16.msra.mxu0 0
          %3799 = vmatprep.subr.bf16.mxu0 0
          %3800 = vmatpush2.bf16.msra.mxu0 0
          %3801 = vmatprep.subr.bf16.mxu0 0
          %3802 = vmatpush2.bf16.msra.mxu0 0
          %3803 = vmatprep.subr.bf16.mxu0 0
          %3804 = vmatpush2.bf16.msra.mxu0 0
          %3805 = vmatprep.subr.bf16.mxu0 0
          %3806 = vmatpush2.bf16.msra.mxu0 0
          %3807 = vmatprep.mubr.bf16.mxu0 0
          %3808 = vmatmul.mubr.bf16.gmra.mxu0 %v3703
          %v3809 = vpop.f32.mrf.mxu0
          %v3810 = vadd.f32 %v3725, %v3809
          %v3811 = vpop.f32.mrf.mxu0
          %v3812 = vpop.f32.mrf.mxu0
          %v3813 = vadd.f32 %v3725, %v3812
          %v3814 = vpop.f32.mrf.mxu0
          %3815 = vdwg.mxu0
          %3816 = vst [vmem:[#allocation15] sm:$0xff] %v3810
          %3817 = vst [vmem:[#allocation15 + $0x8] sm:$0xff] %v3813
        $region124: #{tpu_custom_call.1} parent=87 // pred_fallthru
          _
        // Predicated region
        $region125: #{tpu_custom_call.1} parent=87 // pred_check
          %p3818 = pneg %p469
        $region126: #{tpu_custom_call.1} parent=87 // pred_check_branch
          %3820 = sbr.rel (%p3818) target = $region128
        $region127: #{tpu_custom_call.1} parent=87 // pred_region
          %s3822 = ssub.s32 256, 256
          %3823 = vsyncadd [#allocation5], %s3822
          %s3824 = sshll.u32 [#allocation15], 4
          %s3825 = int_to_ptr.vmem [resolvable:$true] %s3824
          %3830 = dma.vmem_to_hbm [thread:$0]  %s3825, 256, %s17, [#allocation5], 128, 128, 8
        $region128: #{tpu_custom_call.1} parent=87 // pred_fallthru
          _
        // Predicated region
        $region129: #{tpu_custom_call.1} parent=87 // pred_check
          %p3831 = pneg %p469
        $region130: #{tpu_custom_call.1} parent=87 // pred_check_branch
          %3833 = sbr.rel (%p3831) target = $region132
        $region131: #{tpu_custom_call.1} parent=87 // pred_region
          %3834 = dma.done [#allocation5], 256
        $region132: #{tpu_custom_call.1} parent=87 // pred_fallthru
          _
      $region88: #{tpu_custom_call.1} parent=5 // pred_fallthru
        _
      %p3835 = scmp.le.s32.totalorder 2, %s34
      // Predicated region
      $region133: #{tpu_custom_call.1} parent=5 // pred_check
        %p3836 = pneg %p3835
      $region134: #{tpu_custom_call.1} parent=5 // pred_check_branch
        %3838 = sbr.rel (%p3836) target = $region136
      $region135: #{tpu_custom_call.1} parent=5 // pred_region
        %s3839 = ssub.s32 %s34, 2
      $region136: #{tpu_custom_call.1} parent=5 // pred_fallthru
        _
    $region6: #{tpu_custom_call.1} parent=1 // loop_footer
      %s38 = sadd.s32 1, %s34
    $region7: #{tpu_custom_call.1} parent=1 // loop_footer_branch
      %33 = sbr.rel target = $region3
    $region8: #{tpu_custom_call.1} parent=1 // loop_exit
      _
    %3840 = vsyncpa [#allocation4], 1
    %s3841 = scalar_lea.sflag [#allocation4], 1
    %3842 = vsyncpa %s3841, 1
    %3843 = vsyncpa [#allocation7], 1
    %s3844 = scalar_lea.sflag [#allocation7], 1
    %3845 = vsyncpa %s3844, 1
    %3846 = vsyncpa [#allocation10], 1
    %s3847 = scalar_lea.sflag [#allocation10], 1
    %3848 = vsyncpa %s3847, 1
    %3849 = vsyncpa [#allocation13], 1
    %s3850 = scalar_lea.sflag [#allocation13], 1
    %3851 = vsyncpa %s3850, 1
    %3852 = vsyncpa [#allocation5], 1
    %s3853 = scalar_lea.sflag [#allocation5], 1
    %3854 = vsyncpa %s3853, 1

</llo_original>
